<compile_context>
chip_gen: v5e
topology: v5e:2x2
jax: 0.10.0
libtpu: 0.0.40
codegen_flags: <defaults>
</compile_context>

<pallas_src>
import functools

import jax
import jax.numpy as jnp
from jax.experimental import pallas as pl
from jax.experimental.pallas import tpu as pltpu

# 256-row LHS fills the 2x256^2 MXU on v6e/v7x; on v5e 128 also works (the
# 4x128^2 MXU just loops internally for 256). Small batches shrink the tile.
DEFAULT_TILE_B = 256
_LANE = 128


def _round_up(x, m):
    return (x + m - 1) // m * m


# Packed-bias layout: each bias occupies a 128-lane-aligned segment of a single
# (1, _BIAS_PACKED_WIDTH) f32 array.
_BIAS_SEGS = (("pb1", 1024), ("pb2", 512), ("pb3", 64), ("lb1", 512),
              ("lb2", 64), ("cb1", 256), ("cb2", 64), ("cb3", 1))
_BIAS_OFF = {}
_off = 0
for _name, _w in _BIAS_SEGS:
    _BIAS_OFF[_name] = _off
    _off += _round_up(_w, _LANE)
_BIAS_PACKED_WIDTH = _off  # 2816


def _adversary_kernel(
    x_ref, y_ref,
    pw1_ref, pw2_ref, pw3_ref,           # pred_fc weights (bf16)
    lw1_ref, lw2_ref,                    # label_fc weights (bf16)
    cw1a_ref, cw1b_ref, cw2_ref,         # class_layer weights (bf16)
    cw3_row_ref,                         # final (1, 64) weight row (f32, VPU)
    b_ref,                               # packed biases (1, 2816) f32
    out_ref,
):
    f32 = jnp.float32
    bf16 = jnp.bfloat16

    def bias(name, width):
        off = _BIAS_OFF[name]                      # static, 128-lane aligned
        return b_ref[:, off:off + width]           # (1, width) f32

    def dot(a, w_ref):
        # bf16 x bf16 MXU matmul with f32 accumulation.
        return jnp.dot(a.astype(bf16), w_ref[...], preferred_element_type=f32)

    relu = lambda t: jnp.maximum(t, 0.0)

    # pred_fc: n_class(padded to 128) -> 1024 -> 512 -> 64, ReLU after each.
    x = x_ref[...]
    h = relu(dot(x, pw1_ref) + bias("pb1", 1024))
    h = relu(dot(h, pw2_ref) + bias("pb2", 512))
    x1 = relu(dot(h, pw3_ref) + bias("pb3", 64))

    # label_fc: n_class(padded to 128) -> 512 -> 64, ReLU after each.
    y = y_ref[...]
    g = relu(dot(y, lw1_ref) + bias("lb1", 512))
    x2 = relu(dot(g, lw2_ref) + bias("lb2", 64))

    # class_layer: cat([x1, x2]) @ cw1 == x1 @ cw1[:64] + x2 @ cw1[64:]
    z = relu(dot(x1, cw1a_ref) + dot(x2, cw1b_ref) + bias("cb1", 256))
    z = relu(dot(z, cw2_ref) + bias("cb2", 64))

    # Final 64 -> 1 Linear as a VPU multiply + lane reduce, then sigmoid.
    logit = jnp.sum(z * cw3_row_ref[...], axis=-1, keepdims=True) + bias("cb3", 1)
    out_ref[...] = jax.nn.sigmoid(logit)


@functools.partial(jax.jit, static_argnames=("tile_b",))
def adversary_forward(x, y, params, *, tile_b=DEFAULT_TILE_B):
    batch, n_class = x.shape
    k_pad = _round_up(n_class, _LANE)

    # Batch tile: full tile for large batches, shrink (multiple of 8 sublanes)
    # for small ones. Pad batch up to a multiple of the tile.
    tb = min(tile_b, _round_up(batch, 8))
    b_pad = _round_up(batch, tb)

    f32, bf16 = jnp.float32, jnp.bfloat16
    xp = jnp.pad(x.astype(f32), ((0, b_pad - batch), (0, k_pad - n_class)))
    yp = jnp.pad(y.astype(f32), ((0, b_pad - batch), (0, k_pad - n_class)))

    # Weights: zero-pad K=100 -> 128 on the first layers; cast to bf16.
    pw1 = jnp.pad(params["pw1"], ((0, k_pad - n_class), (0, 0))).astype(bf16)
    lw1 = jnp.pad(params["lw1"], ((0, k_pad - n_class), (0, 0))).astype(bf16)
    pw2 = params["pw2"].astype(bf16)
    pw3 = params["pw3"].astype(bf16)
    lw2 = params["lw2"].astype(bf16)
    cw1a = params["cw1"][:64].astype(bf16)
    cw1b = params["cw1"][64:].astype(bf16)
    cw2 = params["cw2"].astype(bf16)
    cw3_row = params["cw3"].reshape(1, 64).astype(f32)

    # Pack biases into one (1, 2816) f32 array with 128-aligned segments.
    parts = []
    for name, width in _BIAS_SEGS:
        seg = _round_up(width, _LANE)
        b = params[name].reshape(1, width).astype(f32)
        parts.append(jnp.pad(b, ((0, 0), (0, seg - width))))
    b_packed = jnp.concatenate(parts, axis=1)

    grid = (b_pad // tb,)

    def batch_spec(width):
        return pl.BlockSpec((tb, width), lambda i: (i, 0))

    def resident(arr):
        # Whole array, same block index every grid step -> VMEM-resident.
        return pl.BlockSpec(arr.shape, lambda i: (0, 0))

    weights = (pw1, pw2, pw3, lw1, lw2, cw1a, cw1b, cw2, cw3_row, b_packed)

    out = pl.pallas_call(
        _adversary_kernel,
        out_shape=jax.ShapeDtypeStruct((b_pad, 1), jnp.float32),
        grid=grid,
        in_specs=[batch_spec(k_pad), batch_spec(k_pad)]
                 + [resident(w) for w in weights],
        out_specs=pl.BlockSpec((tb, 1), lambda i: (i, 0)),
        compiler_params=pltpu.CompilerParams(
            dimension_semantics=("parallel",),
            vmem_limit_bytes=32 * 1024 * 1024,   # safe on v5e/v6e/v7x
        ),
    )(xp, yp, *weights)
    return out[:batch]


def init_adversary_params(key, n_class=100):
    """Mirrors the PyTorch module init: weights ~ N(0, 0.01), biases = 0."""
    dims = {
        "pw1": (n_class, 1024), "pw2": (1024, 512), "pw3": (512, 64),
        "lw1": (n_class, 512), "lw2": (512, 64),
        "cw1": (128, 256), "cw2": (256, 64), "cw3": (64, 1),
    }
    params = {}
    keys = jax.random.split(key, len(dims))
    for k, (name, (din, dout)) in zip(keys, dims.items()):
        params[name] = 0.01 * jax.random.normal(k, (din, dout), dtype=jnp.float32)
        params[name.replace("w", "b")] = jnp.zeros((1, dout), dtype=jnp.float32)
    return params


def adversary_reference_f32(x, y, p):
    """Plain-JAX f32 reference (exact module semantics)."""
    relu = lambda t: jnp.maximum(t, 0.0)
    h = relu(x @ p["pw1"] + p["pb1"])
    h = relu(h @ p["pw2"] + p["pb2"])
    x1 = relu(h @ p["pw3"] + p["pb3"])
    g = relu(y @ p["lw1"] + p["lb1"])
    x2 = relu(g @ p["lw2"] + p["lb2"])
    x12 = jnp.concatenate([x1, x2], axis=1)
    z = relu(x12 @ p["cw1"] + p["cb1"])
    z = relu(z @ p["cw2"] + p["cb2"])
    z = z @ p["cw3"] + p["cb3"]
    return jax.nn.sigmoid(z)


def adversary_reference_bf16(x, y, p):
    """Plain-JAX reference with the same bf16-weight / f32-accumulate numerics
    as the kernel (for a tight correctness check)."""
    f32, bf16 = jnp.float32, jnp.bfloat16
    relu = lambda t: jnp.maximum(t, 0.0)

    def dot(a, w):
        return jnp.dot(a.astype(bf16), w.astype(bf16), preferred_element_type=f32)

    h = relu(dot(x, p["pw1"]) + p["pb1"])
    h = relu(dot(h, p["pw2"]) + p["pb2"])
    x1 = relu(dot(h, p["pw3"]) + p["pb3"])
    g = relu(dot(y, p["lw1"]) + p["lb1"])
    x2 = relu(dot(g, p["lw2"]) + p["lb2"])
    z = relu(dot(x1, p["cw1"][:64]) + dot(x2, p["cw1"][64:]) + p["cb1"])
    z = relu(dot(z, p["cw2"]) + p["cb2"])
    logit = jnp.sum(z * p["cw3"].reshape(1, 64), axis=-1, keepdims=True) + p["cb3"]
    return jax.nn.sigmoid(logit)


if __name__ == "__main__":
    n_class = 100
    key = jax.random.PRNGKey(0)
    k_params, k_data = jax.random.split(key)
    params = init_adversary_params(k_params, n_class=n_class)

    # (batch, tile_b) cases: tiny single-tile batch, and a multi-tile grid.
    cases = [(8, DEFAULT_TILE_B), (40, 16)]
    for batch, tile_b in cases:
        kx, ky = jax.random.split(jax.random.fold_in(k_data, batch))
        x = jax.random.normal(kx, (batch, n_class), dtype=jnp.float32)
        y = jax.random.normal(ky, (batch, n_class), dtype=jnp.float32)

        out = jax.block_until_ready(adversary_forward(x, y, params, tile_b=tile_b))
        assert out.shape == (batch, 1), out.shape

        ref_bf16 = adversary_reference_bf16(x, y, params)
        ref_f32 = adversary_reference_f32(x, y, params)
        assert jnp.allclose(out, ref_bf16, atol=1e-4, rtol=1e-4), \
            "mismatch vs bf16-weight reference"
        assert jnp.allclose(out, ref_f32, atol=2e-2, rtol=2e-2), \
            "mismatch vs f32 reference"

    print("KERNEL_OK")
</pallas_src>

<mosaic_0001>
module attributes {stable_mosaic.version = 11 : i64} {
  func.func @_adversary_kernel(%arg0: i32, %arg1: memref<8x128xf32, #tpu.memory_space<vmem>>, %arg2: memref<8x128xf32, #tpu.memory_space<vmem>>, %arg3: memref<128x1024xbf16, #tpu.memory_space<vmem>>, %arg4: memref<1024x512xbf16, #tpu.memory_space<vmem>>, %arg5: memref<512x64xbf16, #tpu.memory_space<vmem>>, %arg6: memref<128x512xbf16, #tpu.memory_space<vmem>>, %arg7: memref<512x64xbf16, #tpu.memory_space<vmem>>, %arg8: memref<64x256xbf16, #tpu.memory_space<vmem>>, %arg9: memref<64x256xbf16, #tpu.memory_space<vmem>>, %arg10: memref<256x64xbf16, #tpu.memory_space<vmem>>, %arg11: memref<1x64xf32, #tpu.memory_space<vmem>>, %arg12: memref<1x2816xf32, #tpu.memory_space<vmem>>, %arg13: memref<8x1xf32, #tpu.memory_space<vmem>>) attributes {dimension_semantics = [#tpu.dimension_semantics<parallel>], iteration_bounds = array<i64: 1>, scalar_prefetch = 0 : i64, scratch_operands = 0 : i64, tpu.core_type = #tpu.core_type<tc>, window_params = [{transform_indices = @transform_0, window_bounds = array<i64: 8, 128>}, {transform_indices = @transform_1, window_bounds = array<i64: 8, 128>}, {pipeline_mode = #tpu.pipeline_mode<synchronous>, transform_indices = @transform_2, window_bounds = array<i64: 128, 1024>}, {pipeline_mode = #tpu.pipeline_mode<synchronous>, transform_indices = @transform_3, window_bounds = array<i64: 1024, 512>}, {pipeline_mode = #tpu.pipeline_mode<synchronous>, transform_indices = @transform_4, window_bounds = array<i64: 512, 64>}, {pipeline_mode = #tpu.pipeline_mode<synchronous>, transform_indices = @transform_5, window_bounds = array<i64: 128, 512>}, {pipeline_mode = #tpu.pipeline_mode<synchronous>, transform_indices = @transform_6, window_bounds = array<i64: 512, 64>}, {pipeline_mode = #tpu.pipeline_mode<synchronous>, transform_indices = @transform_7, window_bounds = array<i64: 64, 256>}, {pipeline_mode = #tpu.pipeline_mode<synchronous>, transform_indices = @transform_8, window_bounds = array<i64: 64, 256>}, {pipeline_mode = #tpu.pipeline_mode<synchronous>, transform_indices = @transform_9, window_bounds = array<i64: 256, 64>}, {pipeline_mode = #tpu.pipeline_mode<synchronous>, transform_indices = @transform_10, window_bounds = array<i64: 1, 64>}, {pipeline_mode = #tpu.pipeline_mode<synchronous>, transform_indices = @transform_11, window_bounds = array<i64: 1, 2816>}, {transform_indices = @transform_12, window_bounds = array<i64: 8, 1>}]} {
    %c0 = arith.constant 0 : index
    %c0_0 = arith.constant 0 : index
    %0 = vector.load %arg1[%c0, %c0_0] : memref<8x128xf32, #tpu.memory_space<vmem>>, vector<8x128xf32>
    %1 = arith.truncf %0 : vector<8x128xf32> to vector<8x128xbf16>
    %c0_1 = arith.constant 0 : index
    %c0_2 = arith.constant 0 : index
    %2 = vector.load %arg3[%c0_1, %c0_2] : memref<128x1024xbf16, #tpu.memory_space<vmem>>, vector<128x1024xbf16>
    %cst = arith.constant dense<0.000000e+00> : vector<8x1024xf32>
    %3 = tpu.matmul %1, %2, %cst {dimension_numbers = #tpu.dot_dimension_numbers<[1], [0], [0], [1], [0, 0, 1, 1], [], []>} : vector<8x128xbf16>, vector<128x1024xbf16>, vector<8x1024xf32> -> vector<8x1024xf32>
    %c0_3 = arith.constant 0 : index
    %c0_4 = arith.constant 0 : index
    %4 = vector.load %arg12[%c0_3, %c0_4] : memref<1x2816xf32, #tpu.memory_space<vmem>>, vector<1x1024xf32>
    %5 = vector.broadcast %4 : vector<1x1024xf32> to vector<8x1024xf32>
    %6 = arith.addf %3, %5 : vector<8x1024xf32>
    %cst_5 = arith.constant 0.000000e+00 : f32
    %7 = vector.broadcast %cst_5 : f32 to vector<8x1024xf32>
    %8 = arith.maximumf %6, %7 : vector<8x1024xf32>
    %9 = arith.truncf %8 : vector<8x1024xf32> to vector<8x1024xbf16>
    %c0_6 = arith.constant 0 : index
    %c0_7 = arith.constant 0 : index
    %10 = vector.load %arg4[%c0_6, %c0_7] : memref<1024x512xbf16, #tpu.memory_space<vmem>>, vector<1024x512xbf16>
    %cst_8 = arith.constant dense<0.000000e+00> : vector<8x512xf32>
    %11 = tpu.matmul %9, %10, %cst_8 {dimension_numbers = #tpu.dot_dimension_numbers<[1], [0], [0], [1], [0, 0, 1, 1], [], []>} : vector<8x1024xbf16>, vector<1024x512xbf16>, vector<8x512xf32> -> vector<8x512xf32>
    %c0_9 = arith.constant 0 : index
    %c1024 = arith.constant 1024 : index
    %12 = vector.load %arg12[%c0_9, %c1024] : memref<1x2816xf32, #tpu.memory_space<vmem>>, vector<1x512xf32>
    %13 = vector.broadcast %12 : vector<1x512xf32> to vector<8x512xf32>
    %14 = arith.addf %11, %13 : vector<8x512xf32>
    %cst_10 = arith.constant 0.000000e+00 : f32
    %15 = vector.broadcast %cst_10 : f32 to vector<8x512xf32>
    %16 = arith.maximumf %14, %15 : vector<8x512xf32>
    %17 = arith.truncf %16 : vector<8x512xf32> to vector<8x512xbf16>
    %c0_11 = arith.constant 0 : index
    %c0_12 = arith.constant 0 : index
    %18 = vector.load %arg5[%c0_11, %c0_12] : memref<512x64xbf16, #tpu.memory_space<vmem>>, vector<512x64xbf16>
    %cst_13 = arith.constant dense<0.000000e+00> : vector<8x64xf32>
    %19 = tpu.matmul %17, %18, %cst_13 {dimension_numbers = #tpu.dot_dimension_numbers<[1], [0], [0], [1], [0, 0, 1, 1], [], []>} : vector<8x512xbf16>, vector<512x64xbf16>, vector<8x64xf32> -> vector<8x64xf32>
    %c0_14 = arith.constant 0 : index
    %c1536 = arith.constant 1536 : index
    %20 = vector.load %arg12[%c0_14, %c1536] : memref<1x2816xf32, #tpu.memory_space<vmem>>, vector<1x64xf32>
    %21 = vector.broadcast %20 : vector<1x64xf32> to vector<8x64xf32>
    %22 = arith.addf %19, %21 : vector<8x64xf32>
    %cst_15 = arith.constant 0.000000e+00 : f32
    %23 = vector.broadcast %cst_15 : f32 to vector<8x64xf32>
    %24 = arith.maximumf %22, %23 : vector<8x64xf32>
    %c0_16 = arith.constant 0 : index
    %c0_17 = arith.constant 0 : index
    %25 = vector.load %arg2[%c0_16, %c0_17] : memref<8x128xf32, #tpu.memory_space<vmem>>, vector<8x128xf32>
    %26 = arith.truncf %25 : vector<8x128xf32> to vector<8x128xbf16>
    %c0_18 = arith.constant 0 : index
    %c0_19 = arith.constant 0 : index
    %27 = vector.load %arg6[%c0_18, %c0_19] : memref<128x512xbf16, #tpu.memory_space<vmem>>, vector<128x512xbf16>
    %cst_20 = arith.constant dense<0.000000e+00> : vector<8x512xf32>
    %28 = tpu.matmul %26, %27, %cst_20 {dimension_numbers = #tpu.dot_dimension_numbers<[1], [0], [0], [1], [0, 0, 1, 1], [], []>} : vector<8x128xbf16>, vector<128x512xbf16>, vector<8x512xf32> -> vector<8x512xf32>
    %c0_21 = arith.constant 0 : index
    %c1664 = arith.constant 1664 : index
    %29 = vector.load %arg12[%c0_21, %c1664] : memref<1x2816xf32, #tpu.memory_space<vmem>>, vector<1x512xf32>
    %30 = vector.broadcast %29 : vector<1x512xf32> to vector<8x512xf32>
    %31 = arith.addf %28, %30 : vector<8x512xf32>
    %cst_22 = arith.constant 0.000000e+00 : f32
    %32 = vector.broadcast %cst_22 : f32 to vector<8x512xf32>
    %33 = arith.maximumf %31, %32 : vector<8x512xf32>
    %34 = arith.truncf %33 : vector<8x512xf32> to vector<8x512xbf16>
    %c0_23 = arith.constant 0 : index
    %c0_24 = arith.constant 0 : index
    %35 = vector.load %arg7[%c0_23, %c0_24] : memref<512x64xbf16, #tpu.memory_space<vmem>>, vector<512x64xbf16>
    %cst_25 = arith.constant dense<0.000000e+00> : vector<8x64xf32>
    %36 = tpu.matmul %34, %35, %cst_25 {dimension_numbers = #tpu.dot_dimension_numbers<[1], [0], [0], [1], [0, 0, 1, 1], [], []>} : vector<8x512xbf16>, vector<512x64xbf16>, vector<8x64xf32> -> vector<8x64xf32>
    %c0_26 = arith.constant 0 : index
    %c2176 = arith.constant 2176 : index
    %37 = vector.load %arg12[%c0_26, %c2176] : memref<1x2816xf32, #tpu.memory_space<vmem>>, vector<1x64xf32>
    %38 = vector.broadcast %37 : vector<1x64xf32> to vector<8x64xf32>
    %39 = arith.addf %36, %38 : vector<8x64xf32>
    %cst_27 = arith.constant 0.000000e+00 : f32
    %40 = vector.broadcast %cst_27 : f32 to vector<8x64xf32>
    %41 = arith.maximumf %39, %40 : vector<8x64xf32>
    %42 = arith.truncf %24 : vector<8x64xf32> to vector<8x64xbf16>
    %c0_28 = arith.constant 0 : index
    %c0_29 = arith.constant 0 : index
    %43 = vector.load %arg8[%c0_28, %c0_29] : memref<64x256xbf16, #tpu.memory_space<vmem>>, vector<64x256xbf16>
    %cst_30 = arith.constant dense<0.000000e+00> : vector<8x256xf32>
    %44 = tpu.matmul %42, %43, %cst_30 {dimension_numbers = #tpu.dot_dimension_numbers<[1], [0], [0], [1], [0, 0, 1, 1], [], []>} : vector<8x64xbf16>, vector<64x256xbf16>, vector<8x256xf32> -> vector<8x256xf32>
    %45 = arith.truncf %41 : vector<8x64xf32> to vector<8x64xbf16>
    %c0_31 = arith.constant 0 : index
    %c0_32 = arith.constant 0 : index
    %46 = vector.load %arg9[%c0_31, %c0_32] : memref<64x256xbf16, #tpu.memory_space<vmem>>, vector<64x256xbf16>
    %cst_33 = arith.constant dense<0.000000e+00> : vector<8x256xf32>
    %47 = tpu.matmul %45, %46, %cst_33 {dimension_numbers = #tpu.dot_dimension_numbers<[1], [0], [0], [1], [0, 0, 1, 1], [], []>} : vector<8x64xbf16>, vector<64x256xbf16>, vector<8x256xf32> -> vector<8x256xf32>
    %48 = arith.addf %44, %47 : vector<8x256xf32>
    %c0_34 = arith.constant 0 : index
    %c2304 = arith.constant 2304 : index
    %49 = vector.load %arg12[%c0_34, %c2304] : memref<1x2816xf32, #tpu.memory_space<vmem>>, vector<1x256xf32>
    %50 = vector.broadcast %49 : vector<1x256xf32> to vector<8x256xf32>
    %51 = arith.addf %48, %50 : vector<8x256xf32>
    %cst_35 = arith.constant 0.000000e+00 : f32
    %52 = vector.broadcast %cst_35 : f32 to vector<8x256xf32>
    %53 = arith.maximumf %51, %52 : vector<8x256xf32>
    %54 = arith.truncf %53 : vector<8x256xf32> to vector<8x256xbf16>
    %c0_36 = arith.constant 0 : index
    %c0_37 = arith.constant 0 : index
    %55 = vector.load %arg10[%c0_36, %c0_37] : memref<256x64xbf16, #tpu.memory_space<vmem>>, vector<256x64xbf16>
    %cst_38 = arith.constant dense<0.000000e+00> : vector<8x64xf32>
    %56 = tpu.matmul %54, %55, %cst_38 {dimension_numbers = #tpu.dot_dimension_numbers<[1], [0], [0], [1], [0, 0, 1, 1], [], []>} : vector<8x256xbf16>, vector<256x64xbf16>, vector<8x64xf32> -> vector<8x64xf32>
    %c0_39 = arith.constant 0 : index
    %c2560 = arith.constant 2560 : index
    %57 = vector.load %arg12[%c0_39, %c2560] : memref<1x2816xf32, #tpu.memory_space<vmem>>, vector<1x64xf32>
    %58 = vector.broadcast %57 : vector<1x64xf32> to vector<8x64xf32>
    %59 = arith.addf %56, %58 : vector<8x64xf32>
    %cst_40 = arith.constant 0.000000e+00 : f32
    %60 = vector.broadcast %cst_40 : f32 to vector<8x64xf32>
    %61 = arith.maximumf %59, %60 : vector<8x64xf32>
    %c0_41 = arith.constant 0 : index
    %c0_42 = arith.constant 0 : index
    %62 = vector.load %arg11[%c0_41, %c0_42] : memref<1x64xf32, #tpu.memory_space<vmem>>, vector<1x64xf32>
    %63 = vector.broadcast %62 : vector<1x64xf32> to vector<8x64xf32>
    %64 = arith.mulf %61, %63 : vector<8x64xf32>
    %cst_43 = arith.constant dense<0.000000e+00> : vector<8xf32>
    %65 = vector.multi_reduction <add>, %64, %cst_43 [1] : vector<8x64xf32> to vector<8xf32>
    %66 = vector.shape_cast %65 : vector<8xf32> to vector<8x1xf32>
    %c0_44 = arith.constant 0 : index
    %c2688 = arith.constant 2688 : index
    %67 = vector.load %arg12[%c0_44, %c2688] : memref<1x2816xf32, #tpu.memory_space<vmem>>, vector<1x1xf32>
    %68 = vector.broadcast %67 : vector<1x1xf32> to vector<8x1xf32>
    %69 = arith.addf %66, %68 : vector<8x1xf32>
    %70 = arith.negf %69 : vector<8x1xf32>
    %71 = math.exp %70 : vector<8x1xf32>
    %cst_45 = arith.constant 1.000000e+00 : f32
    %72 = vector.broadcast %cst_45 : f32 to vector<8x1xf32>
    %73 = arith.addf %72, %71 : vector<8x1xf32>
    %74 = arith.divf %72, %73 : vector<8x1xf32>
    %c0_46 = arith.constant 0 : index
    %c0_47 = arith.constant 0 : index
    %75 = vector.load %arg13[%c0_46, %c0_47] : memref<8x1xf32, #tpu.memory_space<vmem>>, vector<8x1xf32>
    tpu.vector_store %arg13[%c0_46, %c0_47], %74 {strides = array<i32>} : memref<8x1xf32, #tpu.memory_space<vmem>>, vector<8x1xf32>,
    return
  }
  func.func @transform_0(%arg0: i32) -> (i32, i32) {
    %c0_i32 = arith.constant 0 : i32
    %c0_i32_0 = arith.constant 0 : i32
    return %arg0, %c0_i32 : i32, i32
  }
  func.func @transform_1(%arg0: i32) -> (i32, i32) {
    %c0_i32 = arith.constant 0 : i32
    %c0_i32_0 = arith.constant 0 : i32
    return %arg0, %c0_i32 : i32, i32
  }
  func.func @transform_2(%arg0: i32) -> (i32, i32) {
    %c0_i32 = arith.constant 0 : i32
    %c0_i32_0 = arith.constant 0 : i32
    %c0_i32_1 = arith.constant 0 : i32
    return %c0_i32, %c0_i32_0 : i32, i32
  }
  func.func @transform_3(%arg0: i32) -> (i32, i32) {
    %c0_i32 = arith.constant 0 : i32
    %c0_i32_0 = arith.constant 0 : i32
    %c0_i32_1 = arith.constant 0 : i32
    return %c0_i32, %c0_i32_0 : i32, i32
  }
  func.func @transform_4(%arg0: i32) -> (i32, i32) {
    %c0_i32 = arith.constant 0 : i32
    %c0_i32_0 = arith.constant 0 : i32
    %c0_i32_1 = arith.constant 0 : i32
    return %c0_i32, %c0_i32_0 : i32, i32
  }
  func.func @transform_5(%arg0: i32) -> (i32, i32) {
    %c0_i32 = arith.constant 0 : i32
    %c0_i32_0 = arith.constant 0 : i32
    %c0_i32_1 = arith.constant 0 : i32
    return %c0_i32, %c0_i32_0 : i32, i32
  }
  func.func @transform_6(%arg0: i32) -> (i32, i32) {
    %c0_i32 = arith.constant 0 : i32
    %c0_i32_0 = arith.constant 0 : i32
    %c0_i32_1 = arith.constant 0 : i32
    return %c0_i32, %c0_i32_0 : i32, i32
  }
  func.func @transform_7(%arg0: i32) -> (i32, i32) {
    %c0_i32 = arith.constant 0 : i32
    %c0_i32_0 = arith.constant 0 : i32
    %c0_i32_1 = arith.constant 0 : i32
    return %c0_i32, %c0_i32_0 : i32, i32
  }
  func.func @transform_8(%arg0: i32) -> (i32, i32) {
    %c0_i32 = arith.constant 0 : i32
    %c0_i32_0 = arith.constant 0 : i32
    %c0_i32_1 = arith.constant 0 : i32
    return %c0_i32, %c0_i32_0 : i32, i32
  }
  func.func @transform_9(%arg0: i32) -> (i32, i32) {
    %c0_i32 = arith.constant 0 : i32
    %c0_i32_0 = arith.constant 0 : i32
    %c0_i32_1 = arith.constant 0 : i32
    return %c0_i32, %c0_i32_0 : i32, i32
  }
  func.func @transform_10(%arg0: i32) -> (i32, i32) {
    %c0_i32 = arith.constant 0 : i32
    %c0_i32_0 = arith.constant 0 : i32
    %c0_i32_1 = arith.constant 0 : i32
    return %c0_i32, %c0_i32_0 : i32, i32
  }
  func.func @transform_11(%arg0: i32) -> (i32, i32) {
    %c0_i32 = arith.constant 0 : i32
    %c0_i32_0 = arith.constant 0 : i32
    %c0_i32_1 = arith.constant 0 : i32
    return %c0_i32, %c0_i32_0 : i32, i32
  }
  func.func @transform_12(%arg0: i32) -> (i32, i32) {
    %c0_i32 = arith.constant 0 : i32
    %c0_i32_0 = arith.constant 0 : i32
    return %arg0, %c0_i32 : i32, i32
  }
}

</mosaic_0001>

<llo_original>
// kernel: adversary_forward.1
$region0: #{adversary_forward.1}
  #allocation0 [shape = 'u32[]', space=smem, size = 0x4, offset = 0x4, fixed_abs, tag = 'smem constant byte address 0x4 - core index']
  #allocation1 [shape = 'u32[72,128]{1,0:T(1,128)}', space=vmem, size = 0x9000, scoped, tag = 'internal scratch']
  %s0 = inlined_call_operand.vmem [shape: f32[8,128], index: 0, kind: input, shape index: {}]
  %s1 = inlined_call_operand.vmem [shape: f32[8,128], index: 1, kind: input, shape index: {}]
  %s2 = inlined_call_operand.vmem [shape: bf16[128,1024], index: 2, kind: input, shape index: {}]
  %s3 = inlined_call_operand.vmem [shape: bf16[1024,512], index: 3, kind: input, shape index: {}]
  %s4 = inlined_call_operand.vmem [shape: bf16[512,64], index: 4, kind: input, shape index: {}]
  %s5 = inlined_call_operand.vmem [shape: bf16[128,512], index: 5, kind: input, shape index: {}]
  %s6 = inlined_call_operand.vmem [shape: bf16[512,64], index: 6, kind: input, shape index: {}]
  %s7 = inlined_call_operand.vmem [shape: bf16[64,256], index: 7, kind: input, shape index: {}]
  %s8 = inlined_call_operand.vmem [shape: bf16[64,256], index: 8, kind: input, shape index: {}]
  %s9 = inlined_call_operand.vmem [shape: bf16[256,64], index: 9, kind: input, shape index: {}]
  %s10 = inlined_call_operand.vmem [shape: f32[1,64], index: 10, kind: input, shape index: {}]
  %s11 = inlined_call_operand.vmem [shape: f32[1,2816], index: 11, kind: input, shape index: {}]
  %s12 = inlined_call_operand.vmem [shape: f32[8,1], index: 12, kind: output, shape index: {}]
  %s13 = sld [smem:[#allocation0]]
  $region58: #{adversary_forward.1} parent=0
    _
  %s15 = ssub.s32 1, %s13
  %s16 = scalar_select 0, %s15, %s13
  // Predicated region
  $region2: #{adversary_forward.1} parent=0 // pred_check
    _
  $region3: #{adversary_forward.1} parent=0 // pred_check_branch
    %18 = sbr.rel (0) target = $region5
  $region4: #{adversary_forward.1} parent=0 // pred_region
    _
  $region5: #{adversary_forward.1} parent=0 // pred_fallthru
    _
  // Predicated region
  $region6: #{adversary_forward.1} parent=0 // pred_check
    _
  $region7: #{adversary_forward.1} parent=0 // pred_check_branch
    %20 = sbr.rel (0) target = $region9
  $region8: #{adversary_forward.1} parent=0 // pred_region
    _
  $region9: #{adversary_forward.1} parent=0 // pred_fallthru
    _
  // Predicated region
  $region10: #{adversary_forward.1} parent=0 // pred_check
    _
  $region11: #{adversary_forward.1} parent=0 // pred_check_branch
    %22 = sbr.rel (0) target = $region13
  $region12: #{adversary_forward.1} parent=0 // pred_region
    _
  $region13: #{adversary_forward.1} parent=0 // pred_fallthru
    _
  // Predicated region
  $region14: #{adversary_forward.1} parent=0 // pred_check
    _
  $region15: #{adversary_forward.1} parent=0 // pred_check_branch
    %24 = sbr.rel (0) target = $region17
  $region16: #{adversary_forward.1} parent=0 // pred_region
    _
  $region17: #{adversary_forward.1} parent=0 // pred_fallthru
    _
  // Predicated region
  $region18: #{adversary_forward.1} parent=0 // pred_check
    _
  $region19: #{adversary_forward.1} parent=0 // pred_check_branch
    %26 = sbr.rel (0) target = $region21
  $region20: #{adversary_forward.1} parent=0 // pred_region
    _
  $region21: #{adversary_forward.1} parent=0 // pred_fallthru
    _
  // Predicated region
  $region22: #{adversary_forward.1} parent=0 // pred_check
    _
  $region23: #{adversary_forward.1} parent=0 // pred_check_branch
    %28 = sbr.rel (0) target = $region25
  $region24: #{adversary_forward.1} parent=0 // pred_region
    _
  $region25: #{adversary_forward.1} parent=0 // pred_fallthru
    _
  // Predicated region
  $region26: #{adversary_forward.1} parent=0 // pred_check
    _
  $region27: #{adversary_forward.1} parent=0 // pred_check_branch
    %30 = sbr.rel (0) target = $region29
  $region28: #{adversary_forward.1} parent=0 // pred_region
    _
  $region29: #{adversary_forward.1} parent=0 // pred_fallthru
    _
  // Predicated region
  $region30: #{adversary_forward.1} parent=0 // pred_check
    _
  $region31: #{adversary_forward.1} parent=0 // pred_check_branch
    %32 = sbr.rel (0) target = $region33
  $region32: #{adversary_forward.1} parent=0 // pred_region
    _
  $region33: #{adversary_forward.1} parent=0 // pred_fallthru
    _
  // Predicated region
  $region34: #{adversary_forward.1} parent=0 // pred_check
    _
  $region35: #{adversary_forward.1} parent=0 // pred_check_branch
    %34 = sbr.rel (0) target = $region37
  $region36: #{adversary_forward.1} parent=0 // pred_region
    _
  $region37: #{adversary_forward.1} parent=0 // pred_fallthru
    _
  // Predicated region
  $region38: #{adversary_forward.1} parent=0 // pred_check
    _
  $region39: #{adversary_forward.1} parent=0 // pred_check_branch
    %36 = sbr.rel (0) target = $region41
  $region40: #{adversary_forward.1} parent=0 // pred_region
    _
  $region41: #{adversary_forward.1} parent=0 // pred_fallthru
    _
  // Predicated region
  $region42: #{adversary_forward.1} parent=0 // pred_check
    _
  $region43: #{adversary_forward.1} parent=0 // pred_check_branch
    %38 = sbr.rel (0) target = $region45
  $region44: #{adversary_forward.1} parent=0 // pred_region
    _
  $region45: #{adversary_forward.1} parent=0 // pred_fallthru
    _
  // Predicated region
  $region46: #{adversary_forward.1} parent=0 // pred_check
    _
  $region47: #{adversary_forward.1} parent=0 // pred_check_branch
    %40 = sbr.rel (0) target = $region49
  $region48: #{adversary_forward.1} parent=0 // pred_region
    _
  $region49: #{adversary_forward.1} parent=0 // pred_fallthru
    _
  %v42 = vld [vmem:[%s0] sm:$0xff]
  %v43 = vpack.c.bf16 %v42, %v42
  %v44 = vld [vmem:[%s2] sm:$0xff]
  %v45 = vld [vmem:[%s2 + $0x8] sm:$0xff]
  %v46 = vld [vmem:[%s2 + $0x10] sm:$0xff]
  %v47 = vld [vmem:[%s2 + $0x18] sm:$0xff]
  %v48 = vld [vmem:[%s2 + $0x20] sm:$0xff]
  %v49 = vld [vmem:[%s2 + $0x28] sm:$0xff]
  %v50 = vld [vmem:[%s2 + $0x30] sm:$0xff]
  %v51 = vld [vmem:[%s2 + $0x38] sm:$0xff]
  %v52 = vld [vmem:[%s2 + $0x40] sm:$0xff]
  %v53 = vld [vmem:[%s2 + $0x48] sm:$0xff]
  %v54 = vld [vmem:[%s2 + $0x50] sm:$0xff]
  %v55 = vld [vmem:[%s2 + $0x58] sm:$0xff]
  %v56 = vld [vmem:[%s2 + $0x60] sm:$0xff]
  %v57 = vld [vmem:[%s2 + $0x68] sm:$0xff]
  %v58 = vld [vmem:[%s2 + $0x70] sm:$0xff]
  %v59 = vld [vmem:[%s2 + $0x78] sm:$0xff]
  %v60 = vld [vmem:[%s2 + $0x80] sm:$0xff]
  %v61 = vld [vmem:[%s2 + $0x88] sm:$0xff]
  %v62 = vld [vmem:[%s2 + $0x90] sm:$0xff]
  %v63 = vld [vmem:[%s2 + $0x98] sm:$0xff]
  %v64 = vld [vmem:[%s2 + $0xa0] sm:$0xff]
  %v65 = vld [vmem:[%s2 + $0xa8] sm:$0xff]
  %v66 = vld [vmem:[%s2 + $0xb0] sm:$0xff]
  %v67 = vld [vmem:[%s2 + $0xb8] sm:$0xff]
  %v68 = vld [vmem:[%s2 + $0xc0] sm:$0xff]
  %v69 = vld [vmem:[%s2 + $0xc8] sm:$0xff]
  %v70 = vld [vmem:[%s2 + $0xd0] sm:$0xff]
  %v71 = vld [vmem:[%s2 + $0xd8] sm:$0xff]
  %v72 = vld [vmem:[%s2 + $0xe0] sm:$0xff]
  %v73 = vld [vmem:[%s2 + $0xe8] sm:$0xff]
  %v74 = vld [vmem:[%s2 + $0xf0] sm:$0xff]
  %v75 = vld [vmem:[%s2 + $0xf8] sm:$0xff]
  %v76 = vld [vmem:[%s2 + $0x100] sm:$0xff]
  %v77 = vld [vmem:[%s2 + $0x108] sm:$0xff]
  %v78 = vld [vmem:[%s2 + $0x110] sm:$0xff]
  %v79 = vld [vmem:[%s2 + $0x118] sm:$0xff]
  %v80 = vld [vmem:[%s2 + $0x120] sm:$0xff]
  %v81 = vld [vmem:[%s2 + $0x128] sm:$0xff]
  %v82 = vld [vmem:[%s2 + $0x130] sm:$0xff]
  %v83 = vld [vmem:[%s2 + $0x138] sm:$0xff]
  %v84 = vld [vmem:[%s2 + $0x140] sm:$0xff]
  %v85 = vld [vmem:[%s2 + $0x148] sm:$0xff]
  %v86 = vld [vmem:[%s2 + $0x150] sm:$0xff]
  %v87 = vld [vmem:[%s2 + $0x158] sm:$0xff]
  %v88 = vld [vmem:[%s2 + $0x160] sm:$0xff]
  %v89 = vld [vmem:[%s2 + $0x168] sm:$0xff]
  %v90 = vld [vmem:[%s2 + $0x170] sm:$0xff]
  %v91 = vld [vmem:[%s2 + $0x178] sm:$0xff]
  %v92 = vld [vmem:[%s2 + $0x180] sm:$0xff]
  %v93 = vld [vmem:[%s2 + $0x188] sm:$0xff]
  %v94 = vld [vmem:[%s2 + $0x190] sm:$0xff]
  %v95 = vld [vmem:[%s2 + $0x198] sm:$0xff]
  %v96 = vld [vmem:[%s2 + $0x1a0] sm:$0xff]
  %v97 = vld [vmem:[%s2 + $0x1a8] sm:$0xff]
  %v98 = vld [vmem:[%s2 + $0x1b0] sm:$0xff]
  %v99 = vld [vmem:[%s2 + $0x1b8] sm:$0xff]
  %v100 = vld [vmem:[%s2 + $0x1c0] sm:$0xff]
  %v101 = vld [vmem:[%s2 + $0x1c8] sm:$0xff]
  %v102 = vld [vmem:[%s2 + $0x1d0] sm:$0xff]
  %v103 = vld [vmem:[%s2 + $0x1d8] sm:$0xff]
  %v104 = vld [vmem:[%s2 + $0x1e0] sm:$0xff]
  %v105 = vld [vmem:[%s2 + $0x1e8] sm:$0xff]
  %v106 = vld [vmem:[%s2 + $0x1f0] sm:$0xff]
  %v107 = vld [vmem:[%s2 + $0x1f8] sm:$0xff]
  %v108 = vld [vmem:[%s11] sm:$0xff]
  %v110 = vperm.slane %v108, 0
  %v111 = vperm.slane %v108, 1
  %v112 = vperm.slane %v108, 2
  %v113 = vperm.slane %v108, 3
  %v114 = vperm.slane %v108, 4
  %v115 = vperm.slane %v108, 5
  %v116 = vperm.slane %v108, 6
  %v117 = vperm.slane %v108, 7
  %v190 = vunpack.c.l.b16 %v44
  %v191 = vunpack.c.h.b16 %v44
  %v192 = vunpack.c.l.b16 %v45
  %v193 = vunpack.c.h.b16 %v45
  %v194 = vunpack.c.l.b16 %v46
  %v195 = vunpack.c.h.b16 %v46
  %v196 = vunpack.c.l.b16 %v47
  %v197 = vunpack.c.h.b16 %v47
  %v198 = vunpack.c.l.b16 %v48
  %v199 = vunpack.c.h.b16 %v48
  %v200 = vunpack.c.l.b16 %v49
  %v201 = vunpack.c.h.b16 %v49
  %v202 = vunpack.c.l.b16 %v50
  %v203 = vunpack.c.h.b16 %v50
  %v204 = vunpack.c.l.b16 %v51
  %v205 = vunpack.c.h.b16 %v51
  %v206 = vunpack.c.l.b16 %v52
  %v207 = vunpack.c.h.b16 %v52
  %v208 = vunpack.c.l.b16 %v53
  %v209 = vunpack.c.h.b16 %v53
  %v210 = vunpack.c.l.b16 %v54
  %v211 = vunpack.c.h.b16 %v54
  %v212 = vunpack.c.l.b16 %v55
  %v213 = vunpack.c.h.b16 %v55
  %v214 = vunpack.c.l.b16 %v56
  %v215 = vunpack.c.h.b16 %v56
  %v216 = vunpack.c.l.b16 %v57
  %v217 = vunpack.c.h.b16 %v57
  %v218 = vunpack.c.l.b16 %v58
  %v219 = vunpack.c.h.b16 %v58
  %v220 = vunpack.c.l.b16 %v59
  %v221 = vunpack.c.h.b16 %v59
  %v222 = vunpack.c.l.b16 %v60
  %v223 = vunpack.c.h.b16 %v60
  %v224 = vunpack.c.l.b16 %v61
  %v225 = vunpack.c.h.b16 %v61
  %v226 = vunpack.c.l.b16 %v62
  %v227 = vunpack.c.h.b16 %v62
  %v228 = vunpack.c.l.b16 %v63
  %v229 = vunpack.c.h.b16 %v63
  %v230 = vunpack.c.l.b16 %v64
  %v231 = vunpack.c.h.b16 %v64
  %v232 = vunpack.c.l.b16 %v65
  %v233 = vunpack.c.h.b16 %v65
  %v234 = vunpack.c.l.b16 %v66
  %v235 = vunpack.c.h.b16 %v66
  %v236 = vunpack.c.l.b16 %v67
  %v237 = vunpack.c.h.b16 %v67
  %v238 = vunpack.c.l.b16 %v68
  %v239 = vunpack.c.h.b16 %v68
  %v240 = vunpack.c.l.b16 %v69
  %v241 = vunpack.c.h.b16 %v69
  %v242 = vunpack.c.l.b16 %v70
  %v243 = vunpack.c.h.b16 %v70
  %v244 = vunpack.c.l.b16 %v71
  %v245 = vunpack.c.h.b16 %v71
  %v246 = vunpack.c.l.b16 %v72
  %v247 = vunpack.c.h.b16 %v72
  %v248 = vunpack.c.l.b16 %v73
  %v249 = vunpack.c.h.b16 %v73
  %v250 = vunpack.c.l.b16 %v74
  %v251 = vunpack.c.h.b16 %v74
  %v252 = vunpack.c.l.b16 %v75
  %v253 = vunpack.c.h.b16 %v75
  %v254 = vunpack.c.l.b16 %v76
  %v255 = vunpack.c.h.b16 %v76
  %v256 = vunpack.c.l.b16 %v77
  %v257 = vunpack.c.h.b16 %v77
  %v258 = vunpack.c.l.b16 %v78
  %v259 = vunpack.c.h.b16 %v78
  %v260 = vunpack.c.l.b16 %v79
  %v261 = vunpack.c.h.b16 %v79
  %v262 = vunpack.c.l.b16 %v80
  %v263 = vunpack.c.h.b16 %v80
  %v264 = vunpack.c.l.b16 %v81
  %v265 = vunpack.c.h.b16 %v81
  %v266 = vunpack.c.l.b16 %v82
  %v267 = vunpack.c.h.b16 %v82
  %v268 = vunpack.c.l.b16 %v83
  %v269 = vunpack.c.h.b16 %v83
  %v270 = vunpack.c.l.b16 %v84
  %v271 = vunpack.c.h.b16 %v84
  %v272 = vunpack.c.l.b16 %v85
  %v273 = vunpack.c.h.b16 %v85
  %v274 = vunpack.c.l.b16 %v86
  %v275 = vunpack.c.h.b16 %v86
  %v276 = vunpack.c.l.b16 %v87
  %v277 = vunpack.c.h.b16 %v87
  %v278 = vunpack.c.l.b16 %v88
  %v279 = vunpack.c.h.b16 %v88
  %v280 = vunpack.c.l.b16 %v89
  %v281 = vunpack.c.h.b16 %v89
  %v282 = vunpack.c.l.b16 %v90
  %v283 = vunpack.c.h.b16 %v90
  %v284 = vunpack.c.l.b16 %v91
  %v285 = vunpack.c.h.b16 %v91
  %v286 = vunpack.c.l.b16 %v92
  %v287 = vunpack.c.h.b16 %v92
  %v288 = vunpack.c.l.b16 %v93
  %v289 = vunpack.c.h.b16 %v93
  %v290 = vunpack.c.l.b16 %v94
  %v291 = vunpack.c.h.b16 %v94
  %v292 = vunpack.c.l.b16 %v95
  %v293 = vunpack.c.h.b16 %v95
  %v294 = vunpack.c.l.b16 %v96
  %v295 = vunpack.c.h.b16 %v96
  %v296 = vunpack.c.l.b16 %v97
  %v297 = vunpack.c.h.b16 %v97
  %v298 = vunpack.c.l.b16 %v98
  %v299 = vunpack.c.h.b16 %v98
  %v300 = vunpack.c.l.b16 %v99
  %v301 = vunpack.c.h.b16 %v99
  %v302 = vunpack.c.l.b16 %v100
  %v303 = vunpack.c.h.b16 %v100
  %v304 = vunpack.c.l.b16 %v101
  %v305 = vunpack.c.h.b16 %v101
  %v306 = vunpack.c.l.b16 %v102
  %v307 = vunpack.c.h.b16 %v102
  %v308 = vunpack.c.l.b16 %v103
  %v309 = vunpack.c.h.b16 %v103
  %v310 = vunpack.c.l.b16 %v104
  %v311 = vunpack.c.h.b16 %v104
  %v312 = vunpack.c.l.b16 %v105
  %v313 = vunpack.c.h.b16 %v105
  %v314 = vunpack.c.l.b16 %v106
  %v315 = vunpack.c.h.b16 %v106
  %v316 = vunpack.c.l.b16 %v107
  %v317 = vunpack.c.h.b16 %v107
  %v318 = vpack.c.b16 %v198, %v190
  %v319 = vpack.c.b16 %v199, %v191
  %v320 = vpack.c.b16 %v200, %v192
  %v321 = vpack.c.b16 %v201, %v193
  %v322 = vpack.c.b16 %v202, %v194
  %v323 = vpack.c.b16 %v203, %v195
  %v324 = vpack.c.b16 %v204, %v196
  %v325 = vpack.c.b16 %v205, %v197
  %v326 = vpack.c.b16 %v214, %v206
  %v327 = vpack.c.b16 %v215, %v207
  %v328 = vpack.c.b16 %v216, %v208
  %v329 = vpack.c.b16 %v217, %v209
  %v330 = vpack.c.b16 %v218, %v210
  %v331 = vpack.c.b16 %v219, %v211
  %v332 = vpack.c.b16 %v220, %v212
  %v333 = vpack.c.b16 %v221, %v213
  %v334 = vpack.c.b16 %v230, %v222
  %v335 = vpack.c.b16 %v231, %v223
  %v336 = vpack.c.b16 %v232, %v224
  %v337 = vpack.c.b16 %v233, %v225
  %v338 = vpack.c.b16 %v234, %v226
  %v339 = vpack.c.b16 %v235, %v227
  %v340 = vpack.c.b16 %v236, %v228
  %v341 = vpack.c.b16 %v237, %v229
  %v342 = vpack.c.b16 %v246, %v238
  %v343 = vpack.c.b16 %v247, %v239
  %v344 = vpack.c.b16 %v248, %v240
  %v345 = vpack.c.b16 %v249, %v241
  %v346 = vpack.c.b16 %v250, %v242
  %v347 = vpack.c.b16 %v251, %v243
  %v348 = vpack.c.b16 %v252, %v244
  %v349 = vpack.c.b16 %v253, %v245
  %v350 = vpack.c.b16 %v262, %v254
  %v351 = vpack.c.b16 %v263, %v255
  %v352 = vpack.c.b16 %v264, %v256
  %v353 = vpack.c.b16 %v265, %v257
  %v354 = vpack.c.b16 %v266, %v258
  %v355 = vpack.c.b16 %v267, %v259
  %v356 = vpack.c.b16 %v268, %v260
  %v357 = vpack.c.b16 %v269, %v261
  %v358 = vpack.c.b16 %v278, %v270
  %v359 = vpack.c.b16 %v279, %v271
  %v360 = vpack.c.b16 %v280, %v272
  %v361 = vpack.c.b16 %v281, %v273
  %v362 = vpack.c.b16 %v282, %v274
  %v363 = vpack.c.b16 %v283, %v275
  %v364 = vpack.c.b16 %v284, %v276
  %v365 = vpack.c.b16 %v285, %v277
  %v366 = vpack.c.b16 %v294, %v286
  %v367 = vpack.c.b16 %v295, %v287
  %v368 = vpack.c.b16 %v296, %v288
  %v369 = vpack.c.b16 %v297, %v289
  %v370 = vpack.c.b16 %v298, %v290
  %v371 = vpack.c.b16 %v299, %v291
  %v372 = vpack.c.b16 %v300, %v292
  %v373 = vpack.c.b16 %v301, %v293
  %v374 = vpack.c.b16 %v310, %v302
  %v375 = vpack.c.b16 %v311, %v303
  %v376 = vpack.c.b16 %v312, %v304
  %v377 = vpack.c.b16 %v313, %v305
  %v378 = vpack.c.b16 %v314, %v306
  %v379 = vpack.c.b16 %v315, %v307
  %v380 = vpack.c.b16 %v316, %v308
  %v381 = vpack.c.b16 %v317, %v309
  %446 = vmatpush.bf16.msra.mxu0 %v374
  %447 = vmatpush.bf16.msra.mxu0 %v366
  %448 = vmatpush.bf16.msra.mxu0 %v358
  %449 = vmatpush.bf16.msra.mxu0 %v350
  %450 = vmatpush.bf16.msra.mxu0 %v342
  %451 = vmatpush.bf16.msra.mxu0 %v334
  %452 = vmatpush.bf16.msra.mxu0 %v326
  %453 = vmatpush.bf16.msra.mxu0 %v318
  %454 = vmatmul.bf16.gmra.mxu0 %v43
  %v455 = vpop.f32.mrf.mxu0
  %v456 = vadd.f32 %v110, %v455
  %v457 = vpop.f32.mrf.mxu0
  %458 = vdwg.mxu0
  %459 = vmatpush.bf16.msra.mxu0 %v375
  %460 = vmatpush.bf16.msra.mxu0 %v367
  %461 = vmatpush.bf16.msra.mxu0 %v359
  %462 = vmatpush.bf16.msra.mxu0 %v351
  %463 = vmatpush.bf16.msra.mxu0 %v343
  %464 = vmatpush.bf16.msra.mxu0 %v335
  %465 = vmatpush.bf16.msra.mxu0 %v327
  %466 = vmatpush.bf16.msra.mxu0 %v319
  %467 = vmatmul.bf16.gmra.mxu0 %v43
  %v468 = vpop.f32.mrf.mxu0
  %v469 = vadd.f32 %v111, %v468
  %v470 = vpop.f32.mrf.mxu0
  %471 = vdwg.mxu0
  %472 = vmatpush.bf16.msra.mxu0 %v376
  %473 = vmatpush.bf16.msra.mxu0 %v368
  %474 = vmatpush.bf16.msra.mxu0 %v360
  %475 = vmatpush.bf16.msra.mxu0 %v352
  %476 = vmatpush.bf16.msra.mxu0 %v344
  %477 = vmatpush.bf16.msra.mxu0 %v336
  %478 = vmatpush.bf16.msra.mxu0 %v328
  %479 = vmatpush.bf16.msra.mxu0 %v320
  %480 = vmatmul.bf16.gmra.mxu0 %v43
  %v481 = vpop.f32.mrf.mxu0
  %v482 = vadd.f32 %v112, %v481
  %v483 = vpop.f32.mrf.mxu0
  %484 = vdwg.mxu0
  %485 = vmatpush.bf16.msra.mxu0 %v377
  %486 = vmatpush.bf16.msra.mxu0 %v369
  %487 = vmatpush.bf16.msra.mxu0 %v361
  %488 = vmatpush.bf16.msra.mxu0 %v353
  %489 = vmatpush.bf16.msra.mxu0 %v345
  %490 = vmatpush.bf16.msra.mxu0 %v337
  %491 = vmatpush.bf16.msra.mxu0 %v329
  %492 = vmatpush.bf16.msra.mxu0 %v321
  %493 = vmatmul.bf16.gmra.mxu0 %v43
  %v494 = vpop.f32.mrf.mxu0
  %v495 = vadd.f32 %v113, %v494
  %v496 = vpop.f32.mrf.mxu0
  %497 = vdwg.mxu0
  %498 = vmatpush.bf16.msra.mxu0 %v378
  %499 = vmatpush.bf16.msra.mxu0 %v370
  %500 = vmatpush.bf16.msra.mxu0 %v362
  %501 = vmatpush.bf16.msra.mxu0 %v354
  %502 = vmatpush.bf16.msra.mxu0 %v346
  %503 = vmatpush.bf16.msra.mxu0 %v338
  %504 = vmatpush.bf16.msra.mxu0 %v330
  %505 = vmatpush.bf16.msra.mxu0 %v322
  %506 = vmatmul.bf16.gmra.mxu0 %v43
  %v507 = vpop.f32.mrf.mxu0
  %v508 = vadd.f32 %v114, %v507
  %v509 = vpop.f32.mrf.mxu0
  %510 = vdwg.mxu0
  %511 = vmatpush.bf16.msra.mxu0 %v379
  %512 = vmatpush.bf16.msra.mxu0 %v371
  %513 = vmatpush.bf16.msra.mxu0 %v363
  %514 = vmatpush.bf16.msra.mxu0 %v355
  %515 = vmatpush.bf16.msra.mxu0 %v347
  %516 = vmatpush.bf16.msra.mxu0 %v339
  %517 = vmatpush.bf16.msra.mxu0 %v331
  %518 = vmatpush.bf16.msra.mxu0 %v323
  %519 = vmatmul.bf16.gmra.mxu0 %v43
  %v520 = vpop.f32.mrf.mxu0
  %v521 = vadd.f32 %v115, %v520
  %v522 = vpop.f32.mrf.mxu0
  %523 = vdwg.mxu0
  %524 = vmatpush.bf16.msra.mxu0 %v380
  %525 = vmatpush.bf16.msra.mxu0 %v372
  %526 = vmatpush.bf16.msra.mxu0 %v364
  %527 = vmatpush.bf16.msra.mxu0 %v356
  %528 = vmatpush.bf16.msra.mxu0 %v348
  %529 = vmatpush.bf16.msra.mxu0 %v340
  %530 = vmatpush.bf16.msra.mxu0 %v332
  %531 = vmatpush.bf16.msra.mxu0 %v324
  %532 = vmatmul.bf16.gmra.mxu0 %v43
  %v533 = vpop.f32.mrf.mxu0
  %v534 = vadd.f32 %v116, %v533
  %v535 = vpop.f32.mrf.mxu0
  %536 = vdwg.mxu0
  %537 = vmatpush.bf16.msra.mxu0 %v381
  %538 = vmatpush.bf16.msra.mxu0 %v373
  %539 = vmatpush.bf16.msra.mxu0 %v365
  %540 = vmatpush.bf16.msra.mxu0 %v357
  %541 = vmatpush.bf16.msra.mxu0 %v349
  %542 = vmatpush.bf16.msra.mxu0 %v341
  %543 = vmatpush.bf16.msra.mxu0 %v333
  %544 = vmatpush.bf16.msra.mxu0 %v325
  %545 = vmatmul.bf16.gmra.mxu0 %v43
  %v546 = vpop.f32.mrf.mxu0
  %v547 = vadd.f32 %v117, %v546
  %v548 = vpop.f32.mrf.mxu0
  %549 = vdwg.mxu0
  %v550 = vmax.f32 %v456, 0.0
  %v551 = vmax.f32 %v469, 0.0
  %v552 = vmax.f32 %v482, 0.0
  %v553 = vmax.f32 %v495, 0.0
  %v554 = vmax.f32 %v508, 0.0
  %v555 = vmax.f32 %v521, 0.0
  %v556 = vmax.f32 %v534, 0.0
  %v557 = vmax.f32 %v547, 0.0
  %v558 = vpack.c.bf16 %v550, %v550
  %v559 = vpack.c.bf16 %v551, %v551
  %v560 = vpack.c.bf16 %v552, %v552
  %v561 = vpack.c.bf16 %v553, %v553
  %v562 = vpack.c.bf16 %v554, %v554
  %v563 = vpack.c.bf16 %v555, %v555
  %v564 = vpack.c.bf16 %v556, %v556
  %v565 = vpack.c.bf16 %v557, %v557
  %v566 = vld [vmem:[%s3] sm:$0xff]
  %v567 = vld [vmem:[%s3 + $0x8] sm:$0xff]
  %v568 = vld [vmem:[%s3 + $0x10] sm:$0xff]
  %v569 = vld [vmem:[%s3 + $0x18] sm:$0xff]
  %v570 = vld [vmem:[%s3 + $0x20] sm:$0xff]
  %v571 = vld [vmem:[%s3 + $0x28] sm:$0xff]
  %v572 = vld [vmem:[%s3 + $0x30] sm:$0xff]
  %v573 = vld [vmem:[%s3 + $0x38] sm:$0xff]
  %v574 = vld [vmem:[%s3 + $0x40] sm:$0xff]
  %v575 = vld [vmem:[%s3 + $0x48] sm:$0xff]
  %v576 = vld [vmem:[%s3 + $0x50] sm:$0xff]
  %v577 = vld [vmem:[%s3 + $0x58] sm:$0xff]
  %v578 = vld [vmem:[%s3 + $0x60] sm:$0xff]
  %v579 = vld [vmem:[%s3 + $0x68] sm:$0xff]
  %v580 = vld [vmem:[%s3 + $0x70] sm:$0xff]
  %v581 = vld [vmem:[%s3 + $0x78] sm:$0xff]
  %v582 = vld [vmem:[%s3 + $0x80] sm:$0xff]
  %v583 = vld [vmem:[%s3 + $0x88] sm:$0xff]
  %v584 = vld [vmem:[%s3 + $0x90] sm:$0xff]
  %v585 = vld [vmem:[%s3 + $0x98] sm:$0xff]
  %v586 = vld [vmem:[%s3 + $0xa0] sm:$0xff]
  %v587 = vld [vmem:[%s3 + $0xa8] sm:$0xff]
  %v588 = vld [vmem:[%s3 + $0xb0] sm:$0xff]
  %v589 = vld [vmem:[%s3 + $0xb8] sm:$0xff]
  %v590 = vld [vmem:[%s3 + $0xc0] sm:$0xff]
  %v591 = vld [vmem:[%s3 + $0xc8] sm:$0xff]
  %v592 = vld [vmem:[%s3 + $0xd0] sm:$0xff]
  %v593 = vld [vmem:[%s3 + $0xd8] sm:$0xff]
  %v594 = vld [vmem:[%s3 + $0xe0] sm:$0xff]
  %v595 = vld [vmem:[%s3 + $0xe8] sm:$0xff]
  %v596 = vld [vmem:[%s3 + $0xf0] sm:$0xff]
  %v597 = vld [vmem:[%s3 + $0xf8] sm:$0xff]
  %v598 = vld [vmem:[%s3 + $0x100] sm:$0xff]
  %v599 = vld [vmem:[%s3 + $0x108] sm:$0xff]
  %v600 = vld [vmem:[%s3 + $0x110] sm:$0xff]
  %v601 = vld [vmem:[%s3 + $0x118] sm:$0xff]
  %v602 = vld [vmem:[%s3 + $0x120] sm:$0xff]
  %v603 = vld [vmem:[%s3 + $0x128] sm:$0xff]
  %v604 = vld [vmem:[%s3 + $0x130] sm:$0xff]
  %v605 = vld [vmem:[%s3 + $0x138] sm:$0xff]
  %v606 = vld [vmem:[%s3 + $0x140] sm:$0xff]
  %v607 = vld [vmem:[%s3 + $0x148] sm:$0xff]
  %v608 = vld [vmem:[%s3 + $0x150] sm:$0xff]
  %v609 = vld [vmem:[%s3 + $0x158] sm:$0xff]
  %v610 = vld [vmem:[%s3 + $0x160] sm:$0xff]
  %v611 = vld [vmem:[%s3 + $0x168] sm:$0xff]
  %v612 = vld [vmem:[%s3 + $0x170] sm:$0xff]
  %v613 = vld [vmem:[%s3 + $0x178] sm:$0xff]
  %v614 = vld [vmem:[%s3 + $0x180] sm:$0xff]
  %v615 = vld [vmem:[%s3 + $0x188] sm:$0xff]
  %v616 = vld [vmem:[%s3 + $0x190] sm:$0xff]
  %v617 = vld [vmem:[%s3 + $0x198] sm:$0xff]
  %v618 = vld [vmem:[%s3 + $0x1a0] sm:$0xff]
  %v619 = vld [vmem:[%s3 + $0x1a8] sm:$0xff]
  %v620 = vld [vmem:[%s3 + $0x1b0] sm:$0xff]
  %v621 = vld [vmem:[%s3 + $0x1b8] sm:$0xff]
  %v622 = vld [vmem:[%s3 + $0x1c0] sm:$0xff]
  %v623 = vld [vmem:[%s3 + $0x1c8] sm:$0xff]
  %v624 = vld [vmem:[%s3 + $0x1d0] sm:$0xff]
  %v625 = vld [vmem:[%s3 + $0x1d8] sm:$0xff]
  %v626 = vld [vmem:[%s3 + $0x1e0] sm:$0xff]
  %v627 = vld [vmem:[%s3 + $0x1e8] sm:$0xff]
  %v628 = vld [vmem:[%s3 + $0x1f0] sm:$0xff]
  %v629 = vld [vmem:[%s3 + $0x1f8] sm:$0xff]
  %v630 = vld [vmem:[%s3 + $0x200] sm:$0xff]
  %v631 = vld [vmem:[%s3 + $0x208] sm:$0xff]
  %v632 = vld [vmem:[%s3 + $0x210] sm:$0xff]
  %v633 = vld [vmem:[%s3 + $0x218] sm:$0xff]
  %v634 = vld [vmem:[%s3 + $0x220] sm:$0xff]
  %v635 = vld [vmem:[%s3 + $0x228] sm:$0xff]
  %v636 = vld [vmem:[%s3 + $0x230] sm:$0xff]
  %v637 = vld [vmem:[%s3 + $0x238] sm:$0xff]
  %v638 = vld [vmem:[%s3 + $0x240] sm:$0xff]
  %v639 = vld [vmem:[%s3 + $0x248] sm:$0xff]
  %v640 = vld [vmem:[%s3 + $0x250] sm:$0xff]
  %v641 = vld [vmem:[%s3 + $0x258] sm:$0xff]
  %v642 = vld [vmem:[%s3 + $0x260] sm:$0xff]
  %v643 = vld [vmem:[%s3 + $0x268] sm:$0xff]
  %v644 = vld [vmem:[%s3 + $0x270] sm:$0xff]
  %v645 = vld [vmem:[%s3 + $0x278] sm:$0xff]
  %v646 = vld [vmem:[%s3 + $0x280] sm:$0xff]
  %v647 = vld [vmem:[%s3 + $0x288] sm:$0xff]
  %v648 = vld [vmem:[%s3 + $0x290] sm:$0xff]
  %v649 = vld [vmem:[%s3 + $0x298] sm:$0xff]
  %v650 = vld [vmem:[%s3 + $0x2a0] sm:$0xff]
  %v651 = vld [vmem:[%s3 + $0x2a8] sm:$0xff]
  %v652 = vld [vmem:[%s3 + $0x2b0] sm:$0xff]
  %v653 = vld [vmem:[%s3 + $0x2b8] sm:$0xff]
  %v654 = vld [vmem:[%s3 + $0x2c0] sm:$0xff]
  %v655 = vld [vmem:[%s3 + $0x2c8] sm:$0xff]
  %v656 = vld [vmem:[%s3 + $0x2d0] sm:$0xff]
  %v657 = vld [vmem:[%s3 + $0x2d8] sm:$0xff]
  %v658 = vld [vmem:[%s3 + $0x2e0] sm:$0xff]
  %v659 = vld [vmem:[%s3 + $0x2e8] sm:$0xff]
  %v660 = vld [vmem:[%s3 + $0x2f0] sm:$0xff]
  %v661 = vld [vmem:[%s3 + $0x2f8] sm:$0xff]
  %v662 = vld [vmem:[%s3 + $0x300] sm:$0xff]
  %v663 = vld [vmem:[%s3 + $0x308] sm:$0xff]
  %v664 = vld [vmem:[%s3 + $0x310] sm:$0xff]
  %v665 = vld [vmem:[%s3 + $0x318] sm:$0xff]
  %v666 = vld [vmem:[%s3 + $0x320] sm:$0xff]
  %v667 = vld [vmem:[%s3 + $0x328] sm:$0xff]
  %v668 = vld [vmem:[%s3 + $0x330] sm:$0xff]
  %v669 = vld [vmem:[%s3 + $0x338] sm:$0xff]
  %v670 = vld [vmem:[%s3 + $0x340] sm:$0xff]
  %v671 = vld [vmem:[%s3 + $0x348] sm:$0xff]
  %v672 = vld [vmem:[%s3 + $0x350] sm:$0xff]
  %v673 = vld [vmem:[%s3 + $0x358] sm:$0xff]
  %v674 = vld [vmem:[%s3 + $0x360] sm:$0xff]
  %v675 = vld [vmem:[%s3 + $0x368] sm:$0xff]
  %v676 = vld [vmem:[%s3 + $0x370] sm:$0xff]
  %v677 = vld [vmem:[%s3 + $0x378] sm:$0xff]
  %v678 = vld [vmem:[%s3 + $0x380] sm:$0xff]
  %v679 = vld [vmem:[%s3 + $0x388] sm:$0xff]
  %v680 = vld [vmem:[%s3 + $0x390] sm:$0xff]
  %v681 = vld [vmem:[%s3 + $0x398] sm:$0xff]
  %v682 = vld [vmem:[%s3 + $0x3a0] sm:$0xff]
  %v683 = vld [vmem:[%s3 + $0x3a8] sm:$0xff]
  %v684 = vld [vmem:[%s3 + $0x3b0] sm:$0xff]
  %v685 = vld [vmem:[%s3 + $0x3b8] sm:$0xff]
  %v686 = vld [vmem:[%s3 + $0x3c0] sm:$0xff]
  %v687 = vld [vmem:[%s3 + $0x3c8] sm:$0xff]
  %v688 = vld [vmem:[%s3 + $0x3d0] sm:$0xff]
  %v689 = vld [vmem:[%s3 + $0x3d8] sm:$0xff]
  %v690 = vld [vmem:[%s3 + $0x3e0] sm:$0xff]
  %v691 = vld [vmem:[%s3 + $0x3e8] sm:$0xff]
  %v692 = vld [vmem:[%s3 + $0x3f0] sm:$0xff]
  %v693 = vld [vmem:[%s3 + $0x3f8] sm:$0xff]
  %v694 = vld [vmem:[%s3 + $0x400] sm:$0xff]
  %v695 = vld [vmem:[%s3 + $0x408] sm:$0xff]
  %v696 = vld [vmem:[%s3 + $0x410] sm:$0xff]
  %v697 = vld [vmem:[%s3 + $0x418] sm:$0xff]
  %v698 = vld [vmem:[%s3 + $0x420] sm:$0xff]
  %v699 = vld [vmem:[%s3 + $0x428] sm:$0xff]
  %v700 = vld [vmem:[%s3 + $0x430] sm:$0xff]
  %v701 = vld [vmem:[%s3 + $0x438] sm:$0xff]
  %v702 = vld [vmem:[%s3 + $0x440] sm:$0xff]
  %v703 = vld [vmem:[%s3 + $0x448] sm:$0xff]
  %v704 = vld [vmem:[%s3 + $0x450] sm:$0xff]
  %v705 = vld [vmem:[%s3 + $0x458] sm:$0xff]
  %v706 = vld [vmem:[%s3 + $0x460] sm:$0xff]
  %v707 = vld [vmem:[%s3 + $0x468] sm:$0xff]
  %v708 = vld [vmem:[%s3 + $0x470] sm:$0xff]
  %v709 = vld [vmem:[%s3 + $0x478] sm:$0xff]
  %v710 = vld [vmem:[%s3 + $0x480] sm:$0xff]
  %v711 = vld [vmem:[%s3 + $0x488] sm:$0xff]
  %v712 = vld [vmem:[%s3 + $0x490] sm:$0xff]
  %v713 = vld [vmem:[%s3 + $0x498] sm:$0xff]
  %v714 = vld [vmem:[%s3 + $0x4a0] sm:$0xff]
  %v715 = vld [vmem:[%s3 + $0x4a8] sm:$0xff]
  %v716 = vld [vmem:[%s3 + $0x4b0] sm:$0xff]
  %v717 = vld [vmem:[%s3 + $0x4b8] sm:$0xff]
  %v718 = vld [vmem:[%s3 + $0x4c0] sm:$0xff]
  %v719 = vld [vmem:[%s3 + $0x4c8] sm:$0xff]
  %v720 = vld [vmem:[%s3 + $0x4d0] sm:$0xff]
  %v721 = vld [vmem:[%s3 + $0x4d8] sm:$0xff]
  %v722 = vld [vmem:[%s3 + $0x4e0] sm:$0xff]
  %v723 = vld [vmem:[%s3 + $0x4e8] sm:$0xff]
  %v724 = vld [vmem:[%s3 + $0x4f0] sm:$0xff]
  %v725 = vld [vmem:[%s3 + $0x4f8] sm:$0xff]
  %v726 = vld [vmem:[%s3 + $0x500] sm:$0xff]
  %v727 = vld [vmem:[%s3 + $0x508] sm:$0xff]
  %v728 = vld [vmem:[%s3 + $0x510] sm:$0xff]
  %v729 = vld [vmem:[%s3 + $0x518] sm:$0xff]
  %v730 = vld [vmem:[%s3 + $0x520] sm:$0xff]
  %v731 = vld [vmem:[%s3 + $0x528] sm:$0xff]
  %v732 = vld [vmem:[%s3 + $0x530] sm:$0xff]
  %v733 = vld [vmem:[%s3 + $0x538] sm:$0xff]
  %v734 = vld [vmem:[%s3 + $0x540] sm:$0xff]
  %v735 = vld [vmem:[%s3 + $0x548] sm:$0xff]
  %v736 = vld [vmem:[%s3 + $0x550] sm:$0xff]
  %v737 = vld [vmem:[%s3 + $0x558] sm:$0xff]
  %v738 = vld [vmem:[%s3 + $0x560] sm:$0xff]
  %v739 = vld [vmem:[%s3 + $0x568] sm:$0xff]
  %v740 = vld [vmem:[%s3 + $0x570] sm:$0xff]
  %v741 = vld [vmem:[%s3 + $0x578] sm:$0xff]
  %v742 = vld [vmem:[%s3 + $0x580] sm:$0xff]
  %v743 = vld [vmem:[%s3 + $0x588] sm:$0xff]
  %v744 = vld [vmem:[%s3 + $0x590] sm:$0xff]
  %v745 = vld [vmem:[%s3 + $0x598] sm:$0xff]
  %v746 = vld [vmem:[%s3 + $0x5a0] sm:$0xff]
  %v747 = vld [vmem:[%s3 + $0x5a8] sm:$0xff]
  %v748 = vld [vmem:[%s3 + $0x5b0] sm:$0xff]
  %v749 = vld [vmem:[%s3 + $0x5b8] sm:$0xff]
  %v750 = vld [vmem:[%s3 + $0x5c0] sm:$0xff]
  %v751 = vld [vmem:[%s3 + $0x5c8] sm:$0xff]
  %v752 = vld [vmem:[%s3 + $0x5d0] sm:$0xff]
  %v753 = vld [vmem:[%s3 + $0x5d8] sm:$0xff]
  %v754 = vld [vmem:[%s3 + $0x5e0] sm:$0xff]
  %v755 = vld [vmem:[%s3 + $0x5e8] sm:$0xff]
  %v756 = vld [vmem:[%s3 + $0x5f0] sm:$0xff]
  %v757 = vld [vmem:[%s3 + $0x5f8] sm:$0xff]
  %v758 = vld [vmem:[%s3 + $0x600] sm:$0xff]
  %v759 = vld [vmem:[%s3 + $0x608] sm:$0xff]
  %v760 = vld [vmem:[%s3 + $0x610] sm:$0xff]
  %v761 = vld [vmem:[%s3 + $0x618] sm:$0xff]
  %v762 = vld [vmem:[%s3 + $0x620] sm:$0xff]
  %v763 = vld [vmem:[%s3 + $0x628] sm:$0xff]
  %v764 = vld [vmem:[%s3 + $0x630] sm:$0xff]
  %v765 = vld [vmem:[%s3 + $0x638] sm:$0xff]
  %v766 = vld [vmem:[%s3 + $0x640] sm:$0xff]
  %v767 = vld [vmem:[%s3 + $0x648] sm:$0xff]
  %v768 = vld [vmem:[%s3 + $0x650] sm:$0xff]
  %v769 = vld [vmem:[%s3 + $0x658] sm:$0xff]
  %v770 = vld [vmem:[%s3 + $0x660] sm:$0xff]
  %v771 = vld [vmem:[%s3 + $0x668] sm:$0xff]
  %v772 = vld [vmem:[%s3 + $0x670] sm:$0xff]
  %v773 = vld [vmem:[%s3 + $0x678] sm:$0xff]
  %v774 = vld [vmem:[%s3 + $0x680] sm:$0xff]
  %v775 = vld [vmem:[%s3 + $0x688] sm:$0xff]
  %v776 = vld [vmem:[%s3 + $0x690] sm:$0xff]
  %v777 = vld [vmem:[%s3 + $0x698] sm:$0xff]
  %v778 = vld [vmem:[%s3 + $0x6a0] sm:$0xff]
  %v779 = vld [vmem:[%s3 + $0x6a8] sm:$0xff]
  %v780 = vld [vmem:[%s3 + $0x6b0] sm:$0xff]
  %v781 = vld [vmem:[%s3 + $0x6b8] sm:$0xff]
  %v782 = vld [vmem:[%s3 + $0x6c0] sm:$0xff]
  %v783 = vld [vmem:[%s3 + $0x6c8] sm:$0xff]
  %v784 = vld [vmem:[%s3 + $0x6d0] sm:$0xff]
  %v785 = vld [vmem:[%s3 + $0x6d8] sm:$0xff]
  %v786 = vld [vmem:[%s3 + $0x6e0] sm:$0xff]
  %v787 = vld [vmem:[%s3 + $0x6e8] sm:$0xff]
  %v788 = vld [vmem:[%s3 + $0x6f0] sm:$0xff]
  %v789 = vld [vmem:[%s3 + $0x6f8] sm:$0xff]
  %v790 = vld [vmem:[%s3 + $0x700] sm:$0xff]
  %v791 = vld [vmem:[%s3 + $0x708] sm:$0xff]
  %v792 = vld [vmem:[%s3 + $0x710] sm:$0xff]
  %v793 = vld [vmem:[%s3 + $0x718] sm:$0xff]
  %v794 = vld [vmem:[%s3 + $0x720] sm:$0xff]
  %v795 = vld [vmem:[%s3 + $0x728] sm:$0xff]
  %v796 = vld [vmem:[%s3 + $0x730] sm:$0xff]
  %v797 = vld [vmem:[%s3 + $0x738] sm:$0xff]
  %v798 = vld [vmem:[%s3 + $0x740] sm:$0xff]
  %v799 = vld [vmem:[%s3 + $0x748] sm:$0xff]
  %v800 = vld [vmem:[%s3 + $0x750] sm:$0xff]
  %v801 = vld [vmem:[%s3 + $0x758] sm:$0xff]
  %v802 = vld [vmem:[%s3 + $0x760] sm:$0xff]
  %v803 = vld [vmem:[%s3 + $0x768] sm:$0xff]
  %v804 = vld [vmem:[%s3 + $0x770] sm:$0xff]
  %v805 = vld [vmem:[%s3 + $0x778] sm:$0xff]
  %v806 = vld [vmem:[%s3 + $0x780] sm:$0xff]
  %v807 = vld [vmem:[%s3 + $0x788] sm:$0xff]
  %v808 = vld [vmem:[%s3 + $0x790] sm:$0xff]
  %v809 = vld [vmem:[%s3 + $0x798] sm:$0xff]
  %v810 = vld [vmem:[%s3 + $0x7a0] sm:$0xff]
  %v811 = vld [vmem:[%s3 + $0x7a8] sm:$0xff]
  %v812 = vld [vmem:[%s3 + $0x7b0] sm:$0xff]
  %v813 = vld [vmem:[%s3 + $0x7b8] sm:$0xff]
  %v814 = vld [vmem:[%s3 + $0x7c0] sm:$0xff]
  %v815 = vld [vmem:[%s3 + $0x7c8] sm:$0xff]
  %v816 = vld [vmem:[%s3 + $0x7d0] sm:$0xff]
  %v817 = vld [vmem:[%s3 + $0x7d8] sm:$0xff]
  %v818 = vld [vmem:[%s3 + $0x7e0] sm:$0xff]
  %v819 = vld [vmem:[%s3 + $0x7e8] sm:$0xff]
  %v820 = vld [vmem:[%s3 + $0x7f0] sm:$0xff]
  %v821 = vld [vmem:[%s3 + $0x7f8] sm:$0xff]
  %v822 = vld [vmem:[%s11 + $0x8] sm:$0xf]
  %v824 = vperm.slane %v822, 0
  %v825 = vperm.slane %v822, 1
  %v826 = vperm.slane %v822, 2
  %v827 = vperm.slane %v822, 3
  %v1088 = vunpack.c.l.b16 %v566
  %v1089 = vunpack.c.h.b16 %v566
  %v1090 = vunpack.c.l.b16 %v567
  %v1091 = vunpack.c.h.b16 %v567
  %v1092 = vunpack.c.l.b16 %v568
  %v1093 = vunpack.c.h.b16 %v568
  %v1094 = vunpack.c.l.b16 %v569
  %v1095 = vunpack.c.h.b16 %v569
  %v1096 = vunpack.c.l.b16 %v570
  %v1097 = vunpack.c.h.b16 %v570
  %v1098 = vunpack.c.l.b16 %v571
  %v1099 = vunpack.c.h.b16 %v571
  %v1100 = vunpack.c.l.b16 %v572
  %v1101 = vunpack.c.h.b16 %v572
  %v1102 = vunpack.c.l.b16 %v573
  %v1103 = vunpack.c.h.b16 %v573
  %v1104 = vunpack.c.l.b16 %v574
  %v1105 = vunpack.c.h.b16 %v574
  %v1106 = vunpack.c.l.b16 %v575
  %v1107 = vunpack.c.h.b16 %v575
  %v1108 = vunpack.c.l.b16 %v576
  %v1109 = vunpack.c.h.b16 %v576
  %v1110 = vunpack.c.l.b16 %v577
  %v1111 = vunpack.c.h.b16 %v577
  %v1112 = vunpack.c.l.b16 %v578
  %v1113 = vunpack.c.h.b16 %v578
  %v1114 = vunpack.c.l.b16 %v579
  %v1115 = vunpack.c.h.b16 %v579
  %v1116 = vunpack.c.l.b16 %v580
  %v1117 = vunpack.c.h.b16 %v580
  %v1118 = vunpack.c.l.b16 %v581
  %v1119 = vunpack.c.h.b16 %v581
  %v1120 = vunpack.c.l.b16 %v582
  %v1121 = vunpack.c.h.b16 %v582
  %v1122 = vunpack.c.l.b16 %v583
  %v1123 = vunpack.c.h.b16 %v583
  %v1124 = vunpack.c.l.b16 %v584
  %v1125 = vunpack.c.h.b16 %v584
  %v1126 = vunpack.c.l.b16 %v585
  %v1127 = vunpack.c.h.b16 %v585
  %v1128 = vunpack.c.l.b16 %v586
  %v1129 = vunpack.c.h.b16 %v586
  %v1130 = vunpack.c.l.b16 %v587
  %v1131 = vunpack.c.h.b16 %v587
  %v1132 = vunpack.c.l.b16 %v588
  %v1133 = vunpack.c.h.b16 %v588
  %v1134 = vunpack.c.l.b16 %v589
  %v1135 = vunpack.c.h.b16 %v589
  %v1136 = vunpack.c.l.b16 %v590
  %v1137 = vunpack.c.h.b16 %v590
  %v1138 = vunpack.c.l.b16 %v591
  %v1139 = vunpack.c.h.b16 %v591
  %v1140 = vunpack.c.l.b16 %v592
  %v1141 = vunpack.c.h.b16 %v592
  %v1142 = vunpack.c.l.b16 %v593
  %v1143 = vunpack.c.h.b16 %v593
  %v1144 = vunpack.c.l.b16 %v594
  %v1145 = vunpack.c.h.b16 %v594
  %v1146 = vunpack.c.l.b16 %v595
  %v1147 = vunpack.c.h.b16 %v595
  %v1148 = vunpack.c.l.b16 %v596
  %v1149 = vunpack.c.h.b16 %v596
  %v1150 = vunpack.c.l.b16 %v597
  %v1151 = vunpack.c.h.b16 %v597
  %v1152 = vunpack.c.l.b16 %v598
  %v1153 = vunpack.c.h.b16 %v598
  %v1154 = vunpack.c.l.b16 %v599
  %v1155 = vunpack.c.h.b16 %v599
  %v1156 = vunpack.c.l.b16 %v600
  %v1157 = vunpack.c.h.b16 %v600
  %v1158 = vunpack.c.l.b16 %v601
  %v1159 = vunpack.c.h.b16 %v601
  %v1160 = vunpack.c.l.b16 %v602
  %v1161 = vunpack.c.h.b16 %v602
  %v1162 = vunpack.c.l.b16 %v603
  %v1163 = vunpack.c.h.b16 %v603
  %v1164 = vunpack.c.l.b16 %v604
  %v1165 = vunpack.c.h.b16 %v604
  %v1166 = vunpack.c.l.b16 %v605
  %v1167 = vunpack.c.h.b16 %v605
  %v1168 = vunpack.c.l.b16 %v606
  %v1169 = vunpack.c.h.b16 %v606
  %v1170 = vunpack.c.l.b16 %v607
  %v1171 = vunpack.c.h.b16 %v607
  %v1172 = vunpack.c.l.b16 %v608
  %v1173 = vunpack.c.h.b16 %v608
  %v1174 = vunpack.c.l.b16 %v609
  %v1175 = vunpack.c.h.b16 %v609
  %v1176 = vunpack.c.l.b16 %v610
  %v1177 = vunpack.c.h.b16 %v610
  %v1178 = vunpack.c.l.b16 %v611
  %v1179 = vunpack.c.h.b16 %v611
  %v1180 = vunpack.c.l.b16 %v612
  %v1181 = vunpack.c.h.b16 %v612
  %v1182 = vunpack.c.l.b16 %v613
  %v1183 = vunpack.c.h.b16 %v613
  %v1184 = vunpack.c.l.b16 %v614
  %v1185 = vunpack.c.h.b16 %v614
  %v1186 = vunpack.c.l.b16 %v615
  %v1187 = vunpack.c.h.b16 %v615
  %v1188 = vunpack.c.l.b16 %v616
  %v1189 = vunpack.c.h.b16 %v616
  %v1190 = vunpack.c.l.b16 %v617
  %v1191 = vunpack.c.h.b16 %v617
  %v1192 = vunpack.c.l.b16 %v618
  %v1193 = vunpack.c.h.b16 %v618
  %v1194 = vunpack.c.l.b16 %v619
  %v1195 = vunpack.c.h.b16 %v619
  %v1196 = vunpack.c.l.b16 %v620
  %v1197 = vunpack.c.h.b16 %v620
  %v1198 = vunpack.c.l.b16 %v621
  %v1199 = vunpack.c.h.b16 %v621
  %v1200 = vunpack.c.l.b16 %v622
  %v1201 = vunpack.c.h.b16 %v622
  %v1202 = vunpack.c.l.b16 %v623
  %v1203 = vunpack.c.h.b16 %v623
  %v1204 = vunpack.c.l.b16 %v624
  %v1205 = vunpack.c.h.b16 %v624
  %v1206 = vunpack.c.l.b16 %v625
  %v1207 = vunpack.c.h.b16 %v625
  %v1208 = vunpack.c.l.b16 %v626
  %v1209 = vunpack.c.h.b16 %v626
  %v1210 = vunpack.c.l.b16 %v627
  %v1211 = vunpack.c.h.b16 %v627
  %v1212 = vunpack.c.l.b16 %v628
  %v1213 = vunpack.c.h.b16 %v628
  %v1214 = vunpack.c.l.b16 %v629
  %v1215 = vunpack.c.h.b16 %v629
  %v1216 = vunpack.c.l.b16 %v630
  %v1217 = vunpack.c.h.b16 %v630
  %v1218 = vunpack.c.l.b16 %v631
  %v1219 = vunpack.c.h.b16 %v631
  %v1220 = vunpack.c.l.b16 %v632
  %v1221 = vunpack.c.h.b16 %v632
  %v1222 = vunpack.c.l.b16 %v633
  %v1223 = vunpack.c.h.b16 %v633
  %v1224 = vunpack.c.l.b16 %v634
  %v1225 = vunpack.c.h.b16 %v634
  %v1226 = vunpack.c.l.b16 %v635
  %v1227 = vunpack.c.h.b16 %v635
  %v1228 = vunpack.c.l.b16 %v636
  %v1229 = vunpack.c.h.b16 %v636
  %v1230 = vunpack.c.l.b16 %v637
  %v1231 = vunpack.c.h.b16 %v637
  %v1232 = vunpack.c.l.b16 %v638
  %v1233 = vunpack.c.h.b16 %v638
  %v1234 = vunpack.c.l.b16 %v639
  %v1235 = vunpack.c.h.b16 %v639
  %v1236 = vunpack.c.l.b16 %v640
  %v1237 = vunpack.c.h.b16 %v640
  %v1238 = vunpack.c.l.b16 %v641
  %v1239 = vunpack.c.h.b16 %v641
  %v1240 = vunpack.c.l.b16 %v642
  %v1241 = vunpack.c.h.b16 %v642
  %v1242 = vunpack.c.l.b16 %v643
  %v1243 = vunpack.c.h.b16 %v643
  %v1244 = vunpack.c.l.b16 %v644
  %v1245 = vunpack.c.h.b16 %v644
  %v1246 = vunpack.c.l.b16 %v645
  %v1247 = vunpack.c.h.b16 %v645
  %v1248 = vunpack.c.l.b16 %v646
  %v1249 = vunpack.c.h.b16 %v646
  %v1250 = vunpack.c.l.b16 %v647
  %v1251 = vunpack.c.h.b16 %v647
  %v1252 = vunpack.c.l.b16 %v648
  %v1253 = vunpack.c.h.b16 %v648
  %v1254 = vunpack.c.l.b16 %v649
  %v1255 = vunpack.c.h.b16 %v649
  %v1256 = vunpack.c.l.b16 %v650
  %v1257 = vunpack.c.h.b16 %v650
  %v1258 = vunpack.c.l.b16 %v651
  %v1259 = vunpack.c.h.b16 %v651
  %v1260 = vunpack.c.l.b16 %v652
  %v1261 = vunpack.c.h.b16 %v652
  %v1262 = vunpack.c.l.b16 %v653
  %v1263 = vunpack.c.h.b16 %v653
  %v1264 = vunpack.c.l.b16 %v654
  %v1265 = vunpack.c.h.b16 %v654
  %v1266 = vunpack.c.l.b16 %v655
  %v1267 = vunpack.c.h.b16 %v655
  %v1268 = vunpack.c.l.b16 %v656
  %v1269 = vunpack.c.h.b16 %v656
  %v1270 = vunpack.c.l.b16 %v657
  %v1271 = vunpack.c.h.b16 %v657
  %v1272 = vunpack.c.l.b16 %v658
  %v1273 = vunpack.c.h.b16 %v658
  %v1274 = vunpack.c.l.b16 %v659
  %v1275 = vunpack.c.h.b16 %v659
  %v1276 = vunpack.c.l.b16 %v660
  %v1277 = vunpack.c.h.b16 %v660
  %v1278 = vunpack.c.l.b16 %v661
  %v1279 = vunpack.c.h.b16 %v661
  %v1280 = vunpack.c.l.b16 %v662
  %v1281 = vunpack.c.h.b16 %v662
  %v1282 = vunpack.c.l.b16 %v663
  %v1283 = vunpack.c.h.b16 %v663
  %v1284 = vunpack.c.l.b16 %v664
  %v1285 = vunpack.c.h.b16 %v664
  %v1286 = vunpack.c.l.b16 %v665
  %v1287 = vunpack.c.h.b16 %v665
  %v1288 = vunpack.c.l.b16 %v666
  %v1289 = vunpack.c.h.b16 %v666
  %v1290 = vunpack.c.l.b16 %v667
  %v1291 = vunpack.c.h.b16 %v667
  %v1292 = vunpack.c.l.b16 %v668
  %v1293 = vunpack.c.h.b16 %v668
  %v1294 = vunpack.c.l.b16 %v669
  %v1295 = vunpack.c.h.b16 %v669
  %v1296 = vunpack.c.l.b16 %v670
  %v1297 = vunpack.c.h.b16 %v670
  %v1298 = vunpack.c.l.b16 %v671
  %v1299 = vunpack.c.h.b16 %v671
  %v1300 = vunpack.c.l.b16 %v672
  %v1301 = vunpack.c.h.b16 %v672
  %v1302 = vunpack.c.l.b16 %v673
  %v1303 = vunpack.c.h.b16 %v673
  %v1304 = vunpack.c.l.b16 %v674
  %v1305 = vunpack.c.h.b16 %v674
  %v1306 = vunpack.c.l.b16 %v675
  %v1307 = vunpack.c.h.b16 %v675
  %v1308 = vunpack.c.l.b16 %v676
  %v1309 = vunpack.c.h.b16 %v676
  %v1310 = vunpack.c.l.b16 %v677
  %v1311 = vunpack.c.h.b16 %v677
  %v1312 = vunpack.c.l.b16 %v678
  %v1313 = vunpack.c.h.b16 %v678
  %v1314 = vunpack.c.l.b16 %v679
  %v1315 = vunpack.c.h.b16 %v679
  %v1316 = vunpack.c.l.b16 %v680
  %v1317 = vunpack.c.h.b16 %v680
  %v1318 = vunpack.c.l.b16 %v681
  %v1319 = vunpack.c.h.b16 %v681
  %v1320 = vunpack.c.l.b16 %v682
  %v1321 = vunpack.c.h.b16 %v682
  %v1322 = vunpack.c.l.b16 %v683
  %v1323 = vunpack.c.h.b16 %v683
  %v1324 = vunpack.c.l.b16 %v684
  %v1325 = vunpack.c.h.b16 %v684
  %v1326 = vunpack.c.l.b16 %v685
  %v1327 = vunpack.c.h.b16 %v685
  %v1328 = vunpack.c.l.b16 %v686
  %v1329 = vunpack.c.h.b16 %v686
  %v1330 = vunpack.c.l.b16 %v687
  %v1331 = vunpack.c.h.b16 %v687
  %v1332 = vunpack.c.l.b16 %v688
  %v1333 = vunpack.c.h.b16 %v688
  %v1334 = vunpack.c.l.b16 %v689
  %v1335 = vunpack.c.h.b16 %v689
  %v1336 = vunpack.c.l.b16 %v690
  %v1337 = vunpack.c.h.b16 %v690
  %v1338 = vunpack.c.l.b16 %v691
  %v1339 = vunpack.c.h.b16 %v691
  %v1340 = vunpack.c.l.b16 %v692
  %v1341 = vunpack.c.h.b16 %v692
  %v1342 = vunpack.c.l.b16 %v693
  %v1343 = vunpack.c.h.b16 %v693
  %v1344 = vunpack.c.l.b16 %v694
  %v1345 = vunpack.c.h.b16 %v694
  %v1346 = vunpack.c.l.b16 %v695
  %v1347 = vunpack.c.h.b16 %v695
  %v1348 = vunpack.c.l.b16 %v696
  %v1349 = vunpack.c.h.b16 %v696
  %v1350 = vunpack.c.l.b16 %v697
  %v1351 = vunpack.c.h.b16 %v697
  %v1352 = vunpack.c.l.b16 %v698
  %v1353 = vunpack.c.h.b16 %v698
  %v1354 = vunpack.c.l.b16 %v699
  %v1355 = vunpack.c.h.b16 %v699
  %v1356 = vunpack.c.l.b16 %v700
  %v1357 = vunpack.c.h.b16 %v700
  %v1358 = vunpack.c.l.b16 %v701
  %v1359 = vunpack.c.h.b16 %v701
  %v1360 = vunpack.c.l.b16 %v702
  %v1361 = vunpack.c.h.b16 %v702
  %v1362 = vunpack.c.l.b16 %v703
  %v1363 = vunpack.c.h.b16 %v703
  %v1364 = vunpack.c.l.b16 %v704
  %v1365 = vunpack.c.h.b16 %v704
  %v1366 = vunpack.c.l.b16 %v705
  %v1367 = vunpack.c.h.b16 %v705
  %v1368 = vunpack.c.l.b16 %v706
  %v1369 = vunpack.c.h.b16 %v706
  %v1370 = vunpack.c.l.b16 %v707
  %v1371 = vunpack.c.h.b16 %v707
  %v1372 = vunpack.c.l.b16 %v708
  %v1373 = vunpack.c.h.b16 %v708
  %v1374 = vunpack.c.l.b16 %v709
  %v1375 = vunpack.c.h.b16 %v709
  %v1376 = vunpack.c.l.b16 %v710
  %v1377 = vunpack.c.h.b16 %v710
  %v1378 = vunpack.c.l.b16 %v711
  %v1379 = vunpack.c.h.b16 %v711
  %v1380 = vunpack.c.l.b16 %v712
  %v1381 = vunpack.c.h.b16 %v712
  %v1382 = vunpack.c.l.b16 %v713
  %v1383 = vunpack.c.h.b16 %v713
  %v1384 = vunpack.c.l.b16 %v714
  %v1385 = vunpack.c.h.b16 %v714
  %v1386 = vunpack.c.l.b16 %v715
  %v1387 = vunpack.c.h.b16 %v715
  %v1388 = vunpack.c.l.b16 %v716
  %v1389 = vunpack.c.h.b16 %v716
  %v1390 = vunpack.c.l.b16 %v717
  %v1391 = vunpack.c.h.b16 %v717
  %v1392 = vunpack.c.l.b16 %v718
  %v1393 = vunpack.c.h.b16 %v718
  %v1394 = vunpack.c.l.b16 %v719
  %v1395 = vunpack.c.h.b16 %v719
  %v1396 = vunpack.c.l.b16 %v720
  %v1397 = vunpack.c.h.b16 %v720
  %v1398 = vunpack.c.l.b16 %v721
  %v1399 = vunpack.c.h.b16 %v721
  %v1400 = vunpack.c.l.b16 %v722
  %v1401 = vunpack.c.h.b16 %v722
  %v1402 = vunpack.c.l.b16 %v723
  %v1403 = vunpack.c.h.b16 %v723
  %v1404 = vunpack.c.l.b16 %v724
  %v1405 = vunpack.c.h.b16 %v724
  %v1406 = vunpack.c.l.b16 %v725
  %v1407 = vunpack.c.h.b16 %v725
  %v1408 = vunpack.c.l.b16 %v726
  %v1409 = vunpack.c.h.b16 %v726
  %v1410 = vunpack.c.l.b16 %v727
  %v1411 = vunpack.c.h.b16 %v727
  %v1412 = vunpack.c.l.b16 %v728
  %v1413 = vunpack.c.h.b16 %v728
  %v1414 = vunpack.c.l.b16 %v729
  %v1415 = vunpack.c.h.b16 %v729
  %v1416 = vunpack.c.l.b16 %v730
  %v1417 = vunpack.c.h.b16 %v730
  %v1418 = vunpack.c.l.b16 %v731
  %v1419 = vunpack.c.h.b16 %v731
  %v1420 = vunpack.c.l.b16 %v732
  %v1421 = vunpack.c.h.b16 %v732
  %v1422 = vunpack.c.l.b16 %v733
  %v1423 = vunpack.c.h.b16 %v733
  %v1424 = vunpack.c.l.b16 %v734
  %v1425 = vunpack.c.h.b16 %v734
  %v1426 = vunpack.c.l.b16 %v735
  %v1427 = vunpack.c.h.b16 %v735
  %v1428 = vunpack.c.l.b16 %v736
  %v1429 = vunpack.c.h.b16 %v736
  %v1430 = vunpack.c.l.b16 %v737
  %v1431 = vunpack.c.h.b16 %v737
  %v1432 = vunpack.c.l.b16 %v738
  %v1433 = vunpack.c.h.b16 %v738
  %v1434 = vunpack.c.l.b16 %v739
  %v1435 = vunpack.c.h.b16 %v739
  %v1436 = vunpack.c.l.b16 %v740
  %v1437 = vunpack.c.h.b16 %v740
  %v1438 = vunpack.c.l.b16 %v741
  %v1439 = vunpack.c.h.b16 %v741
  %v1440 = vunpack.c.l.b16 %v742
  %v1441 = vunpack.c.h.b16 %v742
  %v1442 = vunpack.c.l.b16 %v743
  %v1443 = vunpack.c.h.b16 %v743
  %v1444 = vunpack.c.l.b16 %v744
  %v1445 = vunpack.c.h.b16 %v744
  %v1446 = vunpack.c.l.b16 %v745
  %v1447 = vunpack.c.h.b16 %v745
  %v1448 = vunpack.c.l.b16 %v746
  %v1449 = vunpack.c.h.b16 %v746
  %v1450 = vunpack.c.l.b16 %v747
  %v1451 = vunpack.c.h.b16 %v747
  %v1452 = vunpack.c.l.b16 %v748
  %v1453 = vunpack.c.h.b16 %v748
  %v1454 = vunpack.c.l.b16 %v749
  %v1455 = vunpack.c.h.b16 %v749
  %v1456 = vunpack.c.l.b16 %v750
  %v1457 = vunpack.c.h.b16 %v750
  %v1458 = vunpack.c.l.b16 %v751
  %v1459 = vunpack.c.h.b16 %v751
  %v1460 = vunpack.c.l.b16 %v752
  %v1461 = vunpack.c.h.b16 %v752
  %v1462 = vunpack.c.l.b16 %v753
  %v1463 = vunpack.c.h.b16 %v753
  %v1464 = vunpack.c.l.b16 %v754
  %v1465 = vunpack.c.h.b16 %v754
  %v1466 = vunpack.c.l.b16 %v755
  %v1467 = vunpack.c.h.b16 %v755
  %v1468 = vunpack.c.l.b16 %v756
  %v1469 = vunpack.c.h.b16 %v756
  %v1470 = vunpack.c.l.b16 %v757
  %v1471 = vunpack.c.h.b16 %v757
  %v1472 = vunpack.c.l.b16 %v758
  %v1473 = vunpack.c.h.b16 %v758
  %v1474 = vunpack.c.l.b16 %v759
  %v1475 = vunpack.c.h.b16 %v759
  %v1476 = vunpack.c.l.b16 %v760
  %v1477 = vunpack.c.h.b16 %v760
  %v1478 = vunpack.c.l.b16 %v761
  %v1479 = vunpack.c.h.b16 %v761
  %v1480 = vunpack.c.l.b16 %v762
  %v1481 = vunpack.c.h.b16 %v762
  %v1482 = vunpack.c.l.b16 %v763
  %v1483 = vunpack.c.h.b16 %v763
  %v1484 = vunpack.c.l.b16 %v764
  %v1485 = vunpack.c.h.b16 %v764
  %v1486 = vunpack.c.l.b16 %v765
  %v1487 = vunpack.c.h.b16 %v765
  %v1488 = vunpack.c.l.b16 %v766
  %v1489 = vunpack.c.h.b16 %v766
  %v1490 = vunpack.c.l.b16 %v767
  %v1491 = vunpack.c.h.b16 %v767
  %v1492 = vunpack.c.l.b16 %v768
  %v1493 = vunpack.c.h.b16 %v768
  %v1494 = vunpack.c.l.b16 %v769
  %v1495 = vunpack.c.h.b16 %v769
  %v1496 = vunpack.c.l.b16 %v770
  %v1497 = vunpack.c.h.b16 %v770
  %v1498 = vunpack.c.l.b16 %v771
  %v1499 = vunpack.c.h.b16 %v771
  %v1500 = vunpack.c.l.b16 %v772
  %v1501 = vunpack.c.h.b16 %v772
  %v1502 = vunpack.c.l.b16 %v773
  %v1503 = vunpack.c.h.b16 %v773
  %v1504 = vunpack.c.l.b16 %v774
  %v1505 = vunpack.c.h.b16 %v774
  %v1506 = vunpack.c.l.b16 %v775
  %v1507 = vunpack.c.h.b16 %v775
  %v1508 = vunpack.c.l.b16 %v776
  %v1509 = vunpack.c.h.b16 %v776
  %v1510 = vunpack.c.l.b16 %v777
  %v1511 = vunpack.c.h.b16 %v777
  %v1512 = vunpack.c.l.b16 %v778
  %v1513 = vunpack.c.h.b16 %v778
  %v1514 = vunpack.c.l.b16 %v779
  %v1515 = vunpack.c.h.b16 %v779
  %v1516 = vunpack.c.l.b16 %v780
  %v1517 = vunpack.c.h.b16 %v780
  %v1518 = vunpack.c.l.b16 %v781
  %v1519 = vunpack.c.h.b16 %v781
  %v1520 = vunpack.c.l.b16 %v782
  %v1521 = vunpack.c.h.b16 %v782
  %v1522 = vunpack.c.l.b16 %v783
  %v1523 = vunpack.c.h.b16 %v783
  %v1524 = vunpack.c.l.b16 %v784
  %v1525 = vunpack.c.h.b16 %v784
  %v1526 = vunpack.c.l.b16 %v785
  %v1527 = vunpack.c.h.b16 %v785
  %v1528 = vunpack.c.l.b16 %v786
  %v1529 = vunpack.c.h.b16 %v786
  %v1530 = vunpack.c.l.b16 %v787
  %v1531 = vunpack.c.h.b16 %v787
  %v1532 = vunpack.c.l.b16 %v788
  %v1533 = vunpack.c.h.b16 %v788
  %v1534 = vunpack.c.l.b16 %v789
  %v1535 = vunpack.c.h.b16 %v789
  %v1536 = vunpack.c.l.b16 %v790
  %v1537 = vunpack.c.h.b16 %v790
  %v1538 = vunpack.c.l.b16 %v791
  %v1539 = vunpack.c.h.b16 %v791
  %v1540 = vunpack.c.l.b16 %v792
  %v1541 = vunpack.c.h.b16 %v792
  %v1542 = vunpack.c.l.b16 %v793
  %v1543 = vunpack.c.h.b16 %v793
  %v1544 = vunpack.c.l.b16 %v794
  %v1545 = vunpack.c.h.b16 %v794
  %v1546 = vunpack.c.l.b16 %v795
  %v1547 = vunpack.c.h.b16 %v795
  %v1548 = vunpack.c.l.b16 %v796
  %v1549 = vunpack.c.h.b16 %v796
  %v1550 = vunpack.c.l.b16 %v797
  %v1551 = vunpack.c.h.b16 %v797
  %v1552 = vunpack.c.l.b16 %v798
  %v1553 = vunpack.c.h.b16 %v798
  %v1554 = vunpack.c.l.b16 %v799
  %v1555 = vunpack.c.h.b16 %v799
  %v1556 = vunpack.c.l.b16 %v800
  %v1557 = vunpack.c.h.b16 %v800
  %v1558 = vunpack.c.l.b16 %v801
  %v1559 = vunpack.c.h.b16 %v801
  %v1560 = vunpack.c.l.b16 %v802
  %v1561 = vunpack.c.h.b16 %v802
  %v1562 = vunpack.c.l.b16 %v803
  %v1563 = vunpack.c.h.b16 %v803
  %v1564 = vunpack.c.l.b16 %v804
  %v1565 = vunpack.c.h.b16 %v804
  %v1566 = vunpack.c.l.b16 %v805
  %v1567 = vunpack.c.h.b16 %v805
  %v1568 = vunpack.c.l.b16 %v806
  %v1569 = vunpack.c.h.b16 %v806
  %v1570 = vunpack.c.l.b16 %v807
  %v1571 = vunpack.c.h.b16 %v807
  %v1572 = vunpack.c.l.b16 %v808
  %v1573 = vunpack.c.h.b16 %v808
  %v1574 = vunpack.c.l.b16 %v809
  %v1575 = vunpack.c.h.b16 %v809
  %v1576 = vunpack.c.l.b16 %v810
  %v1577 = vunpack.c.h.b16 %v810
  %v1578 = vunpack.c.l.b16 %v811
  %v1579 = vunpack.c.h.b16 %v811
  %v1580 = vunpack.c.l.b16 %v812
  %v1581 = vunpack.c.h.b16 %v812
  %v1582 = vunpack.c.l.b16 %v813
  %v1583 = vunpack.c.h.b16 %v813
  %v1584 = vunpack.c.l.b16 %v814
  %v1585 = vunpack.c.h.b16 %v814
  %v1586 = vunpack.c.l.b16 %v815
  %v1587 = vunpack.c.h.b16 %v815
  %v1588 = vunpack.c.l.b16 %v816
  %v1589 = vunpack.c.h.b16 %v816
  %v1590 = vunpack.c.l.b16 %v817
  %v1591 = vunpack.c.h.b16 %v817
  %v1592 = vunpack.c.l.b16 %v818
  %v1593 = vunpack.c.h.b16 %v818
  %v1594 = vunpack.c.l.b16 %v819
  %v1595 = vunpack.c.h.b16 %v819
  %v1596 = vunpack.c.l.b16 %v820
  %v1597 = vunpack.c.h.b16 %v820
  %v1598 = vunpack.c.l.b16 %v821
  %v1599 = vunpack.c.h.b16 %v821
  %v1600 = vpack.c.b16 %v1092, %v1088
  %v1601 = vpack.c.b16 %v1093, %v1089
  %v1602 = vpack.c.b16 %v1094, %v1090
  %v1603 = vpack.c.b16 %v1095, %v1091
  %v1604 = vpack.c.b16 %v1100, %v1096
  %v1605 = vpack.c.b16 %v1101, %v1097
  %v1606 = vpack.c.b16 %v1102, %v1098
  %v1607 = vpack.c.b16 %v1103, %v1099
  %v1608 = vpack.c.b16 %v1108, %v1104
  %v1609 = vpack.c.b16 %v1109, %v1105
  %v1610 = vpack.c.b16 %v1110, %v1106
  %v1611 = vpack.c.b16 %v1111, %v1107
  %v1612 = vpack.c.b16 %v1116, %v1112
  %v1613 = vpack.c.b16 %v1117, %v1113
  %v1614 = vpack.c.b16 %v1118, %v1114
  %v1615 = vpack.c.b16 %v1119, %v1115
  %v1616 = vpack.c.b16 %v1124, %v1120
  %v1617 = vpack.c.b16 %v1125, %v1121
  %v1618 = vpack.c.b16 %v1126, %v1122
  %v1619 = vpack.c.b16 %v1127, %v1123
  %v1620 = vpack.c.b16 %v1132, %v1128
  %v1621 = vpack.c.b16 %v1133, %v1129
  %v1622 = vpack.c.b16 %v1134, %v1130
  %v1623 = vpack.c.b16 %v1135, %v1131
  %v1624 = vpack.c.b16 %v1140, %v1136
  %v1625 = vpack.c.b16 %v1141, %v1137
  %v1626 = vpack.c.b16 %v1142, %v1138
  %v1627 = vpack.c.b16 %v1143, %v1139
  %v1628 = vpack.c.b16 %v1148, %v1144
  %v1629 = vpack.c.b16 %v1149, %v1145
  %v1630 = vpack.c.b16 %v1150, %v1146
  %v1631 = vpack.c.b16 %v1151, %v1147
  %v1632 = vpack.c.b16 %v1156, %v1152
  %v1633 = vpack.c.b16 %v1157, %v1153
  %v1634 = vpack.c.b16 %v1158, %v1154
  %v1635 = vpack.c.b16 %v1159, %v1155
  %v1636 = vpack.c.b16 %v1164, %v1160
  %v1637 = vpack.c.b16 %v1165, %v1161
  %v1638 = vpack.c.b16 %v1166, %v1162
  %v1639 = vpack.c.b16 %v1167, %v1163
  %v1640 = vpack.c.b16 %v1172, %v1168
  %v1641 = vpack.c.b16 %v1173, %v1169
  %v1642 = vpack.c.b16 %v1174, %v1170
  %v1643 = vpack.c.b16 %v1175, %v1171
  %v1644 = vpack.c.b16 %v1180, %v1176
  %v1645 = vpack.c.b16 %v1181, %v1177
  %v1646 = vpack.c.b16 %v1182, %v1178
  %v1647 = vpack.c.b16 %v1183, %v1179
  %v1648 = vpack.c.b16 %v1188, %v1184
  %v1649 = vpack.c.b16 %v1189, %v1185
  %v1650 = vpack.c.b16 %v1190, %v1186
  %v1651 = vpack.c.b16 %v1191, %v1187
  %v1652 = vpack.c.b16 %v1196, %v1192
  %v1653 = vpack.c.b16 %v1197, %v1193
  %v1654 = vpack.c.b16 %v1198, %v1194
  %v1655 = vpack.c.b16 %v1199, %v1195
  %v1656 = vpack.c.b16 %v1204, %v1200
  %v1657 = vpack.c.b16 %v1205, %v1201
  %v1658 = vpack.c.b16 %v1206, %v1202
  %v1659 = vpack.c.b16 %v1207, %v1203
  %v1660 = vpack.c.b16 %v1212, %v1208
  %v1661 = vpack.c.b16 %v1213, %v1209
  %v1662 = vpack.c.b16 %v1214, %v1210
  %v1663 = vpack.c.b16 %v1215, %v1211
  %v1664 = vpack.c.b16 %v1220, %v1216
  %v1665 = vpack.c.b16 %v1221, %v1217
  %v1666 = vpack.c.b16 %v1222, %v1218
  %v1667 = vpack.c.b16 %v1223, %v1219
  %v1668 = vpack.c.b16 %v1228, %v1224
  %v1669 = vpack.c.b16 %v1229, %v1225
  %v1670 = vpack.c.b16 %v1230, %v1226
  %v1671 = vpack.c.b16 %v1231, %v1227
  %v1672 = vpack.c.b16 %v1236, %v1232
  %v1673 = vpack.c.b16 %v1237, %v1233
  %v1674 = vpack.c.b16 %v1238, %v1234
  %v1675 = vpack.c.b16 %v1239, %v1235
  %v1676 = vpack.c.b16 %v1244, %v1240
  %v1677 = vpack.c.b16 %v1245, %v1241
  %v1678 = vpack.c.b16 %v1246, %v1242
  %v1679 = vpack.c.b16 %v1247, %v1243
  %v1680 = vpack.c.b16 %v1252, %v1248
  %v1681 = vpack.c.b16 %v1253, %v1249
  %v1682 = vpack.c.b16 %v1254, %v1250
  %v1683 = vpack.c.b16 %v1255, %v1251
  %v1684 = vpack.c.b16 %v1260, %v1256
  %v1685 = vpack.c.b16 %v1261, %v1257
  %v1686 = vpack.c.b16 %v1262, %v1258
  %v1687 = vpack.c.b16 %v1263, %v1259
  %v1688 = vpack.c.b16 %v1268, %v1264
  %v1689 = vpack.c.b16 %v1269, %v1265
  %v1690 = vpack.c.b16 %v1270, %v1266
  %v1691 = vpack.c.b16 %v1271, %v1267
  %v1692 = vpack.c.b16 %v1276, %v1272
  %v1693 = vpack.c.b16 %v1277, %v1273
  %v1694 = vpack.c.b16 %v1278, %v1274
  %v1695 = vpack.c.b16 %v1279, %v1275
  %v1696 = vpack.c.b16 %v1284, %v1280
  %v1697 = vpack.c.b16 %v1285, %v1281
  %v1698 = vpack.c.b16 %v1286, %v1282
  %v1699 = vpack.c.b16 %v1287, %v1283
  %v1700 = vpack.c.b16 %v1292, %v1288
  %v1701 = vpack.c.b16 %v1293, %v1289
  %v1702 = vpack.c.b16 %v1294, %v1290
  %v1703 = vpack.c.b16 %v1295, %v1291
  %v1704 = vpack.c.b16 %v1300, %v1296
  %v1705 = vpack.c.b16 %v1301, %v1297
  %v1706 = vpack.c.b16 %v1302, %v1298
  %v1707 = vpack.c.b16 %v1303, %v1299
  %v1708 = vpack.c.b16 %v1308, %v1304
  %v1709 = vpack.c.b16 %v1309, %v1305
  %v1710 = vpack.c.b16 %v1310, %v1306
  %v1711 = vpack.c.b16 %v1311, %v1307
  %v1712 = vpack.c.b16 %v1316, %v1312
  %v1713 = vpack.c.b16 %v1317, %v1313
  %v1714 = vpack.c.b16 %v1318, %v1314
  %v1715 = vpack.c.b16 %v1319, %v1315
  %v1716 = vpack.c.b16 %v1324, %v1320
  %v1717 = vpack.c.b16 %v1325, %v1321
  %v1718 = vpack.c.b16 %v1326, %v1322
  %v1719 = vpack.c.b16 %v1327, %v1323
  %v1720 = vpack.c.b16 %v1332, %v1328
  %v1721 = vpack.c.b16 %v1333, %v1329
  %v1722 = vpack.c.b16 %v1334, %v1330
  %v1723 = vpack.c.b16 %v1335, %v1331
  %v1724 = vpack.c.b16 %v1340, %v1336
  %v1725 = vpack.c.b16 %v1341, %v1337
  %v1726 = vpack.c.b16 %v1342, %v1338
  %v1727 = vpack.c.b16 %v1343, %v1339
  %v1728 = vpack.c.b16 %v1348, %v1344
  %v1729 = vpack.c.b16 %v1349, %v1345
  %v1730 = vpack.c.b16 %v1350, %v1346
  %v1731 = vpack.c.b16 %v1351, %v1347
  %v1732 = vpack.c.b16 %v1356, %v1352
  %v1733 = vpack.c.b16 %v1357, %v1353
  %v1734 = vpack.c.b16 %v1358, %v1354
  %v1735 = vpack.c.b16 %v1359, %v1355
  %v1736 = vpack.c.b16 %v1364, %v1360
  %v1737 = vpack.c.b16 %v1365, %v1361
  %v1738 = vpack.c.b16 %v1366, %v1362
  %v1739 = vpack.c.b16 %v1367, %v1363
  %v1740 = vpack.c.b16 %v1372, %v1368
  %v1741 = vpack.c.b16 %v1373, %v1369
  %v1742 = vpack.c.b16 %v1374, %v1370
  %v1743 = vpack.c.b16 %v1375, %v1371
  %v1744 = vpack.c.b16 %v1380, %v1376
  %v1745 = vpack.c.b16 %v1381, %v1377
  %v1746 = vpack.c.b16 %v1382, %v1378
  %v1747 = vpack.c.b16 %v1383, %v1379
  %v1748 = vpack.c.b16 %v1388, %v1384
  %v1749 = vpack.c.b16 %v1389, %v1385
  %v1750 = vpack.c.b16 %v1390, %v1386
  %v1751 = vpack.c.b16 %v1391, %v1387
  %v1752 = vpack.c.b16 %v1396, %v1392
  %v1753 = vpack.c.b16 %v1397, %v1393
  %v1754 = vpack.c.b16 %v1398, %v1394
  %v1755 = vpack.c.b16 %v1399, %v1395
  %v1756 = vpack.c.b16 %v1404, %v1400
  %v1757 = vpack.c.b16 %v1405, %v1401
  %v1758 = vpack.c.b16 %v1406, %v1402
  %v1759 = vpack.c.b16 %v1407, %v1403
  %v1760 = vpack.c.b16 %v1412, %v1408
  %v1761 = vpack.c.b16 %v1413, %v1409
  %v1762 = vpack.c.b16 %v1414, %v1410
  %v1763 = vpack.c.b16 %v1415, %v1411
  %v1764 = vpack.c.b16 %v1420, %v1416
  %v1765 = vpack.c.b16 %v1421, %v1417
  %v1766 = vpack.c.b16 %v1422, %v1418
  %v1767 = vpack.c.b16 %v1423, %v1419
  %v1768 = vpack.c.b16 %v1428, %v1424
  %v1769 = vpack.c.b16 %v1429, %v1425
  %v1770 = vpack.c.b16 %v1430, %v1426
  %v1771 = vpack.c.b16 %v1431, %v1427
  %v1772 = vpack.c.b16 %v1436, %v1432
  %v1773 = vpack.c.b16 %v1437, %v1433
  %v1774 = vpack.c.b16 %v1438, %v1434
  %v1775 = vpack.c.b16 %v1439, %v1435
  %v1776 = vpack.c.b16 %v1444, %v1440
  %v1777 = vpack.c.b16 %v1445, %v1441
  %v1778 = vpack.c.b16 %v1446, %v1442
  %v1779 = vpack.c.b16 %v1447, %v1443
  %v1780 = vpack.c.b16 %v1452, %v1448
  %v1781 = vpack.c.b16 %v1453, %v1449
  %v1782 = vpack.c.b16 %v1454, %v1450
  %v1783 = vpack.c.b16 %v1455, %v1451
  %v1784 = vpack.c.b16 %v1460, %v1456
  %v1785 = vpack.c.b16 %v1461, %v1457
  %v1786 = vpack.c.b16 %v1462, %v1458
  %v1787 = vpack.c.b16 %v1463, %v1459
  %v1788 = vpack.c.b16 %v1468, %v1464
  %v1789 = vpack.c.b16 %v1469, %v1465
  %v1790 = vpack.c.b16 %v1470, %v1466
  %v1791 = vpack.c.b16 %v1471, %v1467
  %v1792 = vpack.c.b16 %v1476, %v1472
  %v1793 = vpack.c.b16 %v1477, %v1473
  %v1794 = vpack.c.b16 %v1478, %v1474
  %v1795 = vpack.c.b16 %v1479, %v1475
  %v1796 = vpack.c.b16 %v1484, %v1480
  %v1797 = vpack.c.b16 %v1485, %v1481
  %v1798 = vpack.c.b16 %v1486, %v1482
  %v1799 = vpack.c.b16 %v1487, %v1483
  %v1800 = vpack.c.b16 %v1492, %v1488
  %v1801 = vpack.c.b16 %v1493, %v1489
  %v1802 = vpack.c.b16 %v1494, %v1490
  %v1803 = vpack.c.b16 %v1495, %v1491
  %v1804 = vpack.c.b16 %v1500, %v1496
  %v1805 = vpack.c.b16 %v1501, %v1497
  %v1806 = vpack.c.b16 %v1502, %v1498
  %v1807 = vpack.c.b16 %v1503, %v1499
  %v1808 = vpack.c.b16 %v1508, %v1504
  %v1809 = vpack.c.b16 %v1509, %v1505
  %v1810 = vpack.c.b16 %v1510, %v1506
  %v1811 = vpack.c.b16 %v1511, %v1507
  %v1812 = vpack.c.b16 %v1516, %v1512
  %v1813 = vpack.c.b16 %v1517, %v1513
  %v1814 = vpack.c.b16 %v1518, %v1514
  %v1815 = vpack.c.b16 %v1519, %v1515
  %v1816 = vpack.c.b16 %v1524, %v1520
  %v1817 = vpack.c.b16 %v1525, %v1521
  %v1818 = vpack.c.b16 %v1526, %v1522
  %v1819 = vpack.c.b16 %v1527, %v1523
  %v1820 = vpack.c.b16 %v1532, %v1528
  %v1821 = vpack.c.b16 %v1533, %v1529
  %v1822 = vpack.c.b16 %v1534, %v1530
  %v1823 = vpack.c.b16 %v1535, %v1531
  %v1824 = vpack.c.b16 %v1540, %v1536
  %v1825 = vpack.c.b16 %v1541, %v1537
  %v1826 = vpack.c.b16 %v1542, %v1538
  %v1827 = vpack.c.b16 %v1543, %v1539
  %v1828 = vpack.c.b16 %v1548, %v1544
  %v1829 = vpack.c.b16 %v1549, %v1545
  %v1830 = vpack.c.b16 %v1550, %v1546
  %v1831 = vpack.c.b16 %v1551, %v1547
  %v1832 = vpack.c.b16 %v1556, %v1552
  %v1833 = vpack.c.b16 %v1557, %v1553
  %v1834 = vpack.c.b16 %v1558, %v1554
  %v1835 = vpack.c.b16 %v1559, %v1555
  %v1836 = vpack.c.b16 %v1564, %v1560
  %v1837 = vpack.c.b16 %v1565, %v1561
  %v1838 = vpack.c.b16 %v1566, %v1562
  %v1839 = vpack.c.b16 %v1567, %v1563
  %v1840 = vpack.c.b16 %v1572, %v1568
  %v1841 = vpack.c.b16 %v1573, %v1569
  %v1842 = vpack.c.b16 %v1574, %v1570
  %v1843 = vpack.c.b16 %v1575, %v1571
  %v1844 = vpack.c.b16 %v1580, %v1576
  %v1845 = vpack.c.b16 %v1581, %v1577
  %v1846 = vpack.c.b16 %v1582, %v1578
  %v1847 = vpack.c.b16 %v1583, %v1579
  %v1848 = vpack.c.b16 %v1588, %v1584
  %v1849 = vpack.c.b16 %v1589, %v1585
  %v1850 = vpack.c.b16 %v1590, %v1586
  %v1851 = vpack.c.b16 %v1591, %v1587
  %v1852 = vpack.c.b16 %v1596, %v1592
  %v1853 = vpack.c.b16 %v1597, %v1593
  %v1854 = vpack.c.b16 %v1598, %v1594
  %v1855 = vpack.c.b16 %v1599, %v1595
  %2112 = vmatpush.bf16.msra.mxu0 %v1628
  %2113 = vmatpush.bf16.msra.mxu0 %v1624
  %2114 = vmatpush.bf16.msra.mxu0 %v1620
  %2115 = vmatpush.bf16.msra.mxu0 %v1616
  %2116 = vmatpush.bf16.msra.mxu0 %v1612
  %2117 = vmatpush.bf16.msra.mxu0 %v1608
  %2118 = vmatpush.bf16.msra.mxu0 %v1604
  %2119 = vmatpush.bf16.msra.mxu0 %v1600
  %2120 = vmatmul.bf16.gmra.mxu0 %v558
  %v2121 = vpop.f32.mrf.mxu0
  %v2122 = vadd.f32 %v824, %v2121
  %v2123 = vpop.f32.mrf.mxu0
  %2124 = vdwg.mxu0
  %2125 = vmatpush.bf16.msra.mxu0 %v1660
  %2126 = vmatpush.bf16.msra.mxu0 %v1656
  %2127 = vmatpush.bf16.msra.mxu0 %v1652
  %2128 = vmatpush.bf16.msra.mxu0 %v1648
  %2129 = vmatpush.bf16.msra.mxu0 %v1644
  %2130 = vmatpush.bf16.msra.mxu0 %v1640
  %2131 = vmatpush.bf16.msra.mxu0 %v1636
  %2132 = vmatpush.bf16.msra.mxu0 %v1632
  %2133 = vmatmul.bf16.gmra.mxu0 %v559
  %v2134 = vpop.f32.mrf.mxu0
  %v2135 = vadd.f32 %v2122, %v2134
  %v2136 = vpop.f32.mrf.mxu0
  %2137 = vdwg.mxu0
  %2138 = vmatpush.bf16.msra.mxu0 %v1692
  %2139 = vmatpush.bf16.msra.mxu0 %v1688
  %2140 = vmatpush.bf16.msra.mxu0 %v1684
  %2141 = vmatpush.bf16.msra.mxu0 %v1680
  %2142 = vmatpush.bf16.msra.mxu0 %v1676
  %2143 = vmatpush.bf16.msra.mxu0 %v1672
  %2144 = vmatpush.bf16.msra.mxu0 %v1668
  %2145 = vmatpush.bf16.msra.mxu0 %v1664
  %2146 = vmatmul.bf16.gmra.mxu0 %v560
  %v2147 = vpop.f32.mrf.mxu0
  %v2148 = vadd.f32 %v2135, %v2147
  %v2149 = vpop.f32.mrf.mxu0
  %2150 = vdwg.mxu0
  %2151 = vmatpush.bf16.msra.mxu0 %v1724
  %2152 = vmatpush.bf16.msra.mxu0 %v1720
  %2153 = vmatpush.bf16.msra.mxu0 %v1716
  %2154 = vmatpush.bf16.msra.mxu0 %v1712
  %2155 = vmatpush.bf16.msra.mxu0 %v1708
  %2156 = vmatpush.bf16.msra.mxu0 %v1704
  %2157 = vmatpush.bf16.msra.mxu0 %v1700
  %2158 = vmatpush.bf16.msra.mxu0 %v1696
  %2159 = vmatmul.bf16.gmra.mxu0 %v561
  %v2160 = vpop.f32.mrf.mxu0
  %v2161 = vadd.f32 %v2148, %v2160
  %v2162 = vpop.f32.mrf.mxu0
  %2163 = vdwg.mxu0
  %2164 = vmatpush.bf16.msra.mxu0 %v1756
  %2165 = vmatpush.bf16.msra.mxu0 %v1752
  %2166 = vmatpush.bf16.msra.mxu0 %v1748
  %2167 = vmatpush.bf16.msra.mxu0 %v1744
  %2168 = vmatpush.bf16.msra.mxu0 %v1740
  %2169 = vmatpush.bf16.msra.mxu0 %v1736
  %2170 = vmatpush.bf16.msra.mxu0 %v1732
  %2171 = vmatpush.bf16.msra.mxu0 %v1728
  %2172 = vmatmul.bf16.gmra.mxu0 %v562
  %v2173 = vpop.f32.mrf.mxu0
  %v2174 = vadd.f32 %v2161, %v2173
  %v2175 = vpop.f32.mrf.mxu0
  %2176 = vdwg.mxu0
  %2177 = vmatpush.bf16.msra.mxu0 %v1788
  %2178 = vmatpush.bf16.msra.mxu0 %v1784
  %2179 = vmatpush.bf16.msra.mxu0 %v1780
  %2180 = vmatpush.bf16.msra.mxu0 %v1776
  %2181 = vmatpush.bf16.msra.mxu0 %v1772
  %2182 = vmatpush.bf16.msra.mxu0 %v1768
  %2183 = vmatpush.bf16.msra.mxu0 %v1764
  %2184 = vmatpush.bf16.msra.mxu0 %v1760
  %2185 = vmatmul.bf16.gmra.mxu0 %v563
  %v2186 = vpop.f32.mrf.mxu0
  %v2187 = vadd.f32 %v2174, %v2186
  %v2188 = vpop.f32.mrf.mxu0
  %2189 = vdwg.mxu0
  %2190 = vmatpush.bf16.msra.mxu0 %v1820
  %2191 = vmatpush.bf16.msra.mxu0 %v1816
  %2192 = vmatpush.bf16.msra.mxu0 %v1812
  %2193 = vmatpush.bf16.msra.mxu0 %v1808
  %2194 = vmatpush.bf16.msra.mxu0 %v1804
  %2195 = vmatpush.bf16.msra.mxu0 %v1800
  %2196 = vmatpush.bf16.msra.mxu0 %v1796
  %2197 = vmatpush.bf16.msra.mxu0 %v1792
  %2198 = vmatmul.bf16.gmra.mxu0 %v564
  %v2199 = vpop.f32.mrf.mxu0
  %v2200 = vadd.f32 %v2187, %v2199
  %v2201 = vpop.f32.mrf.mxu0
  %2202 = vdwg.mxu0
  %2203 = vmatpush.bf16.msra.mxu0 %v1852
  %2204 = vmatpush.bf16.msra.mxu0 %v1848
  %2205 = vmatpush.bf16.msra.mxu0 %v1844
  %2206 = vmatpush.bf16.msra.mxu0 %v1840
  %2207 = vmatpush.bf16.msra.mxu0 %v1836
  %2208 = vmatpush.bf16.msra.mxu0 %v1832
  %2209 = vmatpush.bf16.msra.mxu0 %v1828
  %2210 = vmatpush.bf16.msra.mxu0 %v1824
  %2211 = vmatmul.bf16.gmra.mxu0 %v565
  %v2212 = vpop.f32.mrf.mxu0
  %v2213 = vadd.f32 %v2200, %v2212
  %v2214 = vpop.f32.mrf.mxu0
  %2215 = vdwg.mxu0
  %2216 = vmatpush.bf16.msra.mxu0 %v1629
  %2217 = vmatpush.bf16.msra.mxu0 %v1625
  %2218 = vmatpush.bf16.msra.mxu0 %v1621
  %2219 = vmatpush.bf16.msra.mxu0 %v1617
  %2220 = vmatpush.bf16.msra.mxu0 %v1613
  %2221 = vmatpush.bf16.msra.mxu0 %v1609
  %2222 = vmatpush.bf16.msra.mxu0 %v1605
  %2223 = vmatpush.bf16.msra.mxu0 %v1601
  %2224 = vmatmul.bf16.gmra.mxu0 %v558
  %v2225 = vpop.f32.mrf.mxu0
  %v2226 = vadd.f32 %v825, %v2225
  %v2227 = vpop.f32.mrf.mxu0
  %2228 = vdwg.mxu0
  %2229 = vmatpush.bf16.msra.mxu0 %v1661
  %2230 = vmatpush.bf16.msra.mxu0 %v1657
  %2231 = vmatpush.bf16.msra.mxu0 %v1653
  %2232 = vmatpush.bf16.msra.mxu0 %v1649
  %2233 = vmatpush.bf16.msra.mxu0 %v1645
  %2234 = vmatpush.bf16.msra.mxu0 %v1641
  %2235 = vmatpush.bf16.msra.mxu0 %v1637
  %2236 = vmatpush.bf16.msra.mxu0 %v1633
  %2237 = vmatmul.bf16.gmra.mxu0 %v559
  %v2238 = vpop.f32.mrf.mxu0
  %v2239 = vadd.f32 %v2226, %v2238
  %v2240 = vpop.f32.mrf.mxu0
  %2241 = vdwg.mxu0
  %2242 = vmatpush.bf16.msra.mxu0 %v1693
  %2243 = vmatpush.bf16.msra.mxu0 %v1689
  %2244 = vmatpush.bf16.msra.mxu0 %v1685
  %2245 = vmatpush.bf16.msra.mxu0 %v1681
  %2246 = vmatpush.bf16.msra.mxu0 %v1677
  %2247 = vmatpush.bf16.msra.mxu0 %v1673
  %2248 = vmatpush.bf16.msra.mxu0 %v1669
  %2249 = vmatpush.bf16.msra.mxu0 %v1665
  %2250 = vmatmul.bf16.gmra.mxu0 %v560
  %v2251 = vpop.f32.mrf.mxu0
  %v2252 = vadd.f32 %v2239, %v2251
  %v2253 = vpop.f32.mrf.mxu0
  %2254 = vdwg.mxu0
  %2255 = vmatpush.bf16.msra.mxu0 %v1725
  %2256 = vmatpush.bf16.msra.mxu0 %v1721
  %2257 = vmatpush.bf16.msra.mxu0 %v1717
  %2258 = vmatpush.bf16.msra.mxu0 %v1713
  %2259 = vmatpush.bf16.msra.mxu0 %v1709
  %2260 = vmatpush.bf16.msra.mxu0 %v1705
  %2261 = vmatpush.bf16.msra.mxu0 %v1701
  %2262 = vmatpush.bf16.msra.mxu0 %v1697
  %2263 = vmatmul.bf16.gmra.mxu0 %v561
  %v2264 = vpop.f32.mrf.mxu0
  %v2265 = vadd.f32 %v2252, %v2264
  %v2266 = vpop.f32.mrf.mxu0
  %2267 = vdwg.mxu0
  %2268 = vmatpush.bf16.msra.mxu0 %v1757
  %2269 = vmatpush.bf16.msra.mxu0 %v1753
  %2270 = vmatpush.bf16.msra.mxu0 %v1749
  %2271 = vmatpush.bf16.msra.mxu0 %v1745
  %2272 = vmatpush.bf16.msra.mxu0 %v1741
  %2273 = vmatpush.bf16.msra.mxu0 %v1737
  %2274 = vmatpush.bf16.msra.mxu0 %v1733
  %2275 = vmatpush.bf16.msra.mxu0 %v1729
  %2276 = vmatmul.bf16.gmra.mxu0 %v562
  %v2277 = vpop.f32.mrf.mxu0
  %v2278 = vadd.f32 %v2265, %v2277
  %v2279 = vpop.f32.mrf.mxu0
  %2280 = vdwg.mxu0
  %2281 = vmatpush.bf16.msra.mxu0 %v1789
  %2282 = vmatpush.bf16.msra.mxu0 %v1785
  %2283 = vmatpush.bf16.msra.mxu0 %v1781
  %2284 = vmatpush.bf16.msra.mxu0 %v1777
  %2285 = vmatpush.bf16.msra.mxu0 %v1773
  %2286 = vmatpush.bf16.msra.mxu0 %v1769
  %2287 = vmatpush.bf16.msra.mxu0 %v1765
  %2288 = vmatpush.bf16.msra.mxu0 %v1761
  %2289 = vmatmul.bf16.gmra.mxu0 %v563
  %v2290 = vpop.f32.mrf.mxu0
  %v2291 = vadd.f32 %v2278, %v2290
  %v2292 = vpop.f32.mrf.mxu0
  %2293 = vdwg.mxu0
  %2294 = vmatpush.bf16.msra.mxu0 %v1821
  %2295 = vmatpush.bf16.msra.mxu0 %v1817
  %2296 = vmatpush.bf16.msra.mxu0 %v1813
  %2297 = vmatpush.bf16.msra.mxu0 %v1809
  %2298 = vmatpush.bf16.msra.mxu0 %v1805
  %2299 = vmatpush.bf16.msra.mxu0 %v1801
  %2300 = vmatpush.bf16.msra.mxu0 %v1797
  %2301 = vmatpush.bf16.msra.mxu0 %v1793
  %2302 = vmatmul.bf16.gmra.mxu0 %v564
  %v2303 = vpop.f32.mrf.mxu0
  %v2304 = vadd.f32 %v2291, %v2303
  %v2305 = vpop.f32.mrf.mxu0
  %2306 = vdwg.mxu0
  %2307 = vmatpush.bf16.msra.mxu0 %v1853
  %2308 = vmatpush.bf16.msra.mxu0 %v1849
  %2309 = vmatpush.bf16.msra.mxu0 %v1845
  %2310 = vmatpush.bf16.msra.mxu0 %v1841
  %2311 = vmatpush.bf16.msra.mxu0 %v1837
  %2312 = vmatpush.bf16.msra.mxu0 %v1833
  %2313 = vmatpush.bf16.msra.mxu0 %v1829
  %2314 = vmatpush.bf16.msra.mxu0 %v1825
  %2315 = vmatmul.bf16.gmra.mxu0 %v565
  %v2316 = vpop.f32.mrf.mxu0
  %v2317 = vadd.f32 %v2304, %v2316
  %v2318 = vpop.f32.mrf.mxu0
  %2319 = vdwg.mxu0
  %2320 = vmatpush.bf16.msra.mxu0 %v1630
  %2321 = vmatpush.bf16.msra.mxu0 %v1626
  %2322 = vmatpush.bf16.msra.mxu0 %v1622
  %2323 = vmatpush.bf16.msra.mxu0 %v1618
  %2324 = vmatpush.bf16.msra.mxu0 %v1614
  %2325 = vmatpush.bf16.msra.mxu0 %v1610
  %2326 = vmatpush.bf16.msra.mxu0 %v1606
  %2327 = vmatpush.bf16.msra.mxu0 %v1602
  %2328 = vmatmul.bf16.gmra.mxu0 %v558
  %v2329 = vpop.f32.mrf.mxu0
  %v2330 = vadd.f32 %v826, %v2329
  %v2331 = vpop.f32.mrf.mxu0
  %2332 = vdwg.mxu0
  %2333 = vmatpush.bf16.msra.mxu0 %v1662
  %2334 = vmatpush.bf16.msra.mxu0 %v1658
  %2335 = vmatpush.bf16.msra.mxu0 %v1654
  %2336 = vmatpush.bf16.msra.mxu0 %v1650
  %2337 = vmatpush.bf16.msra.mxu0 %v1646
  %2338 = vmatpush.bf16.msra.mxu0 %v1642
  %2339 = vmatpush.bf16.msra.mxu0 %v1638
  %2340 = vmatpush.bf16.msra.mxu0 %v1634
  %2341 = vmatmul.bf16.gmra.mxu0 %v559
  %v2342 = vpop.f32.mrf.mxu0
  %v2343 = vadd.f32 %v2330, %v2342
  %v2344 = vpop.f32.mrf.mxu0
  %2345 = vdwg.mxu0
  %2346 = vmatpush.bf16.msra.mxu0 %v1694
  %2347 = vmatpush.bf16.msra.mxu0 %v1690
  %2348 = vmatpush.bf16.msra.mxu0 %v1686
  %2349 = vmatpush.bf16.msra.mxu0 %v1682
  %2350 = vmatpush.bf16.msra.mxu0 %v1678
  %2351 = vmatpush.bf16.msra.mxu0 %v1674
  %2352 = vmatpush.bf16.msra.mxu0 %v1670
  %2353 = vmatpush.bf16.msra.mxu0 %v1666
  %2354 = vmatmul.bf16.gmra.mxu0 %v560
  %v2355 = vpop.f32.mrf.mxu0
  %v2356 = vadd.f32 %v2343, %v2355
  %v2357 = vpop.f32.mrf.mxu0
  %2358 = vdwg.mxu0
  %2359 = vmatpush.bf16.msra.mxu0 %v1726
  %2360 = vmatpush.bf16.msra.mxu0 %v1722
  %2361 = vmatpush.bf16.msra.mxu0 %v1718
  %2362 = vmatpush.bf16.msra.mxu0 %v1714
  %2363 = vmatpush.bf16.msra.mxu0 %v1710
  %2364 = vmatpush.bf16.msra.mxu0 %v1706
  %2365 = vmatpush.bf16.msra.mxu0 %v1702
  %2366 = vmatpush.bf16.msra.mxu0 %v1698
  %2367 = vmatmul.bf16.gmra.mxu0 %v561
  %v2368 = vpop.f32.mrf.mxu0
  %v2369 = vadd.f32 %v2356, %v2368
  %v2370 = vpop.f32.mrf.mxu0
  %2371 = vdwg.mxu0
  %2372 = vmatpush.bf16.msra.mxu0 %v1758
  %2373 = vmatpush.bf16.msra.mxu0 %v1754
  %2374 = vmatpush.bf16.msra.mxu0 %v1750
  %2375 = vmatpush.bf16.msra.mxu0 %v1746
  %2376 = vmatpush.bf16.msra.mxu0 %v1742
  %2377 = vmatpush.bf16.msra.mxu0 %v1738
  %2378 = vmatpush.bf16.msra.mxu0 %v1734
  %2379 = vmatpush.bf16.msra.mxu0 %v1730
  %2380 = vmatmul.bf16.gmra.mxu0 %v562
  %v2381 = vpop.f32.mrf.mxu0
  %v2382 = vadd.f32 %v2369, %v2381
  %v2383 = vpop.f32.mrf.mxu0
  %2384 = vdwg.mxu0
  %2385 = vmatpush.bf16.msra.mxu0 %v1790
  %2386 = vmatpush.bf16.msra.mxu0 %v1786
  %2387 = vmatpush.bf16.msra.mxu0 %v1782
  %2388 = vmatpush.bf16.msra.mxu0 %v1778
  %2389 = vmatpush.bf16.msra.mxu0 %v1774
  %2390 = vmatpush.bf16.msra.mxu0 %v1770
  %2391 = vmatpush.bf16.msra.mxu0 %v1766
  %2392 = vmatpush.bf16.msra.mxu0 %v1762
  %2393 = vmatmul.bf16.gmra.mxu0 %v563
  %v2394 = vpop.f32.mrf.mxu0
  %v2395 = vadd.f32 %v2382, %v2394
  %v2396 = vpop.f32.mrf.mxu0
  %2397 = vdwg.mxu0
  %2398 = vmatpush.bf16.msra.mxu0 %v1822
  %2399 = vmatpush.bf16.msra.mxu0 %v1818
  %2400 = vmatpush.bf16.msra.mxu0 %v1814
  %2401 = vmatpush.bf16.msra.mxu0 %v1810
  %2402 = vmatpush.bf16.msra.mxu0 %v1806
  %2403 = vmatpush.bf16.msra.mxu0 %v1802
  %2404 = vmatpush.bf16.msra.mxu0 %v1798
  %2405 = vmatpush.bf16.msra.mxu0 %v1794
  %2406 = vmatmul.bf16.gmra.mxu0 %v564
  %v2407 = vpop.f32.mrf.mxu0
  %v2408 = vadd.f32 %v2395, %v2407
  %v2409 = vpop.f32.mrf.mxu0
  %2410 = vdwg.mxu0
  %2411 = vmatpush.bf16.msra.mxu0 %v1854
  %2412 = vmatpush.bf16.msra.mxu0 %v1850
  %2413 = vmatpush.bf16.msra.mxu0 %v1846
  %2414 = vmatpush.bf16.msra.mxu0 %v1842
  %2415 = vmatpush.bf16.msra.mxu0 %v1838
  %2416 = vmatpush.bf16.msra.mxu0 %v1834
  %2417 = vmatpush.bf16.msra.mxu0 %v1830
  %2418 = vmatpush.bf16.msra.mxu0 %v1826
  %2419 = vmatmul.bf16.gmra.mxu0 %v565
  %v2420 = vpop.f32.mrf.mxu0
  %v2421 = vadd.f32 %v2408, %v2420
  %v2422 = vpop.f32.mrf.mxu0
  %2423 = vdwg.mxu0
  %2424 = vmatpush.bf16.msra.mxu0 %v1631
  %2425 = vmatpush.bf16.msra.mxu0 %v1627
  %2426 = vmatpush.bf16.msra.mxu0 %v1623
  %2427 = vmatpush.bf16.msra.mxu0 %v1619
  %2428 = vmatpush.bf16.msra.mxu0 %v1615
  %2429 = vmatpush.bf16.msra.mxu0 %v1611
  %2430 = vmatpush.bf16.msra.mxu0 %v1607
  %2431 = vmatpush.bf16.msra.mxu0 %v1603
  %2432 = vmatmul.bf16.gmra.mxu0 %v558
  %v2433 = vpop.f32.mrf.mxu0
  %v2434 = vadd.f32 %v827, %v2433
  %v2435 = vpop.f32.mrf.mxu0
  %2436 = vdwg.mxu0
  %2437 = vmatpush.bf16.msra.mxu0 %v1663
  %2438 = vmatpush.bf16.msra.mxu0 %v1659
  %2439 = vmatpush.bf16.msra.mxu0 %v1655
  %2440 = vmatpush.bf16.msra.mxu0 %v1651
  %2441 = vmatpush.bf16.msra.mxu0 %v1647
  %2442 = vmatpush.bf16.msra.mxu0 %v1643
  %2443 = vmatpush.bf16.msra.mxu0 %v1639
  %2444 = vmatpush.bf16.msra.mxu0 %v1635
  %2445 = vmatmul.bf16.gmra.mxu0 %v559
  %v2446 = vpop.f32.mrf.mxu0
  %v2447 = vadd.f32 %v2434, %v2446
  %v2448 = vpop.f32.mrf.mxu0
  %2449 = vdwg.mxu0
  %2450 = vmatpush.bf16.msra.mxu0 %v1695
  %2451 = vmatpush.bf16.msra.mxu0 %v1691
  %2452 = vmatpush.bf16.msra.mxu0 %v1687
  %2453 = vmatpush.bf16.msra.mxu0 %v1683
  %2454 = vmatpush.bf16.msra.mxu0 %v1679
  %2455 = vmatpush.bf16.msra.mxu0 %v1675
  %2456 = vmatpush.bf16.msra.mxu0 %v1671
  %2457 = vmatpush.bf16.msra.mxu0 %v1667
  %2458 = vmatmul.bf16.gmra.mxu0 %v560
  %v2459 = vpop.f32.mrf.mxu0
  %v2460 = vadd.f32 %v2447, %v2459
  %v2461 = vpop.f32.mrf.mxu0
  %2462 = vdwg.mxu0
  %2463 = vmatpush.bf16.msra.mxu0 %v1727
  %2464 = vmatpush.bf16.msra.mxu0 %v1723
  %2465 = vmatpush.bf16.msra.mxu0 %v1719
  %2466 = vmatpush.bf16.msra.mxu0 %v1715
  %2467 = vmatpush.bf16.msra.mxu0 %v1711
  %2468 = vmatpush.bf16.msra.mxu0 %v1707
  %2469 = vmatpush.bf16.msra.mxu0 %v1703
  %2470 = vmatpush.bf16.msra.mxu0 %v1699
  %2471 = vmatmul.bf16.gmra.mxu0 %v561
  %v2472 = vpop.f32.mrf.mxu0
  %v2473 = vadd.f32 %v2460, %v2472
  %v2474 = vpop.f32.mrf.mxu0
  %2475 = vdwg.mxu0
  %2476 = vmatpush.bf16.msra.mxu0 %v1759
  %2477 = vmatpush.bf16.msra.mxu0 %v1755
  %2478 = vmatpush.bf16.msra.mxu0 %v1751
  %2479 = vmatpush.bf16.msra.mxu0 %v1747
  %2480 = vmatpush.bf16.msra.mxu0 %v1743
  %2481 = vmatpush.bf16.msra.mxu0 %v1739
  %2482 = vmatpush.bf16.msra.mxu0 %v1735
  %2483 = vmatpush.bf16.msra.mxu0 %v1731
  %2484 = vmatmul.bf16.gmra.mxu0 %v562
  %v2485 = vpop.f32.mrf.mxu0
  %v2486 = vadd.f32 %v2473, %v2485
  %v2487 = vpop.f32.mrf.mxu0
  %2488 = vdwg.mxu0
  %2489 = vmatpush.bf16.msra.mxu0 %v1791
  %2490 = vmatpush.bf16.msra.mxu0 %v1787
  %2491 = vmatpush.bf16.msra.mxu0 %v1783
  %2492 = vmatpush.bf16.msra.mxu0 %v1779
  %2493 = vmatpush.bf16.msra.mxu0 %v1775
  %2494 = vmatpush.bf16.msra.mxu0 %v1771
  %2495 = vmatpush.bf16.msra.mxu0 %v1767
  %2496 = vmatpush.bf16.msra.mxu0 %v1763
  %2497 = vmatmul.bf16.gmra.mxu0 %v563
  %v2498 = vpop.f32.mrf.mxu0
  %v2499 = vadd.f32 %v2486, %v2498
  %v2500 = vpop.f32.mrf.mxu0
  %2501 = vdwg.mxu0
  %2502 = vmatpush.bf16.msra.mxu0 %v1823
  %2503 = vmatpush.bf16.msra.mxu0 %v1819
  %2504 = vmatpush.bf16.msra.mxu0 %v1815
  %2505 = vmatpush.bf16.msra.mxu0 %v1811
  %2506 = vmatpush.bf16.msra.mxu0 %v1807
  %2507 = vmatpush.bf16.msra.mxu0 %v1803
  %2508 = vmatpush.bf16.msra.mxu0 %v1799
  %2509 = vmatpush.bf16.msra.mxu0 %v1795
  %2510 = vmatmul.bf16.gmra.mxu0 %v564
  %v2511 = vpop.f32.mrf.mxu0
  %v2512 = vadd.f32 %v2499, %v2511
  %v2513 = vpop.f32.mrf.mxu0
  %2514 = vdwg.mxu0
  %2515 = vmatpush.bf16.msra.mxu0 %v1855
  %2516 = vmatpush.bf16.msra.mxu0 %v1851
  %2517 = vmatpush.bf16.msra.mxu0 %v1847
  %2518 = vmatpush.bf16.msra.mxu0 %v1843
  %2519 = vmatpush.bf16.msra.mxu0 %v1839
  %2520 = vmatpush.bf16.msra.mxu0 %v1835
  %2521 = vmatpush.bf16.msra.mxu0 %v1831
  %2522 = vmatpush.bf16.msra.mxu0 %v1827
  %2523 = vmatmul.bf16.gmra.mxu0 %v565
  %v2524 = vpop.f32.mrf.mxu0
  %v2525 = vadd.f32 %v2512, %v2524
  %v2526 = vpop.f32.mrf.mxu0
  %2527 = vdwg.mxu0
  %v2528 = vmax.f32 %v2213, 0.0
  %v2529 = vmax.f32 %v2317, 0.0
  %v2530 = vmax.f32 %v2421, 0.0
  %v2531 = vmax.f32 %v2525, 0.0
  %v2532 = vpack.c.bf16 %v2528, %v2528
  %v2533 = vpack.c.bf16 %v2529, %v2529
  %v2534 = vpack.c.bf16 %v2530, %v2530
  %v2535 = vpack.c.bf16 %v2531, %v2531
  %v2536 = vld [vmem:[%s4] sm:$0xf]
  %v2537 = vld [vmem:[%s4 + $0x4] sm:$0xf]
  %v2538 = vld [vmem:[%s4 + $0x8] sm:$0xf]
  %v2539 = vld [vmem:[%s4 + $0xc] sm:$0xf]
  %v2540 = vld [vmem:[%s4 + $0x10] sm:$0xf]
  %v2541 = vld [vmem:[%s4 + $0x14] sm:$0xf]
  %v2542 = vld [vmem:[%s4 + $0x18] sm:$0xf]
  %v2543 = vld [vmem:[%s4 + $0x1c] sm:$0xf]
  %v2544 = vld [vmem:[%s4 + $0x20] sm:$0xf]
  %v2545 = vld [vmem:[%s4 + $0x24] sm:$0xf]
  %v2546 = vld [vmem:[%s4 + $0x28] sm:$0xf]
  %v2547 = vld [vmem:[%s4 + $0x2c] sm:$0xf]
  %v2548 = vld [vmem:[%s4 + $0x30] sm:$0xf]
  %v2549 = vld [vmem:[%s4 + $0x34] sm:$0xf]
  %v2550 = vld [vmem:[%s4 + $0x38] sm:$0xf]
  %v2551 = vld [vmem:[%s4 + $0x3c] sm:$0xf]
  %v2552 = vld [vmem:[%s4 + $0x40] sm:$0xf]
  %v2553 = vld [vmem:[%s4 + $0x44] sm:$0xf]
  %v2554 = vld [vmem:[%s4 + $0x48] sm:$0xf]
  %v2555 = vld [vmem:[%s4 + $0x4c] sm:$0xf]
  %v2556 = vld [vmem:[%s4 + $0x50] sm:$0xf]
  %v2557 = vld [vmem:[%s4 + $0x54] sm:$0xf]
  %v2558 = vld [vmem:[%s4 + $0x58] sm:$0xf]
  %v2559 = vld [vmem:[%s4 + $0x5c] sm:$0xf]
  %v2560 = vld [vmem:[%s4 + $0x60] sm:$0xf]
  %v2561 = vld [vmem:[%s4 + $0x64] sm:$0xf]
  %v2562 = vld [vmem:[%s4 + $0x68] sm:$0xf]
  %v2563 = vld [vmem:[%s4 + $0x6c] sm:$0xf]
  %v2564 = vld [vmem:[%s4 + $0x70] sm:$0xf]
  %v2565 = vld [vmem:[%s4 + $0x74] sm:$0xf]
  %v2566 = vld [vmem:[%s4 + $0x78] sm:$0xf]
  %v2567 = vld [vmem:[%s4 + $0x7c] sm:$0xf]
  %v2568 = vld [vmem:[%s4 + $0x80] sm:$0xf]
  %v2569 = vld [vmem:[%s4 + $0x84] sm:$0xf]
  %v2570 = vld [vmem:[%s4 + $0x88] sm:$0xf]
  %v2571 = vld [vmem:[%s4 + $0x8c] sm:$0xf]
  %v2572 = vld [vmem:[%s4 + $0x90] sm:$0xf]
  %v2573 = vld [vmem:[%s4 + $0x94] sm:$0xf]
  %v2574 = vld [vmem:[%s4 + $0x98] sm:$0xf]
  %v2575 = vld [vmem:[%s4 + $0x9c] sm:$0xf]
  %v2576 = vld [vmem:[%s4 + $0xa0] sm:$0xf]
  %v2577 = vld [vmem:[%s4 + $0xa4] sm:$0xf]
  %v2578 = vld [vmem:[%s4 + $0xa8] sm:$0xf]
  %v2579 = vld [vmem:[%s4 + $0xac] sm:$0xf]
  %v2580 = vld [vmem:[%s4 + $0xb0] sm:$0xf]
  %v2581 = vld [vmem:[%s4 + $0xb4] sm:$0xf]
  %v2582 = vld [vmem:[%s4 + $0xb8] sm:$0xf]
  %v2583 = vld [vmem:[%s4 + $0xbc] sm:$0xf]
  %v2584 = vld [vmem:[%s4 + $0xc0] sm:$0xf]
  %v2585 = vld [vmem:[%s4 + $0xc4] sm:$0xf]
  %v2586 = vld [vmem:[%s4 + $0xc8] sm:$0xf]
  %v2587 = vld [vmem:[%s4 + $0xcc] sm:$0xf]
  %v2588 = vld [vmem:[%s4 + $0xd0] sm:$0xf]
  %v2589 = vld [vmem:[%s4 + $0xd4] sm:$0xf]
  %v2590 = vld [vmem:[%s4 + $0xd8] sm:$0xf]
  %v2591 = vld [vmem:[%s4 + $0xdc] sm:$0xf]
  %v2592 = vld [vmem:[%s4 + $0xe0] sm:$0xf]
  %v2593 = vld [vmem:[%s4 + $0xe4] sm:$0xf]
  %v2594 = vld [vmem:[%s4 + $0xe8] sm:$0xf]
  %v2595 = vld [vmem:[%s4 + $0xec] sm:$0xf]
  %v2596 = vld [vmem:[%s4 + $0xf0] sm:$0xf]
  %v2597 = vld [vmem:[%s4 + $0xf4] sm:$0xf]
  %v2598 = vld [vmem:[%s4 + $0xf8] sm:$0xf]
  %v2599 = vld [vmem:[%s4 + $0xfc] sm:$0xf]
  %v2600 = vld [vmem:[%s11 + $0xc] sm:$0x1]
  %v2602 = vperm.slane %v2600, 0
  %v2668 = vunpack.c.l.b16 %v2536
  %v2669 = vunpack.c.l.b16 %v2537
  %v2670 = vunpack.c.l.b16 %v2538
  %v2671 = vunpack.c.l.b16 %v2539
  %v2672 = vunpack.c.l.b16 %v2540
  %v2673 = vunpack.c.l.b16 %v2541
  %v2674 = vunpack.c.l.b16 %v2542
  %v2675 = vunpack.c.l.b16 %v2543
  %v2676 = vunpack.c.l.b16 %v2544
  %v2677 = vunpack.c.l.b16 %v2545
  %v2678 = vunpack.c.l.b16 %v2546
  %v2679 = vunpack.c.l.b16 %v2547
  %v2680 = vunpack.c.l.b16 %v2548
  %v2681 = vunpack.c.l.b16 %v2549
  %v2682 = vunpack.c.l.b16 %v2550
  %v2683 = vunpack.c.l.b16 %v2551
  %v2684 = vunpack.c.l.b16 %v2552
  %v2685 = vunpack.c.l.b16 %v2553
  %v2686 = vunpack.c.l.b16 %v2554
  %v2687 = vunpack.c.l.b16 %v2555
  %v2688 = vunpack.c.l.b16 %v2556
  %v2689 = vunpack.c.l.b16 %v2557
  %v2690 = vunpack.c.l.b16 %v2558
  %v2691 = vunpack.c.l.b16 %v2559
  %v2692 = vunpack.c.l.b16 %v2560
  %v2693 = vunpack.c.l.b16 %v2561
  %v2694 = vunpack.c.l.b16 %v2562
  %v2695 = vunpack.c.l.b16 %v2563
  %v2696 = vunpack.c.l.b16 %v2564
  %v2697 = vunpack.c.l.b16 %v2565
  %v2698 = vunpack.c.l.b16 %v2566
  %v2699 = vunpack.c.l.b16 %v2567
  %v2700 = vunpack.c.l.b16 %v2568
  %v2701 = vunpack.c.l.b16 %v2569
  %v2702 = vunpack.c.l.b16 %v2570
  %v2703 = vunpack.c.l.b16 %v2571
  %v2704 = vunpack.c.l.b16 %v2572
  %v2705 = vunpack.c.l.b16 %v2573
  %v2706 = vunpack.c.l.b16 %v2574
  %v2707 = vunpack.c.l.b16 %v2575
  %v2708 = vunpack.c.l.b16 %v2576
  %v2709 = vunpack.c.l.b16 %v2577
  %v2710 = vunpack.c.l.b16 %v2578
  %v2711 = vunpack.c.l.b16 %v2579
  %v2712 = vunpack.c.l.b16 %v2580
  %v2713 = vunpack.c.l.b16 %v2581
  %v2714 = vunpack.c.l.b16 %v2582
  %v2715 = vunpack.c.l.b16 %v2583
  %v2716 = vunpack.c.l.b16 %v2584
  %v2717 = vunpack.c.l.b16 %v2585
  %v2718 = vunpack.c.l.b16 %v2586
  %v2719 = vunpack.c.l.b16 %v2587
  %v2720 = vunpack.c.l.b16 %v2588
  %v2721 = vunpack.c.l.b16 %v2589
  %v2722 = vunpack.c.l.b16 %v2590
  %v2723 = vunpack.c.l.b16 %v2591
  %v2724 = vunpack.c.l.b16 %v2592
  %v2725 = vunpack.c.l.b16 %v2593
  %v2726 = vunpack.c.l.b16 %v2594
  %v2727 = vunpack.c.l.b16 %v2595
  %v2728 = vunpack.c.l.b16 %v2596
  %v2729 = vunpack.c.l.b16 %v2597
  %v2730 = vunpack.c.l.b16 %v2598
  %v2731 = vunpack.c.l.b16 %v2599
  %v2732 = vpack.c.b16 %v2669, %v2668
  %v2733 = vpack.c.b16 %v2671, %v2670
  %v2734 = vpack.c.b16 %v2673, %v2672
  %v2735 = vpack.c.b16 %v2675, %v2674
  %v2736 = vpack.c.b16 %v2677, %v2676
  %v2737 = vpack.c.b16 %v2679, %v2678
  %v2738 = vpack.c.b16 %v2681, %v2680
  %v2739 = vpack.c.b16 %v2683, %v2682
  %v2740 = vpack.c.b16 %v2685, %v2684
  %v2741 = vpack.c.b16 %v2687, %v2686
  %v2742 = vpack.c.b16 %v2689, %v2688
  %v2743 = vpack.c.b16 %v2691, %v2690
  %v2744 = vpack.c.b16 %v2693, %v2692
  %v2745 = vpack.c.b16 %v2695, %v2694
  %v2746 = vpack.c.b16 %v2697, %v2696
  %v2747 = vpack.c.b16 %v2699, %v2698
  %v2748 = vpack.c.b16 %v2701, %v2700
  %v2749 = vpack.c.b16 %v2703, %v2702
  %v2750 = vpack.c.b16 %v2705, %v2704
  %v2751 = vpack.c.b16 %v2707, %v2706
  %v2752 = vpack.c.b16 %v2709, %v2708
  %v2753 = vpack.c.b16 %v2711, %v2710
  %v2754 = vpack.c.b16 %v2713, %v2712
  %v2755 = vpack.c.b16 %v2715, %v2714
  %v2756 = vpack.c.b16 %v2717, %v2716
  %v2757 = vpack.c.b16 %v2719, %v2718
  %v2758 = vpack.c.b16 %v2721, %v2720
  %v2759 = vpack.c.b16 %v2723, %v2722
  %v2760 = vpack.c.b16 %v2725, %v2724
  %v2761 = vpack.c.b16 %v2727, %v2726
  %v2762 = vpack.c.b16 %v2729, %v2728
  %v2763 = vpack.c.b16 %v2731, %v2730
  %2796 = vmatpush.bf16.msra.mxu0 %v2739
  %2797 = vmatpush.bf16.msra.mxu0 %v2738
  %2798 = vmatpush.bf16.msra.mxu0 %v2737
  %2799 = vmatpush.bf16.msra.mxu0 %v2736
  %2800 = vmatpush.bf16.msra.mxu0 %v2735
  %2801 = vmatpush.bf16.msra.mxu0 %v2734
  %2802 = vmatpush.bf16.msra.mxu0 %v2733
  %2803 = vmatpush.bf16.msra.mxu0 %v2732
  %2804 = vmatmul.bf16.gmra.mxu0 %v2532
  %v2805 = vpop.f32.mrf.mxu0
  %v2806 = vadd.f32 %v2602, %v2805
  %v2807 = vpop.f32.mrf.mxu0
  %2808 = vdwg.mxu0
  %2809 = vmatpush.bf16.msra.mxu0 %v2747
  %2810 = vmatpush.bf16.msra.mxu0 %v2746
  %2811 = vmatpush.bf16.msra.mxu0 %v2745
  %2812 = vmatpush.bf16.msra.mxu0 %v2744
  %2813 = vmatpush.bf16.msra.mxu0 %v2743
  %2814 = vmatpush.bf16.msra.mxu0 %v2742
  %2815 = vmatpush.bf16.msra.mxu0 %v2741
  %2816 = vmatpush.bf16.msra.mxu0 %v2740
  %2817 = vmatmul.bf16.gmra.mxu0 %v2533
  %v2818 = vpop.f32.mrf.mxu0
  %v2819 = vadd.f32 %v2806, %v2818
  %v2820 = vpop.f32.mrf.mxu0
  %2821 = vdwg.mxu0
  %2822 = vmatpush.bf16.msra.mxu0 %v2755
  %2823 = vmatpush.bf16.msra.mxu0 %v2754
  %2824 = vmatpush.bf16.msra.mxu0 %v2753
  %2825 = vmatpush.bf16.msra.mxu0 %v2752
  %2826 = vmatpush.bf16.msra.mxu0 %v2751
  %2827 = vmatpush.bf16.msra.mxu0 %v2750
  %2828 = vmatpush.bf16.msra.mxu0 %v2749
  %2829 = vmatpush.bf16.msra.mxu0 %v2748
  %2830 = vmatmul.bf16.gmra.mxu0 %v2534
  %v2831 = vpop.f32.mrf.mxu0
  %v2832 = vadd.f32 %v2819, %v2831
  %v2833 = vpop.f32.mrf.mxu0
  %2834 = vdwg.mxu0
  %2835 = vmatpush.bf16.msra.mxu0 %v2763
  %2836 = vmatpush.bf16.msra.mxu0 %v2762
  %2837 = vmatpush.bf16.msra.mxu0 %v2761
  %2838 = vmatpush.bf16.msra.mxu0 %v2760
  %2839 = vmatpush.bf16.msra.mxu0 %v2759
  %2840 = vmatpush.bf16.msra.mxu0 %v2758
  %2841 = vmatpush.bf16.msra.mxu0 %v2757
  %2842 = vmatpush.bf16.msra.mxu0 %v2756
  %2843 = vmatmul.bf16.gmra.mxu0 %v2535
  %v2844 = vpop.f32.mrf.mxu0
  %v2845 = vadd.f32 %v2832, %v2844
  %v2846 = vpop.f32.mrf.mxu0
  %2847 = vdwg.mxu0
  %v2848 = vmax.f32 %v2845, 0.0
  %v2849 = vld [vmem:[%s1] sm:$0xff]
  %v2850 = vpack.c.bf16 %v2849, %v2849
  %v2851 = vld [vmem:[%s5] sm:$0xff]
  %v2852 = vld [vmem:[%s5 + $0x8] sm:$0xff]
  %v2853 = vld [vmem:[%s5 + $0x10] sm:$0xff]
  %v2854 = vld [vmem:[%s5 + $0x18] sm:$0xff]
  %v2855 = vld [vmem:[%s5 + $0x20] sm:$0xff]
  %v2856 = vld [vmem:[%s5 + $0x28] sm:$0xff]
  %v2857 = vld [vmem:[%s5 + $0x30] sm:$0xff]
  %v2858 = vld [vmem:[%s5 + $0x38] sm:$0xff]
  %v2859 = vld [vmem:[%s5 + $0x40] sm:$0xff]
  %v2860 = vld [vmem:[%s5 + $0x48] sm:$0xff]
  %v2861 = vld [vmem:[%s5 + $0x50] sm:$0xff]
  %v2862 = vld [vmem:[%s5 + $0x58] sm:$0xff]
  %v2863 = vld [vmem:[%s5 + $0x60] sm:$0xff]
  %v2864 = vld [vmem:[%s5 + $0x68] sm:$0xff]
  %v2865 = vld [vmem:[%s5 + $0x70] sm:$0xff]
  %v2866 = vld [vmem:[%s5 + $0x78] sm:$0xff]
  %v2867 = vld [vmem:[%s5 + $0x80] sm:$0xff]
  %v2868 = vld [vmem:[%s5 + $0x88] sm:$0xff]
  %v2869 = vld [vmem:[%s5 + $0x90] sm:$0xff]
  %v2870 = vld [vmem:[%s5 + $0x98] sm:$0xff]
  %v2871 = vld [vmem:[%s5 + $0xa0] sm:$0xff]
  %v2872 = vld [vmem:[%s5 + $0xa8] sm:$0xff]
  %v2873 = vld [vmem:[%s5 + $0xb0] sm:$0xff]
  %v2874 = vld [vmem:[%s5 + $0xb8] sm:$0xff]
  %v2875 = vld [vmem:[%s5 + $0xc0] sm:$0xff]
  %v2876 = vld [vmem:[%s5 + $0xc8] sm:$0xff]
  %v2877 = vld [vmem:[%s5 + $0xd0] sm:$0xff]
  %v2878 = vld [vmem:[%s5 + $0xd8] sm:$0xff]
  %v2879 = vld [vmem:[%s5 + $0xe0] sm:$0xff]
  %v2880 = vld [vmem:[%s5 + $0xe8] sm:$0xff]
  %v2881 = vld [vmem:[%s5 + $0xf0] sm:$0xff]
  %v2882 = vld [vmem:[%s5 + $0xf8] sm:$0xff]
  %v2883 = vld [vmem:[%s11 + $0xd] sm:$0xf]
  %v2885 = vperm.slane %v2883, 0
  %v2886 = vperm.slane %v2883, 1
  %v2887 = vperm.slane %v2883, 2
  %v2888 = vperm.slane %v2883, 3
  %v2925 = vunpack.c.l.b16 %v2851
  %v2926 = vunpack.c.h.b16 %v2851
  %v2927 = vunpack.c.l.b16 %v2852
  %v2928 = vunpack.c.h.b16 %v2852
  %v2929 = vunpack.c.l.b16 %v2853
  %v2930 = vunpack.c.h.b16 %v2853
  %v2931 = vunpack.c.l.b16 %v2854
  %v2932 = vunpack.c.h.b16 %v2854
  %v2933 = vunpack.c.l.b16 %v2855
  %v2934 = vunpack.c.h.b16 %v2855
  %v2935 = vunpack.c.l.b16 %v2856
  %v2936 = vunpack.c.h.b16 %v2856
  %v2937 = vunpack.c.l.b16 %v2857
  %v2938 = vunpack.c.h.b16 %v2857
  %v2939 = vunpack.c.l.b16 %v2858
  %v2940 = vunpack.c.h.b16 %v2858
  %v2941 = vunpack.c.l.b16 %v2859
  %v2942 = vunpack.c.h.b16 %v2859
  %v2943 = vunpack.c.l.b16 %v2860
  %v2944 = vunpack.c.h.b16 %v2860
  %v2945 = vunpack.c.l.b16 %v2861
  %v2946 = vunpack.c.h.b16 %v2861
  %v2947 = vunpack.c.l.b16 %v2862
  %v2948 = vunpack.c.h.b16 %v2862
  %v2949 = vunpack.c.l.b16 %v2863
  %v2950 = vunpack.c.h.b16 %v2863
  %v2951 = vunpack.c.l.b16 %v2864
  %v2952 = vunpack.c.h.b16 %v2864
  %v2953 = vunpack.c.l.b16 %v2865
  %v2954 = vunpack.c.h.b16 %v2865
  %v2955 = vunpack.c.l.b16 %v2866
  %v2956 = vunpack.c.h.b16 %v2866
  %v2957 = vunpack.c.l.b16 %v2867
  %v2958 = vunpack.c.h.b16 %v2867
  %v2959 = vunpack.c.l.b16 %v2868
  %v2960 = vunpack.c.h.b16 %v2868
  %v2961 = vunpack.c.l.b16 %v2869
  %v2962 = vunpack.c.h.b16 %v2869
  %v2963 = vunpack.c.l.b16 %v2870
  %v2964 = vunpack.c.h.b16 %v2870
  %v2965 = vunpack.c.l.b16 %v2871
  %v2966 = vunpack.c.h.b16 %v2871
  %v2967 = vunpack.c.l.b16 %v2872
  %v2968 = vunpack.c.h.b16 %v2872
  %v2969 = vunpack.c.l.b16 %v2873
  %v2970 = vunpack.c.h.b16 %v2873
  %v2971 = vunpack.c.l.b16 %v2874
  %v2972 = vunpack.c.h.b16 %v2874
  %v2973 = vunpack.c.l.b16 %v2875
  %v2974 = vunpack.c.h.b16 %v2875
  %v2975 = vunpack.c.l.b16 %v2876
  %v2976 = vunpack.c.h.b16 %v2876
  %v2977 = vunpack.c.l.b16 %v2877
  %v2978 = vunpack.c.h.b16 %v2877
  %v2979 = vunpack.c.l.b16 %v2878
  %v2980 = vunpack.c.h.b16 %v2878
  %v2981 = vunpack.c.l.b16 %v2879
  %v2982 = vunpack.c.h.b16 %v2879
  %v2983 = vunpack.c.l.b16 %v2880
  %v2984 = vunpack.c.h.b16 %v2880
  %v2985 = vunpack.c.l.b16 %v2881
  %v2986 = vunpack.c.h.b16 %v2881
  %v2987 = vunpack.c.l.b16 %v2882
  %v2988 = vunpack.c.h.b16 %v2882
  %v2989 = vpack.c.b16 %v2929, %v2925
  %v2990 = vpack.c.b16 %v2930, %v2926
  %v2991 = vpack.c.b16 %v2931, %v2927
  %v2992 = vpack.c.b16 %v2932, %v2928
  %v2993 = vpack.c.b16 %v2937, %v2933
  %v2994 = vpack.c.b16 %v2938, %v2934
  %v2995 = vpack.c.b16 %v2939, %v2935
  %v2996 = vpack.c.b16 %v2940, %v2936
  %v2997 = vpack.c.b16 %v2945, %v2941
  %v2998 = vpack.c.b16 %v2946, %v2942
  %v2999 = vpack.c.b16 %v2947, %v2943
  %v3000 = vpack.c.b16 %v2948, %v2944
  %v3001 = vpack.c.b16 %v2953, %v2949
  %v3002 = vpack.c.b16 %v2954, %v2950
  %v3003 = vpack.c.b16 %v2955, %v2951
  %v3004 = vpack.c.b16 %v2956, %v2952
  %v3005 = vpack.c.b16 %v2961, %v2957
  %v3006 = vpack.c.b16 %v2962, %v2958
  %v3007 = vpack.c.b16 %v2963, %v2959
  %v3008 = vpack.c.b16 %v2964, %v2960
  %v3009 = vpack.c.b16 %v2969, %v2965
  %v3010 = vpack.c.b16 %v2970, %v2966
  %v3011 = vpack.c.b16 %v2971, %v2967
  %v3012 = vpack.c.b16 %v2972, %v2968
  %v3013 = vpack.c.b16 %v2977, %v2973
  %v3014 = vpack.c.b16 %v2978, %v2974
  %v3015 = vpack.c.b16 %v2979, %v2975
  %v3016 = vpack.c.b16 %v2980, %v2976
  %v3017 = vpack.c.b16 %v2985, %v2981
  %v3018 = vpack.c.b16 %v2986, %v2982
  %v3019 = vpack.c.b16 %v2987, %v2983
  %v3020 = vpack.c.b16 %v2988, %v2984
  %3053 = vmatpush.bf16.msra.mxu0 %v3017
  %3054 = vmatpush.bf16.msra.mxu0 %v3013
  %3055 = vmatpush.bf16.msra.mxu0 %v3009
  %3056 = vmatpush.bf16.msra.mxu0 %v3005
  %3057 = vmatpush.bf16.msra.mxu0 %v3001
  %3058 = vmatpush.bf16.msra.mxu0 %v2997
  %3059 = vmatpush.bf16.msra.mxu0 %v2993
  %3060 = vmatpush.bf16.msra.mxu0 %v2989
  %3061 = vmatmul.bf16.gmra.mxu0 %v2850
  %v3062 = vpop.f32.mrf.mxu0
  %v3063 = vadd.f32 %v2885, %v3062
  %v3064 = vpop.f32.mrf.mxu0
  %3065 = vdwg.mxu0
  %3066 = vmatpush.bf16.msra.mxu0 %v3018
  %3067 = vmatpush.bf16.msra.mxu0 %v3014
  %3068 = vmatpush.bf16.msra.mxu0 %v3010
  %3069 = vmatpush.bf16.msra.mxu0 %v3006
  %3070 = vmatpush.bf16.msra.mxu0 %v3002
  %3071 = vmatpush.bf16.msra.mxu0 %v2998
  %3072 = vmatpush.bf16.msra.mxu0 %v2994
  %3073 = vmatpush.bf16.msra.mxu0 %v2990
  %3074 = vmatmul.bf16.gmra.mxu0 %v2850
  %v3075 = vpop.f32.mrf.mxu0
  %v3076 = vadd.f32 %v2886, %v3075
  %v3077 = vpop.f32.mrf.mxu0
  %3078 = vdwg.mxu0
  %3079 = vmatpush.bf16.msra.mxu0 %v3019
  %3080 = vmatpush.bf16.msra.mxu0 %v3015
  %3081 = vmatpush.bf16.msra.mxu0 %v3011
  %3082 = vmatpush.bf16.msra.mxu0 %v3007
  %3083 = vmatpush.bf16.msra.mxu0 %v3003
  %3084 = vmatpush.bf16.msra.mxu0 %v2999
  %3085 = vmatpush.bf16.msra.mxu0 %v2995
  %3086 = vmatpush.bf16.msra.mxu0 %v2991
  %3087 = vmatmul.bf16.gmra.mxu0 %v2850
  %v3088 = vpop.f32.mrf.mxu0
  %v3089 = vadd.f32 %v2887, %v3088
  %v3090 = vpop.f32.mrf.mxu0
  %3091 = vdwg.mxu0
  %3092 = vmatpush.bf16.msra.mxu0 %v3020
  %3093 = vmatpush.bf16.msra.mxu0 %v3016
  %3094 = vmatpush.bf16.msra.mxu0 %v3012
  %3095 = vmatpush.bf16.msra.mxu0 %v3008
  %3096 = vmatpush.bf16.msra.mxu0 %v3004
  %3097 = vmatpush.bf16.msra.mxu0 %v3000
  %3098 = vmatpush.bf16.msra.mxu0 %v2996
  %3099 = vmatpush.bf16.msra.mxu0 %v2992
  %3100 = vmatmul.bf16.gmra.mxu0 %v2850
  %v3101 = vpop.f32.mrf.mxu0
  %v3102 = vadd.f32 %v2888, %v3101
  %v3103 = vpop.f32.mrf.mxu0
  %3104 = vdwg.mxu0
  %v3105 = vmax.f32 %v3063, 0.0
  %v3106 = vmax.f32 %v3076, 0.0
  %v3107 = vmax.f32 %v3089, 0.0
  %v3108 = vmax.f32 %v3102, 0.0
  %v3109 = vpack.c.bf16 %v3105, %v3105
  %v3110 = vpack.c.bf16 %v3106, %v3106
  %v3111 = vpack.c.bf16 %v3107, %v3107
  %v3112 = vpack.c.bf16 %v3108, %v3108
  %v3113 = vld [vmem:[%s6] sm:$0xf]
  %v3114 = vld [vmem:[%s6 + $0x4] sm:$0xf]
  %v3115 = vld [vmem:[%s6 + $0x8] sm:$0xf]
  %v3116 = vld [vmem:[%s6 + $0xc] sm:$0xf]
  %v3117 = vld [vmem:[%s6 + $0x10] sm:$0xf]
  %v3118 = vld [vmem:[%s6 + $0x14] sm:$0xf]
  %v3119 = vld [vmem:[%s6 + $0x18] sm:$0xf]
  %v3120 = vld [vmem:[%s6 + $0x1c] sm:$0xf]
  %v3121 = vld [vmem:[%s6 + $0x20] sm:$0xf]
  %v3122 = vld [vmem:[%s6 + $0x24] sm:$0xf]
  %v3123 = vld [vmem:[%s6 + $0x28] sm:$0xf]
  %v3124 = vld [vmem:[%s6 + $0x2c] sm:$0xf]
  %v3125 = vld [vmem:[%s6 + $0x30] sm:$0xf]
  %v3126 = vld [vmem:[%s6 + $0x34] sm:$0xf]
  %v3127 = vld [vmem:[%s6 + $0x38] sm:$0xf]
  %v3128 = vld [vmem:[%s6 + $0x3c] sm:$0xf]
  %v3129 = vld [vmem:[%s6 + $0x40] sm:$0xf]
  %v3130 = vld [vmem:[%s6 + $0x44] sm:$0xf]
  %v3131 = vld [vmem:[%s6 + $0x48] sm:$0xf]
  %v3132 = vld [vmem:[%s6 + $0x4c] sm:$0xf]
  %v3133 = vld [vmem:[%s6 + $0x50] sm:$0xf]
  %v3134 = vld [vmem:[%s6 + $0x54] sm:$0xf]
  %v3135 = vld [vmem:[%s6 + $0x58] sm:$0xf]
  %v3136 = vld [vmem:[%s6 + $0x5c] sm:$0xf]
  %v3137 = vld [vmem:[%s6 + $0x60] sm:$0xf]
  %v3138 = vld [vmem:[%s6 + $0x64] sm:$0xf]
  %v3139 = vld [vmem:[%s6 + $0x68] sm:$0xf]
  %v3140 = vld [vmem:[%s6 + $0x6c] sm:$0xf]
  %v3141 = vld [vmem:[%s6 + $0x70] sm:$0xf]
  %v3142 = vld [vmem:[%s6 + $0x74] sm:$0xf]
  %v3143 = vld [vmem:[%s6 + $0x78] sm:$0xf]
  %v3144 = vld [vmem:[%s6 + $0x7c] sm:$0xf]
  %v3145 = vld [vmem:[%s6 + $0x80] sm:$0xf]
  %v3146 = vld [vmem:[%s6 + $0x84] sm:$0xf]
  %v3147 = vld [vmem:[%s6 + $0x88] sm:$0xf]
  %v3148 = vld [vmem:[%s6 + $0x8c] sm:$0xf]
  %v3149 = vld [vmem:[%s6 + $0x90] sm:$0xf]
  %v3150 = vld [vmem:[%s6 + $0x94] sm:$0xf]
  %v3151 = vld [vmem:[%s6 + $0x98] sm:$0xf]
  %v3152 = vld [vmem:[%s6 + $0x9c] sm:$0xf]
  %v3153 = vld [vmem:[%s6 + $0xa0] sm:$0xf]
  %v3154 = vld [vmem:[%s6 + $0xa4] sm:$0xf]
  %v3155 = vld [vmem:[%s6 + $0xa8] sm:$0xf]
  %v3156 = vld [vmem:[%s6 + $0xac] sm:$0xf]
  %v3157 = vld [vmem:[%s6 + $0xb0] sm:$0xf]
  %v3158 = vld [vmem:[%s6 + $0xb4] sm:$0xf]
  %v3159 = vld [vmem:[%s6 + $0xb8] sm:$0xf]
  %v3160 = vld [vmem:[%s6 + $0xbc] sm:$0xf]
  %v3161 = vld [vmem:[%s6 + $0xc0] sm:$0xf]
  %v3162 = vld [vmem:[%s6 + $0xc4] sm:$0xf]
  %v3163 = vld [vmem:[%s6 + $0xc8] sm:$0xf]
  %v3164 = vld [vmem:[%s6 + $0xcc] sm:$0xf]
  %v3165 = vld [vmem:[%s6 + $0xd0] sm:$0xf]
  %v3166 = vld [vmem:[%s6 + $0xd4] sm:$0xf]
  %v3167 = vld [vmem:[%s6 + $0xd8] sm:$0xf]
  %v3168 = vld [vmem:[%s6 + $0xdc] sm:$0xf]
  %v3169 = vld [vmem:[%s6 + $0xe0] sm:$0xf]
  %v3170 = vld [vmem:[%s6 + $0xe4] sm:$0xf]
  %v3171 = vld [vmem:[%s6 + $0xe8] sm:$0xf]
  %v3172 = vld [vmem:[%s6 + $0xec] sm:$0xf]
  %v3173 = vld [vmem:[%s6 + $0xf0] sm:$0xf]
  %v3174 = vld [vmem:[%s6 + $0xf4] sm:$0xf]
  %v3175 = vld [vmem:[%s6 + $0xf8] sm:$0xf]
  %v3176 = vld [vmem:[%s6 + $0xfc] sm:$0xf]
  %v3177 = vld [vmem:[%s11 + $0x11] sm:$0x1]
  %v3179 = vperm.slane %v3177, 0
  %v3245 = vunpack.c.l.b16 %v3113
  %v3246 = vunpack.c.l.b16 %v3114
  %v3247 = vunpack.c.l.b16 %v3115
  %v3248 = vunpack.c.l.b16 %v3116
  %v3249 = vunpack.c.l.b16 %v3117
  %v3250 = vunpack.c.l.b16 %v3118
  %v3251 = vunpack.c.l.b16 %v3119
  %v3252 = vunpack.c.l.b16 %v3120
  %v3253 = vunpack.c.l.b16 %v3121
  %v3254 = vunpack.c.l.b16 %v3122
  %v3255 = vunpack.c.l.b16 %v3123
  %v3256 = vunpack.c.l.b16 %v3124
  %v3257 = vunpack.c.l.b16 %v3125
  %v3258 = vunpack.c.l.b16 %v3126
  %v3259 = vunpack.c.l.b16 %v3127
  %v3260 = vunpack.c.l.b16 %v3128
  %v3261 = vunpack.c.l.b16 %v3129
  %v3262 = vunpack.c.l.b16 %v3130
  %v3263 = vunpack.c.l.b16 %v3131
  %v3264 = vunpack.c.l.b16 %v3132
  %v3265 = vunpack.c.l.b16 %v3133
  %v3266 = vunpack.c.l.b16 %v3134
  %v3267 = vunpack.c.l.b16 %v3135
  %v3268 = vunpack.c.l.b16 %v3136
  %v3269 = vunpack.c.l.b16 %v3137
  %v3270 = vunpack.c.l.b16 %v3138
  %v3271 = vunpack.c.l.b16 %v3139
  %v3272 = vunpack.c.l.b16 %v3140
  %v3273 = vunpack.c.l.b16 %v3141
  %v3274 = vunpack.c.l.b16 %v3142
  %v3275 = vunpack.c.l.b16 %v3143
  %v3276 = vunpack.c.l.b16 %v3144
  %v3277 = vunpack.c.l.b16 %v3145
  %v3278 = vunpack.c.l.b16 %v3146
  %v3279 = vunpack.c.l.b16 %v3147
  %v3280 = vunpack.c.l.b16 %v3148
  %v3281 = vunpack.c.l.b16 %v3149
  %v3282 = vunpack.c.l.b16 %v3150
  %v3283 = vunpack.c.l.b16 %v3151
  %v3284 = vunpack.c.l.b16 %v3152
  %v3285 = vunpack.c.l.b16 %v3153
  %v3286 = vunpack.c.l.b16 %v3154
  %v3287 = vunpack.c.l.b16 %v3155
  %v3288 = vunpack.c.l.b16 %v3156
  %v3289 = vunpack.c.l.b16 %v3157
  %v3290 = vunpack.c.l.b16 %v3158
  %v3291 = vunpack.c.l.b16 %v3159
  %v3292 = vunpack.c.l.b16 %v3160
  %v3293 = vunpack.c.l.b16 %v3161
  %v3294 = vunpack.c.l.b16 %v3162
  %v3295 = vunpack.c.l.b16 %v3163
  %v3296 = vunpack.c.l.b16 %v3164
  %v3297 = vunpack.c.l.b16 %v3165
  %v3298 = vunpack.c.l.b16 %v3166
  %v3299 = vunpack.c.l.b16 %v3167
  %v3300 = vunpack.c.l.b16 %v3168
  %v3301 = vunpack.c.l.b16 %v3169
  %v3302 = vunpack.c.l.b16 %v3170
  %v3303 = vunpack.c.l.b16 %v3171
  %v3304 = vunpack.c.l.b16 %v3172
  %v3305 = vunpack.c.l.b16 %v3173
  %v3306 = vunpack.c.l.b16 %v3174
  %v3307 = vunpack.c.l.b16 %v3175
  %v3308 = vunpack.c.l.b16 %v3176
  %v3309 = vpack.c.b16 %v3246, %v3245
  %v3310 = vpack.c.b16 %v3248, %v3247
  %v3311 = vpack.c.b16 %v3250, %v3249
  %v3312 = vpack.c.b16 %v3252, %v3251
  %v3313 = vpack.c.b16 %v3254, %v3253
  %v3314 = vpack.c.b16 %v3256, %v3255
  %v3315 = vpack.c.b16 %v3258, %v3257
  %v3316 = vpack.c.b16 %v3260, %v3259
  %v3317 = vpack.c.b16 %v3262, %v3261
  %v3318 = vpack.c.b16 %v3264, %v3263
  %v3319 = vpack.c.b16 %v3266, %v3265
  %v3320 = vpack.c.b16 %v3268, %v3267
  %v3321 = vpack.c.b16 %v3270, %v3269
  %v3322 = vpack.c.b16 %v3272, %v3271
  %v3323 = vpack.c.b16 %v3274, %v3273
  %v3324 = vpack.c.b16 %v3276, %v3275
  %v3325 = vpack.c.b16 %v3278, %v3277
  %v3326 = vpack.c.b16 %v3280, %v3279
  %v3327 = vpack.c.b16 %v3282, %v3281
  %v3328 = vpack.c.b16 %v3284, %v3283
  %v3329 = vpack.c.b16 %v3286, %v3285
  %v3330 = vpack.c.b16 %v3288, %v3287
  %v3331 = vpack.c.b16 %v3290, %v3289
  %v3332 = vpack.c.b16 %v3292, %v3291
  %v3333 = vpack.c.b16 %v3294, %v3293
  %v3334 = vpack.c.b16 %v3296, %v3295
  %v3335 = vpack.c.b16 %v3298, %v3297
  %v3336 = vpack.c.b16 %v3300, %v3299
  %v3337 = vpack.c.b16 %v3302, %v3301
  %v3338 = vpack.c.b16 %v3304, %v3303
  %v3339 = vpack.c.b16 %v3306, %v3305
  %v3340 = vpack.c.b16 %v3308, %v3307
  %3373 = vmatpush.bf16.msra.mxu0 %v3316
  %3374 = vmatpush.bf16.msra.mxu0 %v3315
  %3375 = vmatpush.bf16.msra.mxu0 %v3314
  %3376 = vmatpush.bf16.msra.mxu0 %v3313
  %3377 = vmatpush.bf16.msra.mxu0 %v3312
  %3378 = vmatpush.bf16.msra.mxu0 %v3311
  %3379 = vmatpush.bf16.msra.mxu0 %v3310
  %3380 = vmatpush.bf16.msra.mxu0 %v3309
  %3381 = vmatmul.bf16.gmra.mxu0 %v3109
  %v3382 = vpop.f32.mrf.mxu0
  %v3383 = vadd.f32 %v3179, %v3382
  %v3384 = vpop.f32.mrf.mxu0
  %3385 = vdwg.mxu0
  %3386 = vmatpush.bf16.msra.mxu0 %v3324
  %3387 = vmatpush.bf16.msra.mxu0 %v3323
  %3388 = vmatpush.bf16.msra.mxu0 %v3322
  %3389 = vmatpush.bf16.msra.mxu0 %v3321
  %3390 = vmatpush.bf16.msra.mxu0 %v3320
  %3391 = vmatpush.bf16.msra.mxu0 %v3319
  %3392 = vmatpush.bf16.msra.mxu0 %v3318
  %3393 = vmatpush.bf16.msra.mxu0 %v3317
  %3394 = vmatmul.bf16.gmra.mxu0 %v3110
  %v3395 = vpop.f32.mrf.mxu0
  %v3396 = vadd.f32 %v3383, %v3395
  %v3397 = vpop.f32.mrf.mxu0
  %3398 = vdwg.mxu0
  %3399 = vmatpush.bf16.msra.mxu0 %v3332
  %3400 = vmatpush.bf16.msra.mxu0 %v3331
  %3401 = vmatpush.bf16.msra.mxu0 %v3330
  %3402 = vmatpush.bf16.msra.mxu0 %v3329
  %3403 = vmatpush.bf16.msra.mxu0 %v3328
  %3404 = vmatpush.bf16.msra.mxu0 %v3327
  %3405 = vmatpush.bf16.msra.mxu0 %v3326
  %3406 = vmatpush.bf16.msra.mxu0 %v3325
  %3407 = vmatmul.bf16.gmra.mxu0 %v3111
  %v3408 = vpop.f32.mrf.mxu0
  %v3409 = vadd.f32 %v3396, %v3408
  %v3410 = vpop.f32.mrf.mxu0
  %3411 = vdwg.mxu0
  %3412 = vmatpush.bf16.msra.mxu0 %v3340
  %3413 = vmatpush.bf16.msra.mxu0 %v3339
  %3414 = vmatpush.bf16.msra.mxu0 %v3338
  %3415 = vmatpush.bf16.msra.mxu0 %v3337
  %3416 = vmatpush.bf16.msra.mxu0 %v3336
  %3417 = vmatpush.bf16.msra.mxu0 %v3335
  %3418 = vmatpush.bf16.msra.mxu0 %v3334
  %3419 = vmatpush.bf16.msra.mxu0 %v3333
  %3420 = vmatmul.bf16.gmra.mxu0 %v3112
  %v3421 = vpop.f32.mrf.mxu0
  %v3422 = vadd.f32 %v3409, %v3421
  %v3423 = vpop.f32.mrf.mxu0
  %3424 = vdwg.mxu0
  %v3425 = vmax.f32 %v3422, 0.0
  %v3426 = vpack.c.bf16 %v2848, %v2848
  %v3427 = vld [vmem:[%s7] sm:$0xff]
  %v3428 = vld [vmem:[%s7 + $0x8] sm:$0xff]
  %v3429 = vld [vmem:[%s7 + $0x10] sm:$0xff]
  %v3430 = vld [vmem:[%s7 + $0x18] sm:$0xff]
  %v3431 = vld [vmem:[%s7 + $0x20] sm:$0xff]
  %v3432 = vld [vmem:[%s7 + $0x28] sm:$0xff]
  %v3433 = vld [vmem:[%s7 + $0x30] sm:$0xff]
  %v3434 = vld [vmem:[%s7 + $0x38] sm:$0xff]
  %v3435 = vpack.c.bf16 %v3425, %v3425
  %v3436 = vld [vmem:[%s8] sm:$0xff]
  %v3437 = vld [vmem:[%s8 + $0x8] sm:$0xff]
  %v3438 = vld [vmem:[%s8 + $0x10] sm:$0xff]
  %v3439 = vld [vmem:[%s8 + $0x18] sm:$0xff]
  %v3440 = vld [vmem:[%s8 + $0x20] sm:$0xff]
  %v3441 = vld [vmem:[%s8 + $0x28] sm:$0xff]
  %v3442 = vld [vmem:[%s8 + $0x30] sm:$0xff]
  %v3443 = vld [vmem:[%s8 + $0x38] sm:$0xff]
  %v3452 = vunpack.c.l.b16 %v3436
  %v3453 = vunpack.c.h.b16 %v3436
  %v3454 = vunpack.c.l.b16 %v3437
  %v3455 = vunpack.c.h.b16 %v3437
  %v3456 = vunpack.c.l.b16 %v3438
  %v3457 = vunpack.c.h.b16 %v3438
  %v3458 = vunpack.c.l.b16 %v3439
  %v3459 = vunpack.c.h.b16 %v3439
  %v3460 = vunpack.c.l.b16 %v3440
  %v3461 = vunpack.c.h.b16 %v3440
  %v3462 = vunpack.c.l.b16 %v3441
  %v3463 = vunpack.c.h.b16 %v3441
  %v3464 = vunpack.c.l.b16 %v3442
  %v3465 = vunpack.c.h.b16 %v3442
  %v3466 = vunpack.c.l.b16 %v3443
  %v3467 = vunpack.c.h.b16 %v3443
  %v3468 = vpack.c.b16 %v3454, %v3452
  %v3469 = vpack.c.b16 %v3455, %v3453
  %v3470 = vpack.c.b16 %v3458, %v3456
  %v3471 = vpack.c.b16 %v3459, %v3457
  %v3472 = vpack.c.b16 %v3462, %v3460
  %v3473 = vpack.c.b16 %v3463, %v3461
  %v3474 = vpack.c.b16 %v3466, %v3464
  %v3475 = vpack.c.b16 %v3467, %v3465
  %vm3484 = vcmask 523264
  %v3486 = vsel %vm3484, %v3435, 0
  %3488 = vmatpush.bf16.msra.mxu0 0
  %3489 = vmatpush.bf16.msra.mxu0 0
  %3490 = vmatpush.bf16.msra.mxu0 0
  %3491 = vmatpush.bf16.msra.mxu0 0
  %3492 = vmatpush.bf16.msra.mxu0 %v3474
  %3493 = vmatpush.bf16.msra.mxu0 %v3472
  %3494 = vmatpush.bf16.msra.mxu0 %v3470
  %3495 = vmatpush.bf16.msra.mxu0 %v3468
  %3496 = vmatmul.bf16.gmra.mxu0 %v3486
  %v3497 = vpop.f32.mrf.mxu0
  %v3498 = vadd.f32 0.0, %v3497
  %v3499 = vpop.f32.mrf.mxu0
  %3500 = vdwg.mxu0
  %3501 = vmatpush.bf16.msra.mxu0 0
  %3502 = vmatpush.bf16.msra.mxu0 0
  %3503 = vmatpush.bf16.msra.mxu0 0
  %3504 = vmatpush.bf16.msra.mxu0 0
  %3505 = vmatpush.bf16.msra.mxu0 %v3475
  %3506 = vmatpush.bf16.msra.mxu0 %v3473
  %3507 = vmatpush.bf16.msra.mxu0 %v3471
  %3508 = vmatpush.bf16.msra.mxu0 %v3469
  %3509 = vmatmul.bf16.gmra.mxu0 %v3486
  %v3510 = vpop.f32.mrf.mxu0
  %v3511 = vadd.f32 0.0, %v3510
  %v3512 = vpop.f32.mrf.mxu0
  %3513 = vdwg.mxu0
  %v3522 = vunpack.c.l.b16 %v3427
  %v3523 = vunpack.c.h.b16 %v3427
  %v3524 = vunpack.c.l.b16 %v3428
  %v3525 = vunpack.c.h.b16 %v3428
  %v3526 = vunpack.c.l.b16 %v3429
  %v3527 = vunpack.c.h.b16 %v3429
  %v3528 = vunpack.c.l.b16 %v3430
  %v3529 = vunpack.c.h.b16 %v3430
  %v3530 = vunpack.c.l.b16 %v3431
  %v3531 = vunpack.c.h.b16 %v3431
  %v3532 = vunpack.c.l.b16 %v3432
  %v3533 = vunpack.c.h.b16 %v3432
  %v3534 = vunpack.c.l.b16 %v3433
  %v3535 = vunpack.c.h.b16 %v3433
  %v3536 = vunpack.c.l.b16 %v3434
  %v3537 = vunpack.c.h.b16 %v3434
  %v3538 = vpack.c.b16 %v3524, %v3522
  %v3539 = vpack.c.b16 %v3525, %v3523
  %v3540 = vpack.c.b16 %v3528, %v3526
  %v3541 = vpack.c.b16 %v3529, %v3527
  %v3542 = vpack.c.b16 %v3532, %v3530
  %v3543 = vpack.c.b16 %v3533, %v3531
  %v3544 = vpack.c.b16 %v3536, %v3534
  %v3545 = vpack.c.b16 %v3537, %v3535
  %v3555 = vsel %vm3484, %v3426, 0
  %3557 = vmatpush.bf16.msra.mxu0 0
  %3558 = vmatpush.bf16.msra.mxu0 0
  %3559 = vmatpush.bf16.msra.mxu0 0
  %3560 = vmatpush.bf16.msra.mxu0 0
  %3561 = vmatpush.bf16.msra.mxu0 %v3544
  %3562 = vmatpush.bf16.msra.mxu0 %v3542
  %3563 = vmatpush.bf16.msra.mxu0 %v3540
  %3564 = vmatpush.bf16.msra.mxu0 %v3538
  %3565 = vmatmul.bf16.gmra.mxu0 %v3555
  %v3566 = vpop.f32.mrf.mxu0
  %v3567 = vadd.f32 %v3498, %v3566
  %v3568 = vpop.f32.mrf.mxu0
  %3569 = vdwg.mxu0
  %3570 = vmatpush.bf16.msra.mxu0 0
  %3571 = vmatpush.bf16.msra.mxu0 0
  %3572 = vmatpush.bf16.msra.mxu0 0
  %3573 = vmatpush.bf16.msra.mxu0 0
  %3574 = vmatpush.bf16.msra.mxu0 %v3545
  %3575 = vmatpush.bf16.msra.mxu0 %v3543
  %3576 = vmatpush.bf16.msra.mxu0 %v3541
  %3577 = vmatpush.bf16.msra.mxu0 %v3539
  %3578 = vmatmul.bf16.gmra.mxu0 %v3555
  %v3579 = vpop.f32.mrf.mxu0
  %v3580 = vadd.f32 %v3511, %v3579
  %v3581 = vpop.f32.mrf.mxu0
  %3582 = vdwg.mxu0
  %v3583 = vld [vmem:[%s11 + $0x12] sm:$0x3]
  %v3585 = vperm.slane %v3583, 0
  %v3586 = vperm.slane %v3583, 1
  %v3589 = vadd.f32 %v3567, %v3585
  %v3590 = vadd.f32 %v3580, %v3586
  %v3591 = vmax.f32 %v3589, 0.0
  %v3592 = vmax.f32 %v3590, 0.0
  %v3593 = vpack.c.bf16 %v3591, %v3591
  %v3594 = vpack.c.bf16 %v3592, %v3592
  %v3595 = vld [vmem:[%s9] sm:$0xf]
  %v3596 = vld [vmem:[%s9 + $0x4] sm:$0xf]
  %v3597 = vld [vmem:[%s9 + $0x8] sm:$0xf]
  %v3598 = vld [vmem:[%s9 + $0xc] sm:$0xf]
  %v3599 = vld [vmem:[%s9 + $0x10] sm:$0xf]
  %v3600 = vld [vmem:[%s9 + $0x14] sm:$0xf]
  %v3601 = vld [vmem:[%s9 + $0x18] sm:$0xf]
  %v3602 = vld [vmem:[%s9 + $0x1c] sm:$0xf]
  %v3603 = vld [vmem:[%s9 + $0x20] sm:$0xf]
  %v3604 = vld [vmem:[%s9 + $0x24] sm:$0xf]
  %v3605 = vld [vmem:[%s9 + $0x28] sm:$0xf]
  %v3606 = vld [vmem:[%s9 + $0x2c] sm:$0xf]
  %v3607 = vld [vmem:[%s9 + $0x30] sm:$0xf]
  %v3608 = vld [vmem:[%s9 + $0x34] sm:$0xf]
  %v3609 = vld [vmem:[%s9 + $0x38] sm:$0xf]
  %v3610 = vld [vmem:[%s9 + $0x3c] sm:$0xf]
  %v3611 = vld [vmem:[%s9 + $0x40] sm:$0xf]
  %v3612 = vld [vmem:[%s9 + $0x44] sm:$0xf]
  %v3613 = vld [vmem:[%s9 + $0x48] sm:$0xf]
  %v3614 = vld [vmem:[%s9 + $0x4c] sm:$0xf]
  %v3615 = vld [vmem:[%s9 + $0x50] sm:$0xf]
  %v3616 = vld [vmem:[%s9 + $0x54] sm:$0xf]
  %v3617 = vld [vmem:[%s9 + $0x58] sm:$0xf]
  %v3618 = vld [vmem:[%s9 + $0x5c] sm:$0xf]
  %v3619 = vld [vmem:[%s9 + $0x60] sm:$0xf]
  %v3620 = vld [vmem:[%s9 + $0x64] sm:$0xf]
  %v3621 = vld [vmem:[%s9 + $0x68] sm:$0xf]
  %v3622 = vld [vmem:[%s9 + $0x6c] sm:$0xf]
  %v3623 = vld [vmem:[%s9 + $0x70] sm:$0xf]
  %v3624 = vld [vmem:[%s9 + $0x74] sm:$0xf]
  %v3625 = vld [vmem:[%s9 + $0x78] sm:$0xf]
  %v3626 = vld [vmem:[%s9 + $0x7c] sm:$0xf]
  %v3627 = vld [vmem:[%s11 + $0x14] sm:$0x1]
  %v3629 = vperm.slane %v3627, 0
  %v3663 = vunpack.c.l.b16 %v3595
  %v3664 = vunpack.c.l.b16 %v3596
  %v3665 = vunpack.c.l.b16 %v3597
  %v3666 = vunpack.c.l.b16 %v3598
  %v3667 = vunpack.c.l.b16 %v3599
  %v3668 = vunpack.c.l.b16 %v3600
  %v3669 = vunpack.c.l.b16 %v3601
  %v3670 = vunpack.c.l.b16 %v3602
  %v3671 = vunpack.c.l.b16 %v3603
  %v3672 = vunpack.c.l.b16 %v3604
  %v3673 = vunpack.c.l.b16 %v3605
  %v3674 = vunpack.c.l.b16 %v3606
  %v3675 = vunpack.c.l.b16 %v3607
  %v3676 = vunpack.c.l.b16 %v3608
  %v3677 = vunpack.c.l.b16 %v3609
  %v3678 = vunpack.c.l.b16 %v3610
  %v3679 = vunpack.c.l.b16 %v3611
  %v3680 = vunpack.c.l.b16 %v3612
  %v3681 = vunpack.c.l.b16 %v3613
  %v3682 = vunpack.c.l.b16 %v3614
  %v3683 = vunpack.c.l.b16 %v3615
  %v3684 = vunpack.c.l.b16 %v3616
  %v3685 = vunpack.c.l.b16 %v3617
  %v3686 = vunpack.c.l.b16 %v3618
  %v3687 = vunpack.c.l.b16 %v3619
  %v3688 = vunpack.c.l.b16 %v3620
  %v3689 = vunpack.c.l.b16 %v3621
  %v3690 = vunpack.c.l.b16 %v3622
  %v3691 = vunpack.c.l.b16 %v3623
  %v3692 = vunpack.c.l.b16 %v3624
  %v3693 = vunpack.c.l.b16 %v3625
  %v3694 = vunpack.c.l.b16 %v3626
  %v3695 = vpack.c.b16 %v3664, %v3663
  %v3696 = vpack.c.b16 %v3666, %v3665
  %v3697 = vpack.c.b16 %v3668, %v3667
  %v3698 = vpack.c.b16 %v3670, %v3669
  %v3699 = vpack.c.b16 %v3672, %v3671
  %v3700 = vpack.c.b16 %v3674, %v3673
  %v3701 = vpack.c.b16 %v3676, %v3675
  %v3702 = vpack.c.b16 %v3678, %v3677
  %v3703 = vpack.c.b16 %v3680, %v3679
  %v3704 = vpack.c.b16 %v3682, %v3681
  %v3705 = vpack.c.b16 %v3684, %v3683
  %v3706 = vpack.c.b16 %v3686, %v3685
  %v3707 = vpack.c.b16 %v3688, %v3687
  %v3708 = vpack.c.b16 %v3690, %v3689
  %v3709 = vpack.c.b16 %v3692, %v3691
  %v3710 = vpack.c.b16 %v3694, %v3693
  %3727 = vmatpush.bf16.msra.mxu0 %v3702
  %3728 = vmatpush.bf16.msra.mxu0 %v3701
  %3729 = vmatpush.bf16.msra.mxu0 %v3700
  %3730 = vmatpush.bf16.msra.mxu0 %v3699
  %3731 = vmatpush.bf16.msra.mxu0 %v3698
  %3732 = vmatpush.bf16.msra.mxu0 %v3697
  %3733 = vmatpush.bf16.msra.mxu0 %v3696
  %3734 = vmatpush.bf16.msra.mxu0 %v3695
  %3735 = vmatmul.bf16.gmra.mxu0 %v3593
  %v3736 = vpop.f32.mrf.mxu0
  %v3737 = vadd.f32 %v3629, %v3736
  %v3738 = vpop.f32.mrf.mxu0
  %3739 = vdwg.mxu0
  %3740 = vmatpush.bf16.msra.mxu0 %v3710
  %3741 = vmatpush.bf16.msra.mxu0 %v3709
  %3742 = vmatpush.bf16.msra.mxu0 %v3708
  %3743 = vmatpush.bf16.msra.mxu0 %v3707
  %3744 = vmatpush.bf16.msra.mxu0 %v3706
  %3745 = vmatpush.bf16.msra.mxu0 %v3705
  %3746 = vmatpush.bf16.msra.mxu0 %v3704
  %3747 = vmatpush.bf16.msra.mxu0 %v3703
  %3748 = vmatmul.bf16.gmra.mxu0 %v3594
  %v3749 = vpop.f32.mrf.mxu0
  %v3750 = vadd.f32 %v3737, %v3749
  %v3751 = vpop.f32.mrf.mxu0
  %3752 = vdwg.mxu0
  %v3753 = vmax.f32 %v3750, 0.0
  %v3754 = vld [vmem:[%s10] sm:$0x1]
  %v3756 = vperm.slane %v3754, 0
  %v3758 = vmul.f32 %v3753, %v3756
  %v3759 = vsel %vm3484, %v3758, 0.0
  %3760 = vadd.xlane.f32.xlu0 %v3759
  %v3761 = vpop.xlane.xlu0 %3760
  %v3762 = vld [vmem:[%s11 + $0x15] sm:$0x1]
  %v3764 = vperm.slane %v3762, 0
  %v3766 = vadd.f32 %v3761, %v3764
  %v3767 = vxor.u32 %v3766, 2147483648
  %v3768 = vmul.f32 %v3767, 1.442695
  %v3769 = vpow.pop %v3768
  %v3770 = vadd.f32 %v3769, 1.0
  %v3771 = vrcp.pop %v3770
  %v3772 = vmul.f32 %v3770, %v3771
  %v3773 = vsub.f32 1.0, %v3772
  %v3774 = vmul.f32 %v3771, %v3773
  %v3775 = vadd.f32 %v3771, %v3774
  %vm3776 = vweird.f32 %v3770
  %vm3777 = vweird.f32 %v3771
  %vm3778 = vmor %vm3776, %vm3777
  %v3779 = vsel %vm3778, %v3771, %v3775
  %v3780 = vand.u32 2147483647, %v3770
  %vm3781 = vcmp.eq.f32.partialorder %v3780, 8.507059e+37
  %v3782 = vand.u32 %v3770, 2147483648
  %v3783 = vor.u32 1.1754944e-38, %v3782
  %v3784 = vsel %vm3781, %v3783, %v3779
  %v3785 = vmul.f32 1.0, %v3784
  %vm3786 = vcmask 7168
  %3787 = vst.msk [vmem:[%s12] sm:$0xff] %vm3786, %v3785
  // Predicated region
  $region50: #{adversary_forward.1} parent=0 // pred_check
    _
  $region51: #{adversary_forward.1} parent=0 // pred_check_branch
    %3789 = sbr.rel (0) target = $region53
  $region52: #{adversary_forward.1} parent=0 // pred_region
    _
  $region53: #{adversary_forward.1} parent=0 // pred_fallthru
    _
  // Predicated region
  $region54: #{adversary_forward.1} parent=0 // pred_check
    _
  $region55: #{adversary_forward.1} parent=0 // pred_check_branch
    %3791 = sbr.rel (0) target = $region57
  $region56: #{adversary_forward.1} parent=0 // pred_region
    _
  $region57: #{adversary_forward.1} parent=0 // pred_fallthru
    _

</llo_original>
